<compile_context>
chip_gen: v7x
topology: tpu7x:2x2x1
jax: 0.10.0
libtpu: 0.0.40
codegen_flags: <defaults>
</compile_context>

<pallas_src>
import jax
import jax.numpy as jnp
from jax import lax
from jax.experimental import pallas as pl
from jax.experimental.pallas import tpu as pltpu

EPS = 1e-5         # torch.nn.BatchNorm2d default
_LEFT_PAD = 16     # bf16 sublane tile: interior writeback starts tile-aligned


def _round_up(v, m):
    return ((v + m - 1) // m) * m


# --------------------------------------------------------------------------
# Fused per-(batch, layer) kernel.  Per layer l (BN scales folded host-side):
#   y   = relu(conv3x3(x) + bi_c)            # conv weights carry sc_c
#   y   = relu(y * sc_i + bi_i)              # bns[l]
#   out = relu(y * sc_i + conv1x1(x) + bi2)  # shortcut carries sc_s*sc_i,
#                                            # bi2 = bi_s*sc_i + bi_i
# --------------------------------------------------------------------------
def _respath_layer_kernel(x_ref, w3_ref, w1_ref, prm_ref, out_ref, act_ref):
    """
    x_ref:   (1, H, W, Cpad)      bf16  channel-padded input (unpadded spatially)
    w3_ref:  (1, 9, Cpad, Cpad)   bf16  per-tap 3x3 weights, sc_c folded in
    w1_ref:  (1, Cpad, Cpad)      bf16  1x1 weights, sc_s*sc_i folded in
    prm_ref: (1, 4, Cpad)         f32   rows: [bi_c, sc_i, bi_i, bi_s*sc_i+bi_i]
    out_ref: (1, H*W, Cpad)       bf16
    act_ref: (H+2, Wtot, Cpad)    bf16  persistent VMEM scratch (activation)
    """
    hp2, _, cpad = act_ref.shape
    h = hp2 - 2
    w = x_ref.shape[2]
    hw = h * w
    lp = _LEFT_PAD

    l = pl.program_id(1)
    num_layers = pl.num_programs(1)

    # First layer of this batch element: zero the scratch (border must be
    # zero for the 'same' conv) and place the input in the interior.  The
    # border is never written afterwards, so it stays zero for every layer.
    @pl.when(l == 0)
    def _():
        act_ref[...] = jnp.zeros_like(act_ref)
        act_ref[1:1 + h, lp:lp + w, :] = x_ref[0]

    def tap(ky, kx):  # shifted view of the padded activation, flattened to (HW, C)
        return act_ref[ky:ky + h, lp - 1 + kx:lp - 1 + kx + w, :].reshape(hw, cpad)

    # 3x3 conv as 9 accumulating matmuls into an f32 accumulator (no im2col temp).
    acc = jnp.dot(tap(0, 0), w3_ref[0, 0], preferred_element_type=jnp.float32)
    for t in range(1, 9):
        ky, kx = divmod(t, 3)
        acc = acc + jnp.dot(tap(ky, kx), w3_ref[0, t],
                            preferred_element_type=jnp.float32)

    bi_c = prm_ref[0, 0:1, :]
    sc_i = prm_ref[0, 1:2, :]
    bi_i = prm_ref[0, 2:3, :]
    bi_2 = prm_ref[0, 3:4, :]   # bi_s * sc_i + bi_i

    y = jnp.maximum(acc + bi_c, 0.0)                    # convs[l]: conv+BN+relu
    y = jnp.maximum(y * sc_i + bi_i, 0.0)               # bns[l] + relu
    s = jnp.dot(tap(1, 1), w1_ref[0],                   # shortcuts[l] (scaled)
                preferred_element_type=jnp.float32)
    y = jnp.maximum(y * sc_i + s + bi_2, 0.0)           # add shortcut, bns[l]+relu

    @pl.when(l < num_layers - 1)
    def _():
        # Tile-aligned interior writeback; zero border is reused next layer.
        act_ref[1:1 + h, lp:lp + w, :] = y.reshape(h, w, cpad).astype(act_ref.dtype)

    @pl.when(l == num_layers - 1)
    def _():
        out_ref[0] = y.astype(out_ref.dtype)


# --------------------------------------------------------------------------
# Parameter setup (deterministic, synthetic) and BN folding.
# --------------------------------------------------------------------------
def _fold_bn(gamma, beta, mean, var, conv_bias=None):
    scale = gamma / jnp.sqrt(var + EPS)
    bias = beta - mean * scale
    if conv_bias is not None:
        bias = bias + scale * conv_bias  # fold conv bias into the following BN
    return scale, bias


def _bn_params(k, c):
    a, b, cm, d = jax.random.split(k, 4)
    gamma = 1.0 + 0.1 * jax.random.normal(a, (c,), jnp.float32)
    beta = 0.1 * jax.random.normal(b, (c,), jnp.float32)
    mean = 0.1 * jax.random.normal(cm, (c,), jnp.float32)
    var = jax.random.uniform(d, (c,), jnp.float32, 0.5, 1.5)
    return gamma, beta, mean, var


def init_respath_params(key, num_in_filters, num_out_filters, respath_length):
    params = []
    for i in range(respath_length):
        cin = num_in_filters if i == 0 else num_out_filters
        ks = jax.random.split(jax.random.fold_in(key, i), 7)
        params.append(dict(
            w3=0.1 * jax.random.normal(ks[0], (3, 3, cin, num_out_filters), jnp.float32),
            b3=0.1 * jax.random.normal(ks[1], (num_out_filters,), jnp.float32),
            w1=0.1 * jax.random.normal(ks[2], (1, 1, cin, num_out_filters), jnp.float32),
            b1=0.1 * jax.random.normal(ks[3], (num_out_filters,), jnp.float32),
            bn_c=_bn_params(ks[4], num_out_filters),   # BN inside convs[i]
            bn_s=_bn_params(ks[5], num_out_filters),   # BN inside shortcuts[i]
            bn_i=_bn_params(ks[6], num_out_filters),   # bns[i] (applied twice)
        ))
    return params


# --------------------------------------------------------------------------
# Public forward: NCHW in / NCHW out.  Host side only folds + pads + packs.
# --------------------------------------------------------------------------
def respath_forward(x_nchw, params):
    x = jnp.transpose(x_nchw, (0, 2, 3, 1)).astype(jnp.float32)  # NCHW -> NHWC
    n, h, w, cin = x.shape
    cout = params[0]["w3"].shape[-1]
    num_layers = len(params)
    cpad = _round_up(max(cin, cout), 128)          # lane-dense channel width
    hw = h * w
    lp = _LEFT_PAD
    w_tot = _round_up(lp + w + 1, 16)              # scratch W, tile-exact

    # Fold BN scales into conv weights, pad channels to cpad, stack per layer.
    w3_list, w1_list, prm_list = [], [], []
    for p in params:
        ci = p["w3"].shape[2]
        sc_c, bi_c = _fold_bn(*p["bn_c"], conv_bias=p["b3"])
        sc_s, bi_s = _fold_bn(*p["bn_s"], conv_bias=p["b1"])
        sc_i, bi_i = _fold_bn(*p["bn_i"])

        w3 = p["w3"] * sc_c                                # (3,3,ci,cout)
        w1 = p["w1"][0, 0] * (sc_s * sc_i)                 # (ci,cout), sc_i folded

        w3p = jnp.zeros((9, cpad, cpad), jnp.float32)
        w3p = w3p.at[:, :ci, :cout].set(w3.reshape(9, ci, cout))
        w1p = jnp.zeros((cpad, cpad), jnp.float32).at[:ci, :cout].set(w1)

        prm = jnp.zeros((4, cpad), jnp.float32)
        prm = prm.at[0, :cout].set(bi_c)
        prm = prm.at[1, :cout].set(sc_i)
        prm = prm.at[2, :cout].set(bi_i)
        prm = prm.at[3, :cout].set(bi_s * sc_i + bi_i)

        w3_list.append(w3p)
        w1_list.append(w1p)
        prm_list.append(prm)

    w3s = jnp.stack(w3_list).astype(jnp.bfloat16)    # (L, 9, cpad, cpad)
    w1s = jnp.stack(w1_list).astype(jnp.bfloat16)    # (L, cpad, cpad)
    prms = jnp.stack(prm_list)                       # (L, 4, cpad) f32

    # Channel-pad the input once; spatial padding happens inside the kernel's
    # persistent scratch (so the zero border is never shipped from HBM).
    xp = jnp.zeros((n, h, w, cpad), jnp.bfloat16)
    xp = xp.at[:, :, :, :cin].set(x.astype(jnp.bfloat16))

    # Scoped VMEM: act scratch + double-buffered blocks + compute temporaries.
    act_bytes = (h + 2) * w_tot * cpad * 2
    blk_bytes = 2 * (h * w * cpad * 2 + 9 * cpad * cpad * 2 + cpad * cpad * 2
                     + 4 * cpad * 4 + hw * cpad * 2)
    tmp_bytes = 16 * hw * cpad
    vmem_limit = int(min(64 * 1024 * 1024,
                         max(2 * (act_bytes + blk_bytes + tmp_bytes),
                             16 * 1024 * 1024)))

    cost = pl.CostEstimate(
        flops=2 * n * num_layers * hw * cpad * cpad * 10,
        transcendentals=0,
        bytes_accessed=int(xp.size * 2 + n * (w3s.size + w1s.size) * 2
                           + prms.size * 4 + n * hw * cpad * 2))

    out = pl.pallas_call(
        _respath_layer_kernel,
        out_shape=jax.ShapeDtypeStruct((n, hw, cpad), jnp.bfloat16),
        grid_spec=pltpu.PrefetchScalarGridSpec(
            num_scalar_prefetch=0,
            grid=(n, num_layers),
            in_specs=[
                pl.BlockSpec((1, h, w, cpad), lambda b, l: (b, 0, 0, 0)),
                pl.BlockSpec((1, 9, cpad, cpad), lambda b, l: (l, 0, 0, 0)),
                pl.BlockSpec((1, cpad, cpad), lambda b, l: (l, 0, 0)),
                pl.BlockSpec((1, 4, cpad), lambda b, l: (l, 0, 0)),
            ],
            out_specs=pl.BlockSpec((1, hw, cpad), lambda b, l: (b, 0, 0)),
            scratch_shapes=[pltpu.VMEM((h + 2, w_tot, cpad), jnp.bfloat16)],
        ),
        compiler_params=pltpu.CompilerParams(
            dimension_semantics=("parallel", "arbitrary"),
            vmem_limit_bytes=vmem_limit),
        cost_estimate=cost,
    )(xp, w3s, w1s, prms)

    out = out[:, :, :cout].astype(jnp.float32).reshape(n, h, w, cout)
    return jnp.transpose(out, (0, 3, 1, 2))          # NHWC -> NCHW


# --------------------------------------------------------------------------
# Pure-JAX reference (eval-mode BN, f32) for a correctness check.
# --------------------------------------------------------------------------
def respath_reference(x_nchw, params):
    x = jnp.transpose(x_nchw, (0, 2, 3, 1)).astype(jnp.float32)
    dn = ("NHWC", "HWIO", "NHWC")

    def bn(z, g, b, m, v):
        return (z - m) / jnp.sqrt(v + EPS) * g + b

    for p in params:
        sc = lax.conv_general_dilated(x, p["w1"], (1, 1), "SAME",
                                      dimension_numbers=dn) + p["b1"]
        sc = bn(sc, *p["bn_s"])
        y = lax.conv_general_dilated(x, p["w3"], (1, 1), "SAME",
                                     dimension_numbers=dn) + p["b3"]
        y = jax.nn.relu(bn(y, *p["bn_c"]))
        y = jax.nn.relu(bn(y, *p["bn_i"]))
        y = y + sc
        y = jax.nn.relu(bn(y, *p["bn_i"]))
        x = y
    return jnp.transpose(x, (0, 3, 1, 2))


if __name__ == "__main__":
    key = jax.random.PRNGKey(0)
    kx, kp = jax.random.split(key)

    N, C_IN, H, W = 2, 4, 16, 16
    C_OUT, LENGTH = 8, 3

    x = jax.random.normal(kx, (N, C_IN, H, W), jnp.float32)   # PyTorch NCHW input
    params = init_respath_params(kp, C_IN, C_OUT, LENGTH)

    out = respath_forward(x, params)
    out = jax.block_until_ready(out)

    ref = respath_reference(x, params)
    assert out.shape == (N, C_OUT, H, W), out.shape
    # bf16 matmul path + bf16 output vs f32 reference -> loosened tolerance.
    if not jnp.allclose(out, ref, rtol=5e-2, atol=5e-2):
        max_err = float(jnp.max(jnp.abs(out - ref)))
        raise AssertionError(
            f"Pallas Respath output mismatches JAX reference (max abs err={max_err})")

    print("KERNEL_OK")
</pallas_src>

<mosaic_0001>
module attributes {stable_mosaic.version = 11 : i64} {
  func.func @_respath_layer_kernel(%arg0: i32, %arg1: i32, %arg2: memref<1x16x16x128xbf16, #tpu.memory_space<vmem>>, %arg3: memref<1x9x128x128xbf16, #tpu.memory_space<vmem>>, %arg4: memref<1x128x128xbf16, #tpu.memory_space<vmem>>, %arg5: memref<1x4x128xf32, #tpu.memory_space<vmem>>, %arg6: memref<1x256x128xbf16, #tpu.memory_space<vmem>>, %arg7: memref<18x48x128xbf16, #tpu.memory_space<vmem>>) attributes {dimension_semantics = [#tpu.dimension_semantics<parallel>, #tpu.dimension_semantics<arbitrary>], iteration_bounds = array<i64: 2, 3>, scalar_prefetch = 0 : i64, scratch_operands = 1 : i64, tpu.core_type = #tpu.core_type<tc>, window_params = [{transform_indices = @transform_0, window_bounds = array<i64: 1, 16, 16, 128>}, {transform_indices = @transform_1, window_bounds = array<i64: 1, 9, 128, 128>}, {transform_indices = @transform_2, window_bounds = array<i64: 1, 128, 128>}, {transform_indices = @transform_3, window_bounds = array<i64: 1, 4, 128>}, {transform_indices = @transform_4, window_bounds = array<i64: 1, 256, 128>}]} {
    %c0_i32 = arith.constant 0 : i32
    %0 = arith.cmpi eq, %arg1, %c0_i32 : i32
    %1 = arith.extui %0 : i1 to i32
    %c0_i32_0 = arith.constant 0 : i32
    %2 = arith.cmpi ne, %1, %c0_i32_0 : i32
    scf.if %2 {
      %cst_85 = arith.constant 0.000000e+00 : bf16
      %92 = vector.broadcast %cst_85 : bf16 to vector<18x48x128xbf16>
      %c0_86 = arith.constant 0 : index
      %c0_87 = arith.constant 0 : index
      %c0_88 = arith.constant 0 : index
      %93 = vector.load %arg7[%c0_86, %c0_87, %c0_88] : memref<18x48x128xbf16, #tpu.memory_space<vmem>>, vector<18x48x128xbf16>
      tpu.vector_store %arg7[%c0_86, %c0_87, %c0_88], %92 {strides = array<i32>} : memref<18x48x128xbf16, #tpu.memory_space<vmem>>, vector<18x48x128xbf16>,
      %c0_89 = arith.constant 0 : index
      %c0_90 = arith.constant 0 : index
      %c0_91 = arith.constant 0 : index
      %c0_92 = arith.constant 0 : index
      %94 = vector.load %arg2[%c0_89, %c0_90, %c0_91, %c0_92] : memref<1x16x16x128xbf16, #tpu.memory_space<vmem>>, vector<1x16x16x128xbf16>
      %95 = vector.shape_cast %94 : vector<1x16x16x128xbf16> to vector<16x16x128xbf16>
      %c1_93 = arith.constant 1 : index
      %c16_94 = arith.constant 16 : index
      %c0_95 = arith.constant 0 : index
      %96 = vector.load %arg7[%c1_93, %c16_94, %c0_95] : memref<18x48x128xbf16, #tpu.memory_space<vmem>>, vector<16x16x128xbf16>
      tpu.vector_store %arg7[%c1_93, %c16_94, %c0_95], %95 {strides = array<i32>} : memref<18x48x128xbf16, #tpu.memory_space<vmem>>, vector<16x16x128xbf16>,
    } else {
    }
    %c0 = arith.constant 0 : index
    %c15 = arith.constant 15 : index
    %c0_1 = arith.constant 0 : index
    %3 = vector.load %arg7[%c0, %c15, %c0_1] : memref<18x48x128xbf16, #tpu.memory_space<vmem>>, vector<16x16x128xbf16>
    %4 = vector.shape_cast %3 : vector<16x16x128xbf16> to vector<256x128xbf16>
    %c0_2 = arith.constant 0 : index
    %c0_3 = arith.constant 0 : index
    %c0_4 = arith.constant 0 : index
    %c0_5 = arith.constant 0 : index
    %5 = vector.load %arg3[%c0_2, %c0_3, %c0_4, %c0_5] : memref<1x9x128x128xbf16, #tpu.memory_space<vmem>>, vector<1x1x128x128xbf16>
    %6 = vector.shape_cast %5 : vector<1x1x128x128xbf16> to vector<128x128xbf16>
    %cst = arith.constant dense<0.000000e+00> : vector<256x128xf32>
    %7 = tpu.matmul %4, %6, %cst {dimension_numbers = #tpu.dot_dimension_numbers<[1], [0], [0], [1], [0, 0, 1, 1], [], []>} : vector<256x128xbf16>, vector<128x128xbf16>, vector<256x128xf32> -> vector<256x128xf32>
    %c0_6 = arith.constant 0 : index
    %c16 = arith.constant 16 : index
    %c0_7 = arith.constant 0 : index
    %8 = vector.load %arg7[%c0_6, %c16, %c0_7] : memref<18x48x128xbf16, #tpu.memory_space<vmem>>, vector<16x16x128xbf16>
    %9 = vector.shape_cast %8 : vector<16x16x128xbf16> to vector<256x128xbf16>
    %c0_8 = arith.constant 0 : index
    %c1 = arith.constant 1 : index
    %c0_9 = arith.constant 0 : index
    %c0_10 = arith.constant 0 : index
    %10 = vector.load %arg3[%c0_8, %c1, %c0_9, %c0_10] : memref<1x9x128x128xbf16, #tpu.memory_space<vmem>>, vector<1x1x128x128xbf16>
    %11 = vector.shape_cast %10 : vector<1x1x128x128xbf16> to vector<128x128xbf16>
    %cst_11 = arith.constant dense<0.000000e+00> : vector<256x128xf32>
    %12 = tpu.matmul %9, %11, %cst_11 {dimension_numbers = #tpu.dot_dimension_numbers<[1], [0], [0], [1], [0, 0, 1, 1], [], []>} : vector<256x128xbf16>, vector<128x128xbf16>, vector<256x128xf32> -> vector<256x128xf32>
    %13 = arith.addf %7, %12 : vector<256x128xf32>
    %c0_12 = arith.constant 0 : index
    %c17 = arith.constant 17 : index
    %c0_13 = arith.constant 0 : index
    %14 = vector.load %arg7[%c0_12, %c17, %c0_13] : memref<18x48x128xbf16, #tpu.memory_space<vmem>>, vector<16x16x128xbf16>
    %15 = vector.shape_cast %14 : vector<16x16x128xbf16> to vector<256x128xbf16>
    %c0_14 = arith.constant 0 : index
    %c2 = arith.constant 2 : index
    %c0_15 = arith.constant 0 : index
    %c0_16 = arith.constant 0 : index
    %16 = vector.load %arg3[%c0_14, %c2, %c0_15, %c0_16] : memref<1x9x128x128xbf16, #tpu.memory_space<vmem>>, vector<1x1x128x128xbf16>
    %17 = vector.shape_cast %16 : vector<1x1x128x128xbf16> to vector<128x128xbf16>
    %cst_17 = arith.constant dense<0.000000e+00> : vector<256x128xf32>
    %18 = tpu.matmul %15, %17, %cst_17 {dimension_numbers = #tpu.dot_dimension_numbers<[1], [0], [0], [1], [0, 0, 1, 1], [], []>} : vector<256x128xbf16>, vector<128x128xbf16>, vector<256x128xf32> -> vector<256x128xf32>
    %19 = arith.addf %13, %18 : vector<256x128xf32>
    %c1_18 = arith.constant 1 : index
    %c15_19 = arith.constant 15 : index
    %c0_20 = arith.constant 0 : index
    %20 = vector.load %arg7[%c1_18, %c15_19, %c0_20] : memref<18x48x128xbf16, #tpu.memory_space<vmem>>, vector<16x16x128xbf16>
    %21 = vector.shape_cast %20 : vector<16x16x128xbf16> to vector<256x128xbf16>
    %c0_21 = arith.constant 0 : index
    %c3 = arith.constant 3 : index
    %c0_22 = arith.constant 0 : index
    %c0_23 = arith.constant 0 : index
    %22 = vector.load %arg3[%c0_21, %c3, %c0_22, %c0_23] : memref<1x9x128x128xbf16, #tpu.memory_space<vmem>>, vector<1x1x128x128xbf16>
    %23 = vector.shape_cast %22 : vector<1x1x128x128xbf16> to vector<128x128xbf16>
    %cst_24 = arith.constant dense<0.000000e+00> : vector<256x128xf32>
    %24 = tpu.matmul %21, %23, %cst_24 {dimension_numbers = #tpu.dot_dimension_numbers<[1], [0], [0], [1], [0, 0, 1, 1], [], []>} : vector<256x128xbf16>, vector<128x128xbf16>, vector<256x128xf32> -> vector<256x128xf32>
    %25 = arith.addf %19, %24 : vector<256x128xf32>
    %c1_25 = arith.constant 1 : index
    %c16_26 = arith.constant 16 : index
    %c0_27 = arith.constant 0 : index
    %26 = vector.load %arg7[%c1_25, %c16_26, %c0_27] : memref<18x48x128xbf16, #tpu.memory_space<vmem>>, vector<16x16x128xbf16>
    %27 = vector.shape_cast %26 : vector<16x16x128xbf16> to vector<256x128xbf16>
    %c0_28 = arith.constant 0 : index
    %c4 = arith.constant 4 : index
    %c0_29 = arith.constant 0 : index
    %c0_30 = arith.constant 0 : index
    %28 = vector.load %arg3[%c0_28, %c4, %c0_29, %c0_30] : memref<1x9x128x128xbf16, #tpu.memory_space<vmem>>, vector<1x1x128x128xbf16>
    %29 = vector.shape_cast %28 : vector<1x1x128x128xbf16> to vector<128x128xbf16>
    %cst_31 = arith.constant dense<0.000000e+00> : vector<256x128xf32>
    %30 = tpu.matmul %27, %29, %cst_31 {dimension_numbers = #tpu.dot_dimension_numbers<[1], [0], [0], [1], [0, 0, 1, 1], [], []>} : vector<256x128xbf16>, vector<128x128xbf16>, vector<256x128xf32> -> vector<256x128xf32>
    %31 = arith.addf %25, %30 : vector<256x128xf32>
    %c1_32 = arith.constant 1 : index
    %c17_33 = arith.constant 17 : index
    %c0_34 = arith.constant 0 : index
    %32 = vector.load %arg7[%c1_32, %c17_33, %c0_34] : memref<18x48x128xbf16, #tpu.memory_space<vmem>>, vector<16x16x128xbf16>
    %33 = vector.shape_cast %32 : vector<16x16x128xbf16> to vector<256x128xbf16>
    %c0_35 = arith.constant 0 : index
    %c5 = arith.constant 5 : index
    %c0_36 = arith.constant 0 : index
    %c0_37 = arith.constant 0 : index
    %34 = vector.load %arg3[%c0_35, %c5, %c0_36, %c0_37] : memref<1x9x128x128xbf16, #tpu.memory_space<vmem>>, vector<1x1x128x128xbf16>
    %35 = vector.shape_cast %34 : vector<1x1x128x128xbf16> to vector<128x128xbf16>
    %cst_38 = arith.constant dense<0.000000e+00> : vector<256x128xf32>
    %36 = tpu.matmul %33, %35, %cst_38 {dimension_numbers = #tpu.dot_dimension_numbers<[1], [0], [0], [1], [0, 0, 1, 1], [], []>} : vector<256x128xbf16>, vector<128x128xbf16>, vector<256x128xf32> -> vector<256x128xf32>
    %37 = arith.addf %31, %36 : vector<256x128xf32>
    %c2_39 = arith.constant 2 : index
    %c15_40 = arith.constant 15 : index
    %c0_41 = arith.constant 0 : index
    %38 = vector.load %arg7[%c2_39, %c15_40, %c0_41] : memref<18x48x128xbf16, #tpu.memory_space<vmem>>, vector<16x16x128xbf16>
    %39 = vector.shape_cast %38 : vector<16x16x128xbf16> to vector<256x128xbf16>
    %c0_42 = arith.constant 0 : index
    %c6 = arith.constant 6 : index
    %c0_43 = arith.constant 0 : index
    %c0_44 = arith.constant 0 : index
    %40 = vector.load %arg3[%c0_42, %c6, %c0_43, %c0_44] : memref<1x9x128x128xbf16, #tpu.memory_space<vmem>>, vector<1x1x128x128xbf16>
    %41 = vector.shape_cast %40 : vector<1x1x128x128xbf16> to vector<128x128xbf16>
    %cst_45 = arith.constant dense<0.000000e+00> : vector<256x128xf32>
    %42 = tpu.matmul %39, %41, %cst_45 {dimension_numbers = #tpu.dot_dimension_numbers<[1], [0], [0], [1], [0, 0, 1, 1], [], []>} : vector<256x128xbf16>, vector<128x128xbf16>, vector<256x128xf32> -> vector<256x128xf32>
    %43 = arith.addf %37, %42 : vector<256x128xf32>
    %c2_46 = arith.constant 2 : index
    %c16_47 = arith.constant 16 : index
    %c0_48 = arith.constant 0 : index
    %44 = vector.load %arg7[%c2_46, %c16_47, %c0_48] : memref<18x48x128xbf16, #tpu.memory_space<vmem>>, vector<16x16x128xbf16>
    %45 = vector.shape_cast %44 : vector<16x16x128xbf16> to vector<256x128xbf16>
    %c0_49 = arith.constant 0 : index
    %c7 = arith.constant 7 : index
    %c0_50 = arith.constant 0 : index
    %c0_51 = arith.constant 0 : index
    %46 = vector.load %arg3[%c0_49, %c7, %c0_50, %c0_51] : memref<1x9x128x128xbf16, #tpu.memory_space<vmem>>, vector<1x1x128x128xbf16>
    %47 = vector.shape_cast %46 : vector<1x1x128x128xbf16> to vector<128x128xbf16>
    %cst_52 = arith.constant dense<0.000000e+00> : vector<256x128xf32>
    %48 = tpu.matmul %45, %47, %cst_52 {dimension_numbers = #tpu.dot_dimension_numbers<[1], [0], [0], [1], [0, 0, 1, 1], [], []>} : vector<256x128xbf16>, vector<128x128xbf16>, vector<256x128xf32> -> vector<256x128xf32>
    %49 = arith.addf %43, %48 : vector<256x128xf32>
    %c2_53 = arith.constant 2 : index
    %c17_54 = arith.constant 17 : index
    %c0_55 = arith.constant 0 : index
    %50 = vector.load %arg7[%c2_53, %c17_54, %c0_55] : memref<18x48x128xbf16, #tpu.memory_space<vmem>>, vector<16x16x128xbf16>
    %51 = vector.shape_cast %50 : vector<16x16x128xbf16> to vector<256x128xbf16>
    %c0_56 = arith.constant 0 : index
    %c8 = arith.constant 8 : index
    %c0_57 = arith.constant 0 : index
    %c0_58 = arith.constant 0 : index
    %52 = vector.load %arg3[%c0_56, %c8, %c0_57, %c0_58] : memref<1x9x128x128xbf16, #tpu.memory_space<vmem>>, vector<1x1x128x128xbf16>
    %53 = vector.shape_cast %52 : vector<1x1x128x128xbf16> to vector<128x128xbf16>
    %cst_59 = arith.constant dense<0.000000e+00> : vector<256x128xf32>
    %54 = tpu.matmul %51, %53, %cst_59 {dimension_numbers = #tpu.dot_dimension_numbers<[1], [0], [0], [1], [0, 0, 1, 1], [], []>} : vector<256x128xbf16>, vector<128x128xbf16>, vector<256x128xf32> -> vector<256x128xf32>
    %55 = arith.addf %49, %54 : vector<256x128xf32>
    %c0_60 = arith.constant 0 : index
    %c0_61 = arith.constant 0 : index
    %c0_62 = arith.constant 0 : index
    %56 = vector.load %arg5[%c0_60, %c0_61, %c0_62] : memref<1x4x128xf32, #tpu.memory_space<vmem>>, vector<1x1x128xf32>
    %57 = vector.shape_cast %56 : vector<1x1x128xf32> to vector<1x128xf32>
    %c0_63 = arith.constant 0 : index
    %c1_64 = arith.constant 1 : index
    %c0_65 = arith.constant 0 : index
    %58 = vector.load %arg5[%c0_63, %c1_64, %c0_65] : memref<1x4x128xf32, #tpu.memory_space<vmem>>, vector<1x1x128xf32>
    %59 = vector.shape_cast %58 : vector<1x1x128xf32> to vector<1x128xf32>
    %c0_66 = arith.constant 0 : index
    %c2_67 = arith.constant 2 : index
    %c0_68 = arith.constant 0 : index
    %60 = vector.load %arg5[%c0_66, %c2_67, %c0_68] : memref<1x4x128xf32, #tpu.memory_space<vmem>>, vector<1x1x128xf32>
    %61 = vector.shape_cast %60 : vector<1x1x128xf32> to vector<1x128xf32>
    %c0_69 = arith.constant 0 : index
    %c3_70 = arith.constant 3 : index
    %c0_71 = arith.constant 0 : index
    %62 = vector.load %arg5[%c0_69, %c3_70, %c0_71] : memref<1x4x128xf32, #tpu.memory_space<vmem>>, vector<1x1x128xf32>
    %63 = vector.shape_cast %62 : vector<1x1x128xf32> to vector<1x128xf32>
    %64 = vector.broadcast %57 : vector<1x128xf32> to vector<256x128xf32>
    %65 = arith.addf %55, %64 : vector<256x128xf32>
    %cst_72 = arith.constant 0.000000e+00 : f32
    %66 = vector.broadcast %cst_72 : f32 to vector<256x128xf32>
    %67 = arith.maximumf %65, %66 : vector<256x128xf32>
    %68 = vector.broadcast %59 : vector<1x128xf32> to vector<256x128xf32>
    %69 = arith.mulf %67, %68 : vector<256x128xf32>
    %70 = vector.broadcast %61 : vector<1x128xf32> to vector<256x128xf32>
    %71 = arith.addf %69, %70 : vector<256x128xf32>
    %cst_73 = arith.constant 0.000000e+00 : f32
    %72 = vector.broadcast %cst_73 : f32 to vector<256x128xf32>
    %73 = arith.maximumf %71, %72 : vector<256x128xf32>
    %c1_74 = arith.constant 1 : index
    %c16_75 = arith.constant 16 : index
    %c0_76 = arith.constant 0 : index
    %74 = vector.load %arg7[%c1_74, %c16_75, %c0_76] : memref<18x48x128xbf16, #tpu.memory_space<vmem>>, vector<16x16x128xbf16>
    %75 = vector.shape_cast %74 : vector<16x16x128xbf16> to vector<256x128xbf16>
    %c0_77 = arith.constant 0 : index
    %c0_78 = arith.constant 0 : index
    %c0_79 = arith.constant 0 : index
    %76 = vector.load %arg4[%c0_77, %c0_78, %c0_79] : memref<1x128x128xbf16, #tpu.memory_space<vmem>>, vector<1x128x128xbf16>
    %77 = vector.shape_cast %76 : vector<1x128x128xbf16> to vector<128x128xbf16>
    %cst_80 = arith.constant dense<0.000000e+00> : vector<256x128xf32>
    %78 = tpu.matmul %75, %77, %cst_80 {dimension_numbers = #tpu.dot_dimension_numbers<[1], [0], [0], [1], [0, 0, 1, 1], [], []>} : vector<256x128xbf16>, vector<128x128xbf16>, vector<256x128xf32> -> vector<256x128xf32>
    %79 = vector.broadcast %59 : vector<1x128xf32> to vector<256x128xf32>
    %80 = arith.mulf %73, %79 : vector<256x128xf32>
    %81 = arith.addf %80, %78 : vector<256x128xf32>
    %82 = vector.broadcast %63 : vector<1x128xf32> to vector<256x128xf32>
    %83 = arith.addf %81, %82 : vector<256x128xf32>
    %cst_81 = arith.constant 0.000000e+00 : f32
    %84 = vector.broadcast %cst_81 : f32 to vector<256x128xf32>
    %85 = arith.maximumf %83, %84 : vector<256x128xf32>
    %c2_i32 = arith.constant 2 : i32
    %86 = arith.cmpi slt, %arg1, %c2_i32 : i32
    %87 = arith.extui %86 : i1 to i32
    %c0_i32_82 = arith.constant 0 : i32
    %88 = arith.cmpi ne, %87, %c0_i32_82 : i32
    scf.if %88 {
      %92 = vector.shape_cast %85 : vector<256x128xf32> to vector<16x16x128xf32>
      %93 = arith.truncf %92 : vector<16x16x128xf32> to vector<16x16x128xbf16>
      %c1_85 = arith.constant 1 : index
      %c16_86 = arith.constant 16 : index
      %c0_87 = arith.constant 0 : index
      %94 = vector.load %arg7[%c1_85, %c16_86, %c0_87] : memref<18x48x128xbf16, #tpu.memory_space<vmem>>, vector<16x16x128xbf16>
      tpu.vector_store %arg7[%c1_85, %c16_86, %c0_87], %93 {strides = array<i32>} : memref<18x48x128xbf16, #tpu.memory_space<vmem>>, vector<16x16x128xbf16>,
    } else {
    }
    %c2_i32_83 = arith.constant 2 : i32
    %89 = arith.cmpi eq, %arg1, %c2_i32_83 : i32
    %90 = arith.extui %89 : i1 to i32
    %c0_i32_84 = arith.constant 0 : i32
    %91 = arith.cmpi ne, %90, %c0_i32_84 : i32
    scf.if %91 {
      %92 = arith.truncf %85 : vector<256x128xf32> to vector<256x128xbf16>
      %c0_85 = arith.constant 0 : index
      %c0_86 = arith.constant 0 : index
      %c0_87 = arith.constant 0 : index
      %93 = vector.load %arg6[%c0_85, %c0_86, %c0_87] : memref<1x256x128xbf16, #tpu.memory_space<vmem>>, vector<1x256x128xbf16>
      %94 = vector.shape_cast %93 : vector<1x256x128xbf16> to vector<256x128xbf16>
      %95 = vector.shape_cast %92 : vector<256x128xbf16> to vector<1x256x128xbf16>
      tpu.vector_store %arg6[%c0_85, %c0_86, %c0_87], %95 {strides = array<i32>} : memref<1x256x128xbf16, #tpu.memory_space<vmem>>, vector<1x256x128xbf16>,
    } else {
    }
    return
  }
  func.func @transform_0(%arg0: i32, %arg1: i32) -> (i32, i32, i32, i32) {
    %c0_i32 = arith.constant 0 : i32
    %c0_i32_0 = arith.constant 0 : i32
    %c0_i32_1 = arith.constant 0 : i32
    %c0_i32_2 = arith.constant 0 : i32
    return %arg0, %c0_i32, %c0_i32_0, %c0_i32_1 : i32, i32, i32, i32
  }
  func.func @transform_1(%arg0: i32, %arg1: i32) -> (i32, i32, i32, i32) {
    %c0_i32 = arith.constant 0 : i32
    %c0_i32_0 = arith.constant 0 : i32
    %c0_i32_1 = arith.constant 0 : i32
    %c0_i32_2 = arith.constant 0 : i32
    return %arg1, %c0_i32, %c0_i32_0, %c0_i32_1 : i32, i32, i32, i32
  }
  func.func @transform_2(%arg0: i32, %arg1: i32) -> (i32, i32, i32) {
    %c0_i32 = arith.constant 0 : i32
    %c0_i32_0 = arith.constant 0 : i32
    %c0_i32_1 = arith.constant 0 : i32
    return %arg1, %c0_i32, %c0_i32_0 : i32, i32, i32
  }
  func.func @transform_3(%arg0: i32, %arg1: i32) -> (i32, i32, i32) {
    %c0_i32 = arith.constant 0 : i32
    %c0_i32_0 = arith.constant 0 : i32
    %c0_i32_1 = arith.constant 0 : i32
    return %arg1, %c0_i32, %c0_i32_0 : i32, i32, i32
  }
  func.func @transform_4(%arg0: i32, %arg1: i32) -> (i32, i32, i32) {
    %c0_i32 = arith.constant 0 : i32
    %c0_i32_0 = arith.constant 0 : i32
    %c0_i32_1 = arith.constant 0 : i32
    return %arg0, %c0_i32, %c0_i32_0 : i32, i32, i32
  }
}

</mosaic_0001>

<llo_original>
// kernel: tpu_custom_call.1
$region0: #{tpu_custom_call.1}
  #allocation0 [shape = 'u32[]', space=smem, size = 0x4, offset = 0x4, fixed_abs, tag = 'smem constant byte address 0x4 - core index']
  #allocation1 [shape = 'u32[144,128]{1,0:T(1,128)}', space=vmem, size = 0x12000, scoped, tag = 'internal scratch']
  #allocation2 [shape = 'bf16[18,48,128]{2,1,0:T(16,128)(2,1)}', space=vmem, size = 0x36000, scoped, tag = 'scratch operand']
  %s0 = inlined_call_operand.hbm [shape: bf16[2,16,16,128], index: 0, kind: input, shape index: {}]
  %s1 = inlined_call_operand.hbm [shape: bf16[3,9,128,128], index: 1, kind: input, shape index: {}]
  %s2 = inlined_call_operand.hbm [shape: bf16[3,128,128], index: 2, kind: input, shape index: {}]
  %s3 = inlined_call_operand.hbm [shape: f32[3,4,128], index: 3, kind: input, shape index: {}]
  %s4 = inlined_call_operand.hbm [shape: bf16[2,256,128], index: 4, kind: output, shape index: {}]
  %s5 = sld [smem:[#allocation0]]
  $region77: #{tpu_custom_call.1} parent=0
    _
  %s7 = ssub.s32 1, %s5
  %s8 = scalar_select 0, %s7, %s5
  $region1: #{tpu_custom_call.1} parent=0
    #allocation3 [shape = 'u8[131072]{0}', space=vmem, size = 0x20000, scoped, tag = 'input window, operand 0']
    #allocation4 [shape = 's32[2]{0}', space=sflag, size = 0x8, scoped, tag = 'scoped memory for tpu_custom_call.1']
    #allocation5 [shape = 's32[2]{0}', space=sflag, size = 0x8, scoped, tag = 'scoped memory for tpu_custom_call.1']
    #allocation6 [shape = 'u8[589824]{0}', space=vmem, size = 0x90000, scoped, tag = 'input window, operand 1']
    #allocation7 [shape = 's32[2]{0}', space=sflag, size = 0x8, scoped, tag = 'scoped memory for tpu_custom_call.1']
    #allocation8 [shape = 'u8[65536]{0}', space=vmem, size = 0x10000, scoped, tag = 'input window, operand 2']
    #allocation9 [shape = 'u8[4096]{0}', space=vmem, size = 0x1000, scoped, tag = 'input window, operand 3']
    #allocation10 [shape = 's32[2]{0}', space=sflag, size = 0x8, scoped, tag = 'scoped memory for tpu_custom_call.1']
    #allocation11 [shape = 'u8[131072]{0}', space=vmem, size = 0x20000, scoped, tag = 'output window, operand 0']
    %9 = vsyncpa [#allocation4], 0
    %s10 = scalar_lea.sflag [#allocation4], 1
    %11 = vsyncpa %s10, 0
    %12 = vsyncpa [#allocation7], 0
    %s13 = scalar_lea.sflag [#allocation7], 1
    %14 = vsyncpa %s13, 0
    %15 = vsyncpa [#allocation10], 0
    %s16 = scalar_lea.sflag [#allocation10], 1
    %17 = vsyncpa %s16, 0
    %18 = vsyncpa [#allocation5], 0
    %s19 = scalar_lea.sflag [#allocation5], 1
    %20 = vsyncpa %s19, 0
    loop: start=0, step=1, limit=8
    $region2: #{tpu_custom_call.1} parent=1 // loop_pre_header
      _
    $region3: #{tpu_custom_call.1} parent=1 // loop_header
      %s22 = sphi 0, %s26
      %p23 = scmp.ge.s32.totalorder %s22, 8
      %s29 = sphi 0, %s41
      %s30 = sphi 0, %s37
      %s31 = sphi 0, %s29
      %s32 = sphi 0, %s30
      %s33 = sphi 0, %s31
      %s34 = sphi 0, %s32
      %s44 = sphi 0, %s46
      %s47 = sphi 0, %s44
      %s48 = sphi 0, %s47
      %s64 = sphi 0, %s48
      %s70 = sphi 0, %s72
      %s73 = sphi 0, %s70
      %s74 = sphi 0, %s73
      %s90 = sphi 0, %s74
      %s96 = sphi 0, %s98
      %s99 = sphi 0, %s96
      %s100 = sphi 0, %s99
      %s116 = sphi 0, %s100
      %s122 = sphi 0, %s124
      %s125 = sphi 0, %s122
      %s126 = sphi 0, %s125
      %s142 = sphi 0, %s126
      %s148 = sphi 0, %s150
      %s151 = sphi 0, %s148
      %s152 = sphi 0, %s151
      %s168 = sphi 0, %s152
    $region4: #{tpu_custom_call.1} parent=1 // loop_header_branch
      %25 = sbr.rel (%p23) target = $region8
    $region5: #{tpu_custom_call.1} parent=1 // loop_body
      %s27 = ssub.s32 %s22, 1
      %s28 = ssub.s32 %s22, 2
      %s35 = sadd.s32 1, %s30
      %p36 = scmp.ge.s32.totalorder %s35, 3
      %s37 = scalar_select %p36, 0, %s35
      %s38 = sadd.s32 1, %s29
      %s39 = scalar_select %p36, %s38, %s29
      %p40 = scmp.ge.s32.totalorder %s39, 2
      %s41 = scalar_select %p40, 0, %s39
      %s42 = ssub.s32 %s29, %s41
      %p43 = scmp.eq.s32.totalorder %s42, 0
      %s45 = sadd.s32 %s44, 1
      %s46 = scalar_select %p43, %s44, %s45
      %p49 = pneg %p43
      %p50 = scmp.eq.s32.totalorder %s22, 5
      %p51 = por %p49, %p50
      %p52 = scmp.ne.s32.totalorder %s44, %s47
      %p53 = scmp.eq.s32.totalorder %s22, 0
      %p54 = por %p52, %p53
      %p55 = scmp.ne.s32.totalorder %s44, %s47
      %p56 = scmp.eq.s32.totalorder %s27, 5
      %p57 = por %p55, %p56
      %p58 = scmp.ne.s32.totalorder %s47, %s48
      %p59 = scmp.eq.s32.totalorder %s27, 0
      %p60 = por %p58, %p59
      %p61 = scmp.ne.s32.totalorder %s47, %s48
      %p62 = scmp.eq.s32.totalorder %s28, 5
      %p63 = por %p61, %p62
      %p65 = scmp.ne.s32.totalorder %s48, %s64
      %p66 = scmp.eq.s32.totalorder %s28, 0
      %p67 = por %p65, %p66
      %s68 = ssub.s32 %s30, %s37
      %p69 = scmp.eq.s32.totalorder %s68, 0
      %s71 = sadd.s32 %s70, 1
      %s72 = scalar_select %p69, %s70, %s71
      %p75 = pneg %p69
      %p76 = scmp.eq.s32.totalorder %s22, 5
      %p77 = por %p75, %p76
      %p78 = scmp.ne.s32.totalorder %s70, %s73
      %p79 = scmp.eq.s32.totalorder %s22, 0
      %p80 = por %p78, %p79
      %p81 = scmp.ne.s32.totalorder %s70, %s73
      %p82 = scmp.eq.s32.totalorder %s27, 5
      %p83 = por %p81, %p82
      %p84 = scmp.ne.s32.totalorder %s73, %s74
      %p85 = scmp.eq.s32.totalorder %s27, 0
      %p86 = por %p84, %p85
      %p87 = scmp.ne.s32.totalorder %s73, %s74
      %p88 = scmp.eq.s32.totalorder %s28, 5
      %p89 = por %p87, %p88
      %p91 = scmp.ne.s32.totalorder %s74, %s90
      %p92 = scmp.eq.s32.totalorder %s28, 0
      %p93 = por %p91, %p92
      %s94 = ssub.s32 %s30, %s37
      %p95 = scmp.eq.s32.totalorder %s94, 0
      %s97 = sadd.s32 %s96, 1
      %s98 = scalar_select %p95, %s96, %s97
      %p101 = pneg %p95
      %p102 = scmp.eq.s32.totalorder %s22, 5
      %p103 = por %p101, %p102
      %p104 = scmp.ne.s32.totalorder %s96, %s99
      %p105 = scmp.eq.s32.totalorder %s22, 0
      %p106 = por %p104, %p105
      %p107 = scmp.ne.s32.totalorder %s96, %s99
      %p108 = scmp.eq.s32.totalorder %s27, 5
      %p109 = por %p107, %p108
      %p110 = scmp.ne.s32.totalorder %s99, %s100
      %p111 = scmp.eq.s32.totalorder %s27, 0
      %p112 = por %p110, %p111
      %p113 = scmp.ne.s32.totalorder %s99, %s100
      %p114 = scmp.eq.s32.totalorder %s28, 5
      %p115 = por %p113, %p114
      %p117 = scmp.ne.s32.totalorder %s100, %s116
      %p118 = scmp.eq.s32.totalorder %s28, 0
      %p119 = por %p117, %p118
      %s120 = ssub.s32 %s30, %s37
      %p121 = scmp.eq.s32.totalorder %s120, 0
      %s123 = sadd.s32 %s122, 1
      %s124 = scalar_select %p121, %s122, %s123
      %p127 = pneg %p121
      %p128 = scmp.eq.s32.totalorder %s22, 5
      %p129 = por %p127, %p128
      %p130 = scmp.ne.s32.totalorder %s122, %s125
      %p131 = scmp.eq.s32.totalorder %s22, 0
      %p132 = por %p130, %p131
      %p133 = scmp.ne.s32.totalorder %s122, %s125
      %p134 = scmp.eq.s32.totalorder %s27, 5
      %p135 = por %p133, %p134
      %p136 = scmp.ne.s32.totalorder %s125, %s126
      %p137 = scmp.eq.s32.totalorder %s27, 0
      %p138 = por %p136, %p137
      %p139 = scmp.ne.s32.totalorder %s125, %s126
      %p140 = scmp.eq.s32.totalorder %s28, 5
      %p141 = por %p139, %p140
      %p143 = scmp.ne.s32.totalorder %s126, %s142
      %p144 = scmp.eq.s32.totalorder %s28, 0
      %p145 = por %p143, %p144
      %s146 = ssub.s32 %s29, %s41
      %p147 = scmp.eq.s32.totalorder %s146, 0
      %s149 = sadd.s32 %s148, 1
      %s150 = scalar_select %p147, %s148, %s149
      %p153 = pneg %p147
      %p154 = scmp.eq.s32.totalorder %s22, 5
      %p155 = por %p153, %p154
      %p156 = scmp.ne.s32.totalorder %s148, %s151
      %p157 = scmp.eq.s32.totalorder %s22, 0
      %p158 = por %p156, %p157
      %p159 = scmp.ne.s32.totalorder %s148, %s151
      %p160 = scmp.eq.s32.totalorder %s27, 5
      %p161 = por %p159, %p160
      %p162 = scmp.ne.s32.totalorder %s151, %s152
      %p163 = scmp.eq.s32.totalorder %s27, 0
      %p164 = por %p162, %p163
      %p165 = scmp.ne.s32.totalorder %s151, %s152
      %p166 = scmp.eq.s32.totalorder %s28, 5
      %p167 = por %p165, %p166
      %p169 = scmp.ne.s32.totalorder %s152, %s168
      %p170 = scmp.eq.s32.totalorder %s28, 0
      %p171 = por %p169, %p170
      %p172 = scmp.le.s32.totalorder 1, %s22
      %p173 = scmp.lt.s32.totalorder %s22, 7
      %p174 = pnand %p172, %p173
      %p175 = pneg %p174
      // Predicated region
      $region9: #{tpu_custom_call.1} parent=5 // pred_check
        _
      $region10: #{tpu_custom_call.1} parent=5 // pred_check_branch
        %177 = sbr.rel (%p174) target = $region12
      $region11: #{tpu_custom_call.1} parent=5 // pred_region
        %s178 = ssub.s32 %s22, 1
      $region12: #{tpu_custom_call.1} parent=5 // pred_fallthru
        _
      %p179 = scmp.lt.s32.totalorder %s22, 6
      // Predicated region
      $region13: #{tpu_custom_call.1} parent=5 // pred_check
        %p180 = pneg %p179
      $region14: #{tpu_custom_call.1} parent=5 // pred_check_branch
        %182 = sbr.rel (%p180) target = $region16
      $region15: #{tpu_custom_call.1} parent=5 // pred_region
        // Predicated region
        $region17: #{tpu_custom_call.1} parent=15 // pred_check
          %p183 = pneg %p54
        $region18: #{tpu_custom_call.1} parent=15 // pred_check_branch
          %185 = sbr.rel (%p183) target = $region20
        $region19: #{tpu_custom_call.1} parent=15 // pred_region
          %s186 = sand.u32 %s44, 1
          %s187 = scalar_lea.sflag [#allocation4], %s186
          %s188 = sand.u32 %s44, 1
          %s189 = smul.addr %s188, 128
          %s190 = scalar_lea.vmem [#allocation3], %s189
          %s192 = ssub.s32 2048, 2048
          %193 = vsyncadd %s187, %s192
          %s194 = smul.addr %s29, 32
          %s195 = smul.addr %s194, 64
          %s196 = scalar_lea.hbm %s0, %s195
          %s197 = sshll.u32 %s190, 4
          %s198 = int_to_ptr.vmem [resolvable:$true] %s197
          %203 = dma.hbm_to_vmem [thread:$0]  %s196, 2048, %s198, %s187, 64, 64, 4
        $region20: #{tpu_custom_call.1} parent=15 // pred_fallthru
          _
        // Predicated region
        $region21: #{tpu_custom_call.1} parent=15 // pred_check
          %p204 = pneg %p80
        $region22: #{tpu_custom_call.1} parent=15 // pred_check_branch
          %206 = sbr.rel (%p204) target = $region24
        $region23: #{tpu_custom_call.1} parent=15 // pred_region
          %s207 = sand.u32 %s22, 1
          %s208 = scalar_lea.sflag [#allocation7], %s207
          %s209 = sand.u32 %s70, 1
          %s210 = smul.addr %s209, 576
          %s211 = scalar_lea.vmem [#allocation6], %s210
          %s213 = ssub.s32 9216, 9216
          %214 = vsyncadd %s208, %s213
          %s215 = smul.addr %s30, 144
          %s216 = smul.addr %s215, 64
          %s217 = scalar_lea.hbm %s1, %s216
          %s218 = sshll.u32 %s211, 4
          %s219 = int_to_ptr.vmem [resolvable:$true] %s218
          %224 = dma.hbm_to_vmem [thread:$0]  %s217, 9216, %s219, %s208, 64, 64, 4
        $region24: #{tpu_custom_call.1} parent=15 // pred_fallthru
          _
        // Predicated region
        $region25: #{tpu_custom_call.1} parent=15 // pred_check
          %p225 = pneg %p106
        $region26: #{tpu_custom_call.1} parent=15 // pred_check_branch
          %227 = sbr.rel (%p225) target = $region28
        $region27: #{tpu_custom_call.1} parent=15 // pred_region
          %s228 = sand.u32 %s22, 1
          %s229 = scalar_lea.sflag [#allocation7], %s228
          %s230 = sand.u32 %s96, 1
          %s231 = smul.addr %s230, 64
          %s232 = scalar_lea.vmem [#allocation8], %s231
          %s234 = ssub.s32 1024, 1024
          %235 = vsyncadd %s229, %s234
          %s236 = smul.addr %s30, 16
          %s237 = smul.addr %s236, 64
          %s238 = scalar_lea.hbm %s2, %s237
          %s239 = sshll.u32 %s232, 4
          %s240 = int_to_ptr.vmem [resolvable:$true] %s239
          %245 = dma.hbm_to_vmem [thread:$0]  %s238, 1024, %s240, %s229, 64, 64, 4
        $region28: #{tpu_custom_call.1} parent=15 // pred_fallthru
          _
        // Predicated region
        $region29: #{tpu_custom_call.1} parent=15 // pred_check
          %p246 = pneg %p132
        $region30: #{tpu_custom_call.1} parent=15 // pred_check_branch
          %248 = sbr.rel (%p246) target = $region32
        $region31: #{tpu_custom_call.1} parent=15 // pred_region
          %s249 = sand.u32 %s122, 1
          %s250 = scalar_lea.sflag [#allocation10], %s249
          %s251 = sand.u32 %s122, 1
          %s252 = smul.addr %s251, 4
          %s253 = scalar_lea.vmem [#allocation9], %s252
          %s255 = ssub.s32 64, 64
          %256 = vsyncadd %s250, %s255
          %s257 = smul.addr %s30, 64
          %s258 = scalar_lea.hbm %s3, %s257
          %s260 = sshll.u32 %s253, 4
          %s261 = int_to_ptr.vmem [resolvable:$true] %s260
          %263 = dma.hbm_to_vmem [thread:$0]  %s258, 64, %s261, %s250
        $region32: #{tpu_custom_call.1} parent=15 // pred_fallthru
          _
      $region16: #{tpu_custom_call.1} parent=5 // pred_fallthru
        _
      %p264 = scmp.le.s32.totalorder 1, %s22
      %p265 = scmp.lt.s32.totalorder %s22, 7
      %p266 = pnand %p264, %p265
      %p267 = pneg %p266
      // Predicated region
      $region33: #{tpu_custom_call.1} parent=5 // pred_check
        _
      $region34: #{tpu_custom_call.1} parent=5 // pred_check_branch
        %269 = sbr.rel (%p266) target = $region36
      $region35: #{tpu_custom_call.1} parent=5 // pred_region
        %s270 = ssub.s32 %s22, 1
        %s271 = sand.u32 %s47, 1
        %s272 = scalar_lea.sflag [#allocation4], %s271
        %s273 = sand.u32 %s47, 1
        %s274 = smul.addr %s273, 128
        %s275 = scalar_lea.vmem [#allocation3], %s274
        // Predicated region
        $region37: #{tpu_custom_call.1} parent=35 // pred_check
          %p276 = pneg %p60
        $region38: #{tpu_custom_call.1} parent=35 // pred_check_branch
          %278 = sbr.rel (%p276) target = $region40
        $region39: #{tpu_custom_call.1} parent=35 // pred_region
          %279 = dma.done %s272, 2048
        $region40: #{tpu_custom_call.1} parent=35 // pred_fallthru
          _
        %s280 = sand.u32 %s27, 1
        %s281 = scalar_lea.sflag [#allocation7], %s280
        %s282 = sand.u32 %s73, 1
        %s283 = smul.addr %s282, 576
        %s284 = scalar_lea.vmem [#allocation6], %s283
        // Predicated region
        $region41: #{tpu_custom_call.1} parent=35 // pred_check
          %p285 = pneg %p86
        $region42: #{tpu_custom_call.1} parent=35 // pred_check_branch
          %287 = sbr.rel (%p285) target = $region44
        $region43: #{tpu_custom_call.1} parent=35 // pred_region
          %288 = dma.done %s281, 9216
        $region44: #{tpu_custom_call.1} parent=35 // pred_fallthru
          _
        %s289 = sand.u32 %s27, 1
        %s290 = scalar_lea.sflag [#allocation7], %s289
        %s291 = sand.u32 %s99, 1
        %s292 = smul.addr %s291, 64
        %s293 = scalar_lea.vmem [#allocation8], %s292
        // Predicated region
        $region45: #{tpu_custom_call.1} parent=35 // pred_check
          %p294 = pneg %p112
        $region46: #{tpu_custom_call.1} parent=35 // pred_check_branch
          %296 = sbr.rel (%p294) target = $region48
        $region47: #{tpu_custom_call.1} parent=35 // pred_region
          %297 = dma.done %s290, 1024
        $region48: #{tpu_custom_call.1} parent=35 // pred_fallthru
          _
        %s298 = sand.u32 %s125, 1
        %s299 = scalar_lea.sflag [#allocation10], %s298
        %s300 = sand.u32 %s125, 1
        %s301 = smul.addr %s300, 4
        %s302 = scalar_lea.vmem [#allocation9], %s301
        // Predicated region
        $region49: #{tpu_custom_call.1} parent=35 // pred_check
          %p303 = pneg %p138
        $region50: #{tpu_custom_call.1} parent=35 // pred_check_branch
          %305 = sbr.rel (%p303) target = $region52
        $region51: #{tpu_custom_call.1} parent=35 // pred_region
          %306 = dma.done %s299, 64
        $region52: #{tpu_custom_call.1} parent=35 // pred_fallthru
          _
        %s307 = sand.u32 %s47, 1
        %s308 = scalar_lea.sflag [#allocation4], %s307
        %s309 = sand.u32 %s47, 1
        %s310 = smul.addr %s309, 128
        %s311 = scalar_lea.vmem [#allocation3], %s310
        %p312 = pneg %p60
        %p313 = pneg %p57
        %s314 = sand.u32 %s27, 1
        %s315 = scalar_lea.sflag [#allocation7], %s314
        %s316 = sand.u32 %s73, 1
        %s317 = smul.addr %s316, 576
        %s318 = scalar_lea.vmem [#allocation6], %s317
        %p319 = pneg %p86
        %p320 = pneg %p83
        %s321 = sand.u32 %s27, 1
        %s322 = scalar_lea.sflag [#allocation7], %s321
        %s323 = sand.u32 %s99, 1
        %s324 = smul.addr %s323, 64
        %s325 = scalar_lea.vmem [#allocation8], %s324
        %p326 = pneg %p112
        %p327 = pneg %p109
        %s328 = sand.u32 %s125, 1
        %s329 = scalar_lea.sflag [#allocation10], %s328
        %s330 = sand.u32 %s125, 1
        %s331 = smul.addr %s330, 4
        %s332 = scalar_lea.vmem [#allocation9], %s331
        %p333 = pneg %p138
        %p334 = pneg %p135
        %p335 = pneg %p164
        %p336 = pneg %p161
        %s337 = sand.u32 %s151, 1
        %s338 = scalar_lea.sflag [#allocation5], %s337
        %s339 = sand.u32 %s151, 1
        %s340 = smul.addr %s339, 128
        %s341 = scalar_lea.vmem [#allocation11], %s340
        %p343 = scmp.eq.s32.totalorder %s32, 0
        // Predicated region
        $region53: #{tpu_custom_call.1} parent=35 // pred_check
          %p344 = pneg %p343
        $region54: #{tpu_custom_call.1} parent=35 // pred_check_branch
          %346 = sbr.rel (%p344) target = $region56
        $region55: #{tpu_custom_call.1} parent=35 // pred_region
          %347 = vst [vmem:[#allocation2] sm:$0xff] 0
          %348 = vst [vmem:[#allocation2 + $0x8] sm:$0xff] 0
          %349 = vst [vmem:[#allocation2 + $0x10] sm:$0xff] 0
          %350 = vst [vmem:[#allocation2 + $0x18] sm:$0xff] 0
          %351 = vst [vmem:[#allocation2 + $0x20] sm:$0xff] 0
          %352 = vst [vmem:[#allocation2 + $0x28] sm:$0xff] 0
          %353 = vst [vmem:[#allocation2 + $0x30] sm:$0xff] 0
          %354 = vst [vmem:[#allocation2 + $0x38] sm:$0xff] 0
          %355 = vst [vmem:[#allocation2 + $0x40] sm:$0xff] 0
          %356 = vst [vmem:[#allocation2 + $0x48] sm:$0xff] 0
          %357 = vst [vmem:[#allocation2 + $0x50] sm:$0xff] 0
          %358 = vst [vmem:[#allocation2 + $0x58] sm:$0xff] 0
          %359 = vst [vmem:[#allocation2 + $0x60] sm:$0xff] 0
          %360 = vst [vmem:[#allocation2 + $0x68] sm:$0xff] 0
          %361 = vst [vmem:[#allocation2 + $0x70] sm:$0xff] 0
          %362 = vst [vmem:[#allocation2 + $0x78] sm:$0xff] 0
          %363 = vst [vmem:[#allocation2 + $0x80] sm:$0xff] 0
          %364 = vst [vmem:[#allocation2 + $0x88] sm:$0xff] 0
          %365 = vst [vmem:[#allocation2 + $0x90] sm:$0xff] 0
          %366 = vst [vmem:[#allocation2 + $0x98] sm:$0xff] 0
          %367 = vst [vmem:[#allocation2 + $0xa0] sm:$0xff] 0
          %368 = vst [vmem:[#allocation2 + $0xa8] sm:$0xff] 0
          %369 = vst [vmem:[#allocation2 + $0xb0] sm:$0xff] 0
          %370 = vst [vmem:[#allocation2 + $0xb8] sm:$0xff] 0
          %371 = vst [vmem:[#allocation2 + $0xc0] sm:$0xff] 0
          %372 = vst [vmem:[#allocation2 + $0xc8] sm:$0xff] 0
          %373 = vst [vmem:[#allocation2 + $0xd0] sm:$0xff] 0
          %374 = vst [vmem:[#allocation2 + $0xd8] sm:$0xff] 0
          %375 = vst [vmem:[#allocation2 + $0xe0] sm:$0xff] 0
          %376 = vst [vmem:[#allocation2 + $0xe8] sm:$0xff] 0
          %377 = vst [vmem:[#allocation2 + $0xf0] sm:$0xff] 0
          %378 = vst [vmem:[#allocation2 + $0xf8] sm:$0xff] 0
          %379 = vst [vmem:[#allocation2 + $0x100] sm:$0xff] 0
          %380 = vst [vmem:[#allocation2 + $0x108] sm:$0xff] 0
          %381 = vst [vmem:[#allocation2 + $0x110] sm:$0xff] 0
          %382 = vst [vmem:[#allocation2 + $0x118] sm:$0xff] 0
          %383 = vst [vmem:[#allocation2 + $0x120] sm:$0xff] 0
          %384 = vst [vmem:[#allocation2 + $0x128] sm:$0xff] 0
          %385 = vst [vmem:[#allocation2 + $0x130] sm:$0xff] 0
          %386 = vst [vmem:[#allocation2 + $0x138] sm:$0xff] 0
          %387 = vst [vmem:[#allocation2 + $0x140] sm:$0xff] 0
          %388 = vst [vmem:[#allocation2 + $0x148] sm:$0xff] 0
          %389 = vst [vmem:[#allocation2 + $0x150] sm:$0xff] 0
          %390 = vst [vmem:[#allocation2 + $0x158] sm:$0xff] 0
          %391 = vst [vmem:[#allocation2 + $0x160] sm:$0xff] 0
          %392 = vst [vmem:[#allocation2 + $0x168] sm:$0xff] 0
          %393 = vst [vmem:[#allocation2 + $0x170] sm:$0xff] 0
          %394 = vst [vmem:[#allocation2 + $0x178] sm:$0xff] 0
          %395 = vst [vmem:[#allocation2 + $0x180] sm:$0xff] 0
          %396 = vst [vmem:[#allocation2 + $0x188] sm:$0xff] 0
          %397 = vst [vmem:[#allocation2 + $0x190] sm:$0xff] 0
          %398 = vst [vmem:[#allocation2 + $0x198] sm:$0xff] 0
          %399 = vst [vmem:[#allocation2 + $0x1a0] sm:$0xff] 0
          %400 = vst [vmem:[#allocation2 + $0x1a8] sm:$0xff] 0
          %v401 = vld [vmem:[%s275] sm:$0xf]
          %v402 = vld [vmem:[%s275 + $0x4] sm:$0xf]
          %v403 = vld [vmem:[%s275 + $0x8] sm:$0xf]
          %v404 = vld [vmem:[%s275 + $0xc] sm:$0xf]
          %v405 = vld [vmem:[%s275 + $0x10] sm:$0xf]
          %v406 = vld [vmem:[%s275 + $0x14] sm:$0xf]
          %v407 = vld [vmem:[%s275 + $0x18] sm:$0xf]
          %v408 = vld [vmem:[%s275 + $0x1c] sm:$0xf]
          %v409 = vld [vmem:[%s275 + $0x20] sm:$0xf]
          %v410 = vld [vmem:[%s275 + $0x24] sm:$0xf]
          %v411 = vld [vmem:[%s275 + $0x28] sm:$0xf]
          %v412 = vld [vmem:[%s275 + $0x2c] sm:$0xf]
          %v413 = vld [vmem:[%s275 + $0x30] sm:$0xf]
          %v414 = vld [vmem:[%s275 + $0x34] sm:$0xf]
          %v415 = vld [vmem:[%s275 + $0x38] sm:$0xf]
          %v416 = vld [vmem:[%s275 + $0x3c] sm:$0xf]
          %v417 = vld [vmem:[%s275 + $0x40] sm:$0xf]
          %v418 = vld [vmem:[%s275 + $0x44] sm:$0xf]
          %v419 = vld [vmem:[%s275 + $0x48] sm:$0xf]
          %v420 = vld [vmem:[%s275 + $0x4c] sm:$0xf]
          %v421 = vld [vmem:[%s275 + $0x50] sm:$0xf]
          %v422 = vld [vmem:[%s275 + $0x54] sm:$0xf]
          %v423 = vld [vmem:[%s275 + $0x58] sm:$0xf]
          %v424 = vld [vmem:[%s275 + $0x5c] sm:$0xf]
          %v425 = vld [vmem:[%s275 + $0x60] sm:$0xf]
          %v426 = vld [vmem:[%s275 + $0x64] sm:$0xf]
          %v427 = vld [vmem:[%s275 + $0x68] sm:$0xf]
          %v428 = vld [vmem:[%s275 + $0x6c] sm:$0xf]
          %v429 = vld [vmem:[%s275 + $0x70] sm:$0xf]
          %v430 = vld [vmem:[%s275 + $0x74] sm:$0xf]
          %v431 = vld [vmem:[%s275 + $0x78] sm:$0xf]
          %v432 = vld [vmem:[%s275 + $0x7c] sm:$0xf]
          %v465 = vunpack.c.l.b16 %v401
          %v466 = vunpack.c.l.b16 %v402
          %v467 = vunpack.c.l.b16 %v403
          %v468 = vunpack.c.l.b16 %v404
          %v469 = vunpack.c.l.b16 %v405
          %v470 = vunpack.c.l.b16 %v406
          %v471 = vunpack.c.l.b16 %v407
          %v472 = vunpack.c.l.b16 %v408
          %v473 = vunpack.c.l.b16 %v409
          %v474 = vunpack.c.l.b16 %v410
          %v475 = vunpack.c.l.b16 %v411
          %v476 = vunpack.c.l.b16 %v412
          %v477 = vunpack.c.l.b16 %v413
          %v478 = vunpack.c.l.b16 %v414
          %v479 = vunpack.c.l.b16 %v415
          %v480 = vunpack.c.l.b16 %v416
          %v481 = vunpack.c.l.b16 %v417
          %v482 = vunpack.c.l.b16 %v418
          %v483 = vunpack.c.l.b16 %v419
          %v484 = vunpack.c.l.b16 %v420
          %v485 = vunpack.c.l.b16 %v421
          %v486 = vunpack.c.l.b16 %v422
          %v487 = vunpack.c.l.b16 %v423
          %v488 = vunpack.c.l.b16 %v424
          %v489 = vunpack.c.l.b16 %v425
          %v490 = vunpack.c.l.b16 %v426
          %v491 = vunpack.c.l.b16 %v427
          %v492 = vunpack.c.l.b16 %v428
          %v493 = vunpack.c.l.b16 %v429
          %v494 = vunpack.c.l.b16 %v430
          %v495 = vunpack.c.l.b16 %v431
          %v496 = vunpack.c.l.b16 %v432
          %v497 = vpack.c.b16 %v466, %v465
          %v498 = vpack.c.b16 %v468, %v467
          %v499 = vpack.c.b16 %v470, %v469
          %v500 = vpack.c.b16 %v472, %v471
          %v501 = vpack.c.b16 %v474, %v473
          %v502 = vpack.c.b16 %v476, %v475
          %v503 = vpack.c.b16 %v478, %v477
          %v504 = vpack.c.b16 %v480, %v479
          %v505 = vpack.c.b16 %v482, %v481
          %v506 = vpack.c.b16 %v484, %v483
          %v507 = vpack.c.b16 %v486, %v485
          %v508 = vpack.c.b16 %v488, %v487
          %v509 = vpack.c.b16 %v490, %v489
          %v510 = vpack.c.b16 %v492, %v491
          %v511 = vpack.c.b16 %v494, %v493
          %v512 = vpack.c.b16 %v496, %v495
          %s529 = scalar_lea.vmem [#allocation2], 24
          %530 = vst [vmem:[%s529 + $0x8] sm:$0xff] %v497
          %531 = vst [vmem:[%s529 + $0x20] sm:$0xff] %v498
          %532 = vst [vmem:[%s529 + $0x38] sm:$0xff] %v499
          %533 = vst [vmem:[%s529 + $0x50] sm:$0xff] %v500
          %534 = vst [vmem:[%s529 + $0x68] sm:$0xff] %v501
          %535 = vst [vmem:[%s529 + $0x80] sm:$0xff] %v502
          %536 = vst [vmem:[%s529 + $0x98] sm:$0xff] %v503
          %537 = vst [vmem:[%s529 + $0xb0] sm:$0xff] %v504
          %538 = vst [vmem:[%s529 + $0xc8] sm:$0xff] %v505
          %539 = vst [vmem:[%s529 + $0xe0] sm:$0xff] %v506
          %540 = vst [vmem:[%s529 + $0xf8] sm:$0xff] %v507
          %541 = vst [vmem:[%s529 + $0x110] sm:$0xff] %v508
          %542 = vst [vmem:[%s529 + $0x128] sm:$0xff] %v509
          %543 = vst [vmem:[%s529 + $0x140] sm:$0xff] %v510
          %544 = vst [vmem:[%s529 + $0x158] sm:$0xff] %v511
          %545 = vst [vmem:[%s529 + $0x170] sm:$0xff] %v512
        $region56: #{tpu_custom_call.1} parent=35 // pred_fallthru
          _
        %v546 = vld [vmem:[#allocation2] sm:$0x80]
        %v547 = vld [vmem:[#allocation2 + $0x8] sm:$0xff]
        %v548 = vld [vmem:[#allocation2 + $0x18] sm:$0x80]
        %v549 = vld [vmem:[#allocation2 + $0x20] sm:$0xff]
        %v550 = vld [vmem:[#allocation2 + $0x30] sm:$0x80]
        %v551 = vld [vmem:[#allocation2 + $0x38] sm:$0xff]
        %v552 = vld [vmem:[#allocation2 + $0x48] sm:$0x80]
        %v553 = vld [vmem:[#allocation2 + $0x50] sm:$0xff]
        %v554 = vld [vmem:[#allocation2 + $0x60] sm:$0x80]
        %v555 = vld [vmem:[#allocation2 + $0x68] sm:$0xff]
        %v556 = vld [vmem:[#allocation2 + $0x78] sm:$0x80]
        %v557 = vld [vmem:[#allocation2 + $0x80] sm:$0xff]
        %v558 = vld [vmem:[#allocation2 + $0x90] sm:$0x80]
        %v559 = vld [vmem:[#allocation2 + $0x98] sm:$0xff]
        %v560 = vld [vmem:[#allocation2 + $0xa8] sm:$0x80]
        %v561 = vld [vmem:[#allocation2 + $0xb0] sm:$0xff]
        %v562 = vld [vmem:[#allocation2 + $0xc0] sm:$0x80]
        %v563 = vld [vmem:[#allocation2 + $0xc8] sm:$0xff]
        %v564 = vld [vmem:[#allocation2 + $0xd8] sm:$0x80]
        %v565 = vld [vmem:[#allocation2 + $0xe0] sm:$0xff]
        %v566 = vld [vmem:[#allocation2 + $0xf0] sm:$0x80]
        %v567 = vld [vmem:[#allocation2 + $0xf8] sm:$0xff]
        %v568 = vld [vmem:[#allocation2 + $0x108] sm:$0x80]
        %v569 = vld [vmem:[#allocation2 + $0x110] sm:$0xff]
        %v570 = vld [vmem:[#allocation2 + $0x120] sm:$0x80]
        %v571 = vld [vmem:[#allocation2 + $0x128] sm:$0xff]
        %v572 = vld [vmem:[#allocation2 + $0x138] sm:$0x80]
        %v573 = vld [vmem:[#allocation2 + $0x140] sm:$0xff]
        %v574 = vld [vmem:[#allocation2 + $0x150] sm:$0x80]
        %v575 = vld [vmem:[#allocation2 + $0x158] sm:$0xff]
        %v576 = vld [vmem:[#allocation2 + $0x168] sm:$0x80]
        %v577 = vld [vmem:[#allocation2 + $0x170] sm:$0xff]
        %vm578 = vsmask.f32 256
        %v580 = vshrl.u32 %v546, 16
        %v582 = vrot.slane %v580, 7
        %v584 = vshrl.u32 %v547, 16
        %v586 = vrot.slane %v584, 7
        %v587 = vshll.u32 %v547, 16
        %v589 = vor.u32 %v586, %v587
        %v590 = vsel %vm578, %v582, %v589
        %v592 = vshrl.u32 %v548, 16
        %v594 = vrot.slane %v592, 7
        %v596 = vshrl.u32 %v549, 16
        %v598 = vrot.slane %v596, 7
        %v599 = vshll.u32 %v549, 16
        %v601 = vor.u32 %v598, %v599
        %v602 = vsel %vm578, %v594, %v601
        %v604 = vshrl.u32 %v550, 16
        %v606 = vrot.slane %v604, 7
        %v608 = vshrl.u32 %v551, 16
        %v610 = vrot.slane %v608, 7
        %v611 = vshll.u32 %v551, 16
        %v613 = vor.u32 %v610, %v611
        %v614 = vsel %vm578, %v606, %v613
        %v616 = vshrl.u32 %v552, 16
        %v618 = vrot.slane %v616, 7
        %v620 = vshrl.u32 %v553, 16
        %v622 = vrot.slane %v620, 7
        %v623 = vshll.u32 %v553, 16
        %v625 = vor.u32 %v622, %v623
        %v626 = vsel %vm578, %v618, %v625
        %v628 = vshrl.u32 %v554, 16
        %v630 = vrot.slane %v628, 7
        %v632 = vshrl.u32 %v555, 16
        %v634 = vrot.slane %v632, 7
        %v635 = vshll.u32 %v555, 16
        %v637 = vor.u32 %v634, %v635
        %v638 = vsel %vm578, %v630, %v637
        %v640 = vshrl.u32 %v556, 16
        %v642 = vrot.slane %v640, 7
        %v644 = vshrl.u32 %v557, 16
        %v646 = vrot.slane %v644, 7
        %v647 = vshll.u32 %v557, 16
        %v649 = vor.u32 %v646, %v647
        %v650 = vsel %vm578, %v642, %v649
        %v652 = vshrl.u32 %v558, 16
        %v654 = vrot.slane %v652, 7
        %v656 = vshrl.u32 %v559, 16
        %v658 = vrot.slane %v656, 7
        %v659 = vshll.u32 %v559, 16
        %v661 = vor.u32 %v658, %v659
        %v662 = vsel %vm578, %v654, %v661
        %v664 = vshrl.u32 %v560, 16
        %v666 = vrot.slane %v664, 7
        %v668 = vshrl.u32 %v561, 16
        %v670 = vrot.slane %v668, 7
        %v671 = vshll.u32 %v561, 16
        %v673 = vor.u32 %v670, %v671
        %v674 = vsel %vm578, %v666, %v673
        %v676 = vshrl.u32 %v562, 16
        %v678 = vrot.slane %v676, 7
        %v680 = vshrl.u32 %v563, 16
        %v682 = vrot.slane %v680, 7
        %v683 = vshll.u32 %v563, 16
        %v685 = vor.u32 %v682, %v683
        %v686 = vsel %vm578, %v678, %v685
        %v688 = vshrl.u32 %v564, 16
        %v690 = vrot.slane %v688, 7
        %v692 = vshrl.u32 %v565, 16
        %v694 = vrot.slane %v692, 7
        %v695 = vshll.u32 %v565, 16
        %v697 = vor.u32 %v694, %v695
        %v698 = vsel %vm578, %v690, %v697
        %v700 = vshrl.u32 %v566, 16
        %v702 = vrot.slane %v700, 7
        %v704 = vshrl.u32 %v567, 16
        %v706 = vrot.slane %v704, 7
        %v707 = vshll.u32 %v567, 16
        %v709 = vor.u32 %v706, %v707
        %v710 = vsel %vm578, %v702, %v709
        %v712 = vshrl.u32 %v568, 16
        %v714 = vrot.slane %v712, 7
        %v716 = vshrl.u32 %v569, 16
        %v718 = vrot.slane %v716, 7
        %v719 = vshll.u32 %v569, 16
        %v721 = vor.u32 %v718, %v719
        %v722 = vsel %vm578, %v714, %v721
        %v724 = vshrl.u32 %v570, 16
        %v726 = vrot.slane %v724, 7
        %v728 = vshrl.u32 %v571, 16
        %v730 = vrot.slane %v728, 7
        %v731 = vshll.u32 %v571, 16
        %v733 = vor.u32 %v730, %v731
        %v734 = vsel %vm578, %v726, %v733
        %v736 = vshrl.u32 %v572, 16
        %v738 = vrot.slane %v736, 7
        %v740 = vshrl.u32 %v573, 16
        %v742 = vrot.slane %v740, 7
        %v743 = vshll.u32 %v573, 16
        %v745 = vor.u32 %v742, %v743
        %v746 = vsel %vm578, %v738, %v745
        %v748 = vshrl.u32 %v574, 16
        %v750 = vrot.slane %v748, 7
        %v752 = vshrl.u32 %v575, 16
        %v754 = vrot.slane %v752, 7
        %v755 = vshll.u32 %v575, 16
        %v757 = vor.u32 %v754, %v755
        %v758 = vsel %vm578, %v750, %v757
        %v760 = vshrl.u32 %v576, 16
        %v762 = vrot.slane %v760, 7
        %v764 = vshrl.u32 %v577, 16
        %v766 = vrot.slane %v764, 7
        %v767 = vshll.u32 %v577, 16
        %v769 = vor.u32 %v766, %v767
        %v770 = vsel %vm578, %v762, %v769
        %v787 = vld [vmem:[%s284] sm:$0xf]
        %v788 = vld [vmem:[%s284 + $0x4] sm:$0xf]
        %v789 = vld [vmem:[%s284 + $0x8] sm:$0xf]
        %v790 = vld [vmem:[%s284 + $0xc] sm:$0xf]
        %v791 = vld [vmem:[%s284 + $0x10] sm:$0xf]
        %v792 = vld [vmem:[%s284 + $0x14] sm:$0xf]
        %v793 = vld [vmem:[%s284 + $0x18] sm:$0xf]
        %v794 = vld [vmem:[%s284 + $0x1c] sm:$0xf]
        %v795 = vld [vmem:[%s284 + $0x20] sm:$0xf]
        %v796 = vld [vmem:[%s284 + $0x24] sm:$0xf]
        %v797 = vld [vmem:[%s284 + $0x28] sm:$0xf]
        %v798 = vld [vmem:[%s284 + $0x2c] sm:$0xf]
        %v799 = vld [vmem:[%s284 + $0x30] sm:$0xf]
        %v800 = vld [vmem:[%s284 + $0x34] sm:$0xf]
        %v801 = vld [vmem:[%s284 + $0x38] sm:$0xf]
        %v802 = vld [vmem:[%s284 + $0x3c] sm:$0xf]
        %s803 = scalar_lea.vmem %s284, 64 [#allocation6]
        %v804 = vld [vmem:[%s803] sm:$0xf]
        %v805 = vld [vmem:[%s803 + $0x4] sm:$0xf]
        %v806 = vld [vmem:[%s803 + $0x8] sm:$0xf]
        %v807 = vld [vmem:[%s803 + $0xc] sm:$0xf]
        %v808 = vld [vmem:[%s803 + $0x10] sm:$0xf]
        %v809 = vld [vmem:[%s803 + $0x14] sm:$0xf]
        %v810 = vld [vmem:[%s803 + $0x18] sm:$0xf]
        %v811 = vld [vmem:[%s803 + $0x1c] sm:$0xf]
        %v812 = vld [vmem:[%s803 + $0x20] sm:$0xf]
        %v813 = vld [vmem:[%s803 + $0x24] sm:$0xf]
        %v814 = vld [vmem:[%s803 + $0x28] sm:$0xf]
        %v815 = vld [vmem:[%s803 + $0x2c] sm:$0xf]
        %v816 = vld [vmem:[%s803 + $0x30] sm:$0xf]
        %v817 = vld [vmem:[%s803 + $0x34] sm:$0xf]
        %v818 = vld [vmem:[%s803 + $0x38] sm:$0xf]
        %v819 = vld [vmem:[%s803 + $0x3c] sm:$0xf]
        %v836 = vunpack.c.l.b16 %v804
        %v837 = vunpack.c.l.b16 %v805
        %v838 = vunpack.c.l.b16 %v806
        %v839 = vunpack.c.l.b16 %v807
        %v840 = vunpack.c.l.b16 %v808
        %v841 = vunpack.c.l.b16 %v809
        %v842 = vunpack.c.l.b16 %v810
        %v843 = vunpack.c.l.b16 %v811
        %v844 = vunpack.c.l.b16 %v812
        %v845 = vunpack.c.l.b16 %v813
        %v846 = vunpack.c.l.b16 %v814
        %v847 = vunpack.c.l.b16 %v815
        %v848 = vunpack.c.l.b16 %v816
        %v849 = vunpack.c.l.b16 %v817
        %v850 = vunpack.c.l.b16 %v818
        %v851 = vunpack.c.l.b16 %v819
        %v852 = vpack.c.b16 %v837, %v836
        %v853 = vpack.c.b16 %v839, %v838
        %v854 = vpack.c.b16 %v841, %v840
        %v855 = vpack.c.b16 %v843, %v842
        %v856 = vpack.c.b16 %v845, %v844
        %v857 = vpack.c.b16 %v847, %v846
        %v858 = vpack.c.b16 %v849, %v848
        %v859 = vpack.c.b16 %v851, %v850
        %868 = vmatprep.subr.bf16.mxu0 0
        %869 = vmatpush1.bf16.msra.mxu0 %v852
        %870 = vmatprep.subr.bf16.mxu0 0
        %871 = vmatpush1.bf16.msra.mxu0 %v853
        %872 = vmatprep.subr.bf16.mxu0 0
        %873 = vmatpush1.bf16.msra.mxu0 %v854
        %874 = vmatprep.subr.bf16.mxu0 0
        %875 = vmatpush1.bf16.msra.mxu0 %v855
        %876 = vmatprep.subr.bf16.mxu0 0
        %877 = vmatpush1.bf16.msra.mxu0 %v856
        %878 = vmatprep.subr.bf16.mxu0 0
        %879 = vmatpush1.bf16.msra.mxu0 %v857
        %880 = vmatprep.subr.bf16.mxu0 0
        %881 = vmatpush1.bf16.msra.mxu0 %v858
        %882 = vmatprep.subr.bf16.mxu0 0
        %883 = vmatpush1.bf16.msra.mxu0 %v859
        %884 = vmatprep.subr.bf16.mxu0 0
        %885 = vmatpush1.bf16.msra.mxu0 0
        %886 = vmatprep.subr.bf16.mxu0 0
        %887 = vmatpush1.bf16.msra.mxu0 0
        %888 = vmatprep.subr.bf16.mxu0 0
        %889 = vmatpush1.bf16.msra.mxu0 0
        %890 = vmatprep.subr.bf16.mxu0 0
        %891 = vmatpush1.bf16.msra.mxu0 0
        %892 = vmatprep.subr.bf16.mxu0 0
        %893 = vmatpush1.bf16.msra.mxu0 0
        %894 = vmatprep.subr.bf16.mxu0 0
        %895 = vmatpush1.bf16.msra.mxu0 0
        %896 = vmatprep.subr.bf16.mxu0 0
        %897 = vmatpush1.bf16.msra.mxu0 0
        %898 = vmatprep.subr.bf16.mxu0 0
        %899 = vmatpush1.bf16.msra.mxu0 0
        %900 = vmatprep.mubr.bf16.mxu0 0
        %901 = vmatmul.mubr.bf16.gmra.mrb[0].mxu0 %v547
        %v902 = vpop.f32.mrb[0].mxu0
        %v903 = vadd.f32 0.0, %v902
        %v904 = vpop.f32.mrb[0].mxu0
        %v905 = vpop.f32.mrb[0].mxu0
        %v906 = vadd.f32 0.0, %v905
        %v907 = vpop.f32.mrb[0].mxu0
        %908 = vmatprep.mubr.bf16.mxu0 0
        %909 = vmatmul.mubr.bf16.gmra.mrb[0].mxu0 %v549
        %v910 = vpop.f32.mrb[0].mxu0
        %v911 = vadd.f32 0.0, %v910
        %v912 = vpop.f32.mrb[0].mxu0
        %v913 = vpop.f32.mrb[0].mxu0
        %v914 = vadd.f32 0.0, %v913
        %v915 = vpop.f32.mrb[0].mxu0
        %916 = vmatprep.mubr.bf16.mxu0 0
        %917 = vmatmul.mubr.bf16.gmra.mrb[0].mxu0 %v551
        %v918 = vpop.f32.mrb[0].mxu0
        %v919 = vadd.f32 0.0, %v918
        %v920 = vpop.f32.mrb[0].mxu0
        %v921 = vpop.f32.mrb[0].mxu0
        %v922 = vadd.f32 0.0, %v921
        %v923 = vpop.f32.mrb[0].mxu0
        %924 = vmatprep.mubr.bf16.mxu0 0
        %925 = vmatmul.mubr.bf16.gmra.mrb[0].mxu0 %v553
        %v926 = vpop.f32.mrb[0].mxu0
        %v927 = vadd.f32 0.0, %v926
        %v928 = vpop.f32.mrb[0].mxu0
        %v929 = vpop.f32.mrb[0].mxu0
        %v930 = vadd.f32 0.0, %v929
        %v931 = vpop.f32.mrb[0].mxu0
        %932 = vmatprep.mubr.bf16.mxu0 0
        %933 = vmatmul.mubr.bf16.gmra.mrb[0].mxu0 %v555
        %v934 = vpop.f32.mrb[0].mxu0
        %v935 = vadd.f32 0.0, %v934
        %v936 = vpop.f32.mrb[0].mxu0
        %v937 = vpop.f32.mrb[0].mxu0
        %v938 = vadd.f32 0.0, %v937
        %v939 = vpop.f32.mrb[0].mxu0
        %940 = vmatprep.mubr.bf16.mxu0 0
        %941 = vmatmul.mubr.bf16.gmra.mrb[0].mxu0 %v557
        %v942 = vpop.f32.mrb[0].mxu0
        %v943 = vadd.f32 0.0, %v942
        %v944 = vpop.f32.mrb[0].mxu0
        %v945 = vpop.f32.mrb[0].mxu0
        %v946 = vadd.f32 0.0, %v945
        %v947 = vpop.f32.mrb[0].mxu0
        %948 = vmatprep.mubr.bf16.mxu0 0
        %949 = vmatmul.mubr.bf16.gmra.mrb[0].mxu0 %v559
        %v950 = vpop.f32.mrb[0].mxu0
        %v951 = vadd.f32 0.0, %v950
        %v952 = vpop.f32.mrb[0].mxu0
        %v953 = vpop.f32.mrb[0].mxu0
        %v954 = vadd.f32 0.0, %v953
        %v955 = vpop.f32.mrb[0].mxu0
        %956 = vmatprep.mubr.bf16.mxu0 0
        %957 = vmatmul.mubr.bf16.gmra.mrb[0].mxu0 %v561
        %v958 = vpop.f32.mrb[0].mxu0
        %v959 = vadd.f32 0.0, %v958
        %v960 = vpop.f32.mrb[0].mxu0
        %v961 = vpop.f32.mrb[0].mxu0
        %v962 = vadd.f32 0.0, %v961
        %v963 = vpop.f32.mrb[0].mxu0
        %964 = vmatprep.mubr.bf16.mxu0 0
        %965 = vmatmul.mubr.bf16.gmra.mrb[0].mxu0 %v563
        %v966 = vpop.f32.mrb[0].mxu0
        %v967 = vadd.f32 0.0, %v966
        %v968 = vpop.f32.mrb[0].mxu0
        %v969 = vpop.f32.mrb[0].mxu0
        %v970 = vadd.f32 0.0, %v969
        %v971 = vpop.f32.mrb[0].mxu0
        %972 = vmatprep.mubr.bf16.mxu0 0
        %973 = vmatmul.mubr.bf16.gmra.mrb[0].mxu0 %v565
        %v974 = vpop.f32.mrb[0].mxu0
        %v975 = vadd.f32 0.0, %v974
        %v976 = vpop.f32.mrb[0].mxu0
        %v977 = vpop.f32.mrb[0].mxu0
        %v978 = vadd.f32 0.0, %v977
        %v979 = vpop.f32.mrb[0].mxu0
        %980 = vmatprep.mubr.bf16.mxu0 0
        %981 = vmatmul.mubr.bf16.gmra.mrb[0].mxu0 %v567
        %v982 = vpop.f32.mrb[0].mxu0
        %v983 = vadd.f32 0.0, %v982
        %v984 = vpop.f32.mrb[0].mxu0
        %v985 = vpop.f32.mrb[0].mxu0
        %v986 = vadd.f32 0.0, %v985
        %v987 = vpop.f32.mrb[0].mxu0
        %988 = vmatprep.mubr.bf16.mxu0 0
        %989 = vmatmul.mubr.bf16.gmra.mrb[0].mxu0 %v569
        %v990 = vpop.f32.mrb[0].mxu0
        %v991 = vadd.f32 0.0, %v990
        %v992 = vpop.f32.mrb[0].mxu0
        %v993 = vpop.f32.mrb[0].mxu0
        %v994 = vadd.f32 0.0, %v993
        %v995 = vpop.f32.mrb[0].mxu0
        %996 = vmatprep.mubr.bf16.mxu0 0
        %997 = vmatmul.mubr.bf16.gmra.mrb[0].mxu0 %v571
        %v998 = vpop.f32.mrb[0].mxu0
        %v999 = vadd.f32 0.0, %v998
        %v1000 = vpop.f32.mrb[0].mxu0
        %v1001 = vpop.f32.mrb[0].mxu0
        %v1002 = vadd.f32 0.0, %v1001
        %v1003 = vpop.f32.mrb[0].mxu0
        %1004 = vmatprep.mubr.bf16.mxu0 0
        %1005 = vmatmul.mubr.bf16.gmra.mrb[0].mxu0 %v573
        %v1006 = vpop.f32.mrb[0].mxu0
        %v1007 = vadd.f32 0.0, %v1006
        %v1008 = vpop.f32.mrb[0].mxu0
        %v1009 = vpop.f32.mrb[0].mxu0
        %v1010 = vadd.f32 0.0, %v1009
        %v1011 = vpop.f32.mrb[0].mxu0
        %1012 = vmatprep.mubr.bf16.mxu0 0
        %1013 = vmatmul.mubr.bf16.gmra.mrb[0].mxu0 %v575
        %v1014 = vpop.f32.mrb[0].mxu0
        %v1015 = vadd.f32 0.0, %v1014
        %v1016 = vpop.f32.mrb[0].mxu0
        %v1017 = vpop.f32.mrb[0].mxu0
        %v1018 = vadd.f32 0.0, %v1017
        %v1019 = vpop.f32.mrb[0].mxu0
        %1020 = vmatprep.mubr.bf16.mxu0 0
        %1021 = vmatmul.mubr.bf16.gmra.mrb[0].mxu0 %v577
        %v1022 = vpop.f32.mrb[0].mxu0
        %v1023 = vadd.f32 0.0, %v1022
        %v1024 = vpop.f32.mrb[0].mxu0
        %v1025 = vpop.f32.mrb[0].mxu0
        %v1026 = vadd.f32 0.0, %v1025
        %v1027 = vpop.f32.mrb[0].mxu0
        %1028 = vdwg.mxu0
        %v1045 = vunpack.c.l.b16 %v787
        %v1046 = vunpack.c.l.b16 %v788
        %v1047 = vunpack.c.l.b16 %v789
        %v1048 = vunpack.c.l.b16 %v790
        %v1049 = vunpack.c.l.b16 %v791
        %v1050 = vunpack.c.l.b16 %v792
        %v1051 = vunpack.c.l.b16 %v793
        %v1052 = vunpack.c.l.b16 %v794
        %v1053 = vunpack.c.l.b16 %v795
        %v1054 = vunpack.c.l.b16 %v796
        %v1055 = vunpack.c.l.b16 %v797
        %v1056 = vunpack.c.l.b16 %v798
        %v1057 = vunpack.c.l.b16 %v799
        %v1058 = vunpack.c.l.b16 %v800
        %v1059 = vunpack.c.l.b16 %v801
        %v1060 = vunpack.c.l.b16 %v802
        %v1061 = vpack.c.b16 %v1046, %v1045
        %v1062 = vpack.c.b16 %v1048, %v1047
        %v1063 = vpack.c.b16 %v1050, %v1049
        %v1064 = vpack.c.b16 %v1052, %v1051
        %v1065 = vpack.c.b16 %v1054, %v1053
        %v1066 = vpack.c.b16 %v1056, %v1055
        %v1067 = vpack.c.b16 %v1058, %v1057
        %v1068 = vpack.c.b16 %v1060, %v1059
        %1077 = vmatprep.subr.bf16.mxu0 0
        %1078 = vmatpush1.bf16.msra.mxu0 %v1061
        %1079 = vmatprep.subr.bf16.mxu0 0
        %1080 = vmatpush1.bf16.msra.mxu0 %v1062
        %1081 = vmatprep.subr.bf16.mxu0 0
        %1082 = vmatpush1.bf16.msra.mxu0 %v1063
        %1083 = vmatprep.subr.bf16.mxu0 0
        %1084 = vmatpush1.bf16.msra.mxu0 %v1064
        %1085 = vmatprep.subr.bf16.mxu0 0
        %1086 = vmatpush1.bf16.msra.mxu0 %v1065
        %1087 = vmatprep.subr.bf16.mxu0 0
        %1088 = vmatpush1.bf16.msra.mxu0 %v1066
        %1089 = vmatprep.subr.bf16.mxu0 0
        %1090 = vmatpush1.bf16.msra.mxu0 %v1067
        %1091 = vmatprep.subr.bf16.mxu0 0
        %1092 = vmatpush1.bf16.msra.mxu0 %v1068
        %1093 = vmatprep.subr.bf16.mxu0 0
        %1094 = vmatpush1.bf16.msra.mxu0 0
        %1095 = vmatprep.subr.bf16.mxu0 0
        %1096 = vmatpush1.bf16.msra.mxu0 0
        %1097 = vmatprep.subr.bf16.mxu0 0
        %1098 = vmatpush1.bf16.msra.mxu0 0
        %1099 = vmatprep.subr.bf16.mxu0 0
        %1100 = vmatpush1.bf16.msra.mxu0 0
        %1101 = vmatprep.subr.bf16.mxu0 0
        %1102 = vmatpush1.bf16.msra.mxu0 0
        %1103 = vmatprep.subr.bf16.mxu0 0
        %1104 = vmatpush1.bf16.msra.mxu0 0
        %1105 = vmatprep.subr.bf16.mxu0 0
        %1106 = vmatpush1.bf16.msra.mxu0 0
        %1107 = vmatprep.subr.bf16.mxu0 0
        %1108 = vmatpush1.bf16.msra.mxu0 0
        %1109 = vmatprep.mubr.bf16.mxu0 0
        %1110 = vmatmul.mubr.bf16.gmra.mrb[0].mxu0 %v590
        %v1111 = vpop.f32.mrb[0].mxu0
        %v1112 = vadd.f32 %v903, %v1111
        %v1113 = vpop.f32.mrb[0].mxu0
        %v1114 = vpop.f32.mrb[0].mxu0
        %v1115 = vadd.f32 %v906, %v1114
        %v1116 = vpop.f32.mrb[0].mxu0
        %1117 = vmatprep.mubr.bf16.mxu0 0
        %1118 = vmatmul.mubr.bf16.gmra.mrb[0].mxu0 %v602
        %v1119 = vpop.f32.mrb[0].mxu0
        %v1120 = vadd.f32 %v911, %v1119
        %v1121 = vpop.f32.mrb[0].mxu0
        %v1122 = vpop.f32.mrb[0].mxu0
        %v1123 = vadd.f32 %v914, %v1122
        %v1124 = vpop.f32.mrb[0].mxu0
        %1125 = vmatprep.mubr.bf16.mxu0 0
        %1126 = vmatmul.mubr.bf16.gmra.mrb[0].mxu0 %v614
        %v1127 = vpop.f32.mrb[0].mxu0
        %v1128 = vadd.f32 %v919, %v1127
        %v1129 = vpop.f32.mrb[0].mxu0
        %v1130 = vpop.f32.mrb[0].mxu0
        %v1131 = vadd.f32 %v922, %v1130
        %v1132 = vpop.f32.mrb[0].mxu0
        %1133 = vmatprep.mubr.bf16.mxu0 0
        %1134 = vmatmul.mubr.bf16.gmra.mrb[0].mxu0 %v626
        %v1135 = vpop.f32.mrb[0].mxu0
        %v1136 = vadd.f32 %v927, %v1135
        %v1137 = vpop.f32.mrb[0].mxu0
        %v1138 = vpop.f32.mrb[0].mxu0
        %v1139 = vadd.f32 %v930, %v1138
        %v1140 = vpop.f32.mrb[0].mxu0
        %1141 = vmatprep.mubr.bf16.mxu0 0
        %1142 = vmatmul.mubr.bf16.gmra.mrb[0].mxu0 %v638
        %v1143 = vpop.f32.mrb[0].mxu0
        %v1144 = vadd.f32 %v935, %v1143
        %v1145 = vpop.f32.mrb[0].mxu0
        %v1146 = vpop.f32.mrb[0].mxu0
        %v1147 = vadd.f32 %v938, %v1146
        %v1148 = vpop.f32.mrb[0].mxu0
        %1149 = vmatprep.mubr.bf16.mxu0 0
        %1150 = vmatmul.mubr.bf16.gmra.mrb[0].mxu0 %v650
        %v1151 = vpop.f32.mrb[0].mxu0
        %v1152 = vadd.f32 %v943, %v1151
        %v1153 = vpop.f32.mrb[0].mxu0
        %v1154 = vpop.f32.mrb[0].mxu0
        %v1155 = vadd.f32 %v946, %v1154
        %v1156 = vpop.f32.mrb[0].mxu0
        %1157 = vmatprep.mubr.bf16.mxu0 0
        %1158 = vmatmul.mubr.bf16.gmra.mrb[0].mxu0 %v662
        %v1159 = vpop.f32.mrb[0].mxu0
        %v1160 = vadd.f32 %v951, %v1159
        %v1161 = vpop.f32.mrb[0].mxu0
        %v1162 = vpop.f32.mrb[0].mxu0
        %v1163 = vadd.f32 %v954, %v1162
        %v1164 = vpop.f32.mrb[0].mxu0
        %1165 = vmatprep.mubr.bf16.mxu0 0
        %1166 = vmatmul.mubr.bf16.gmra.mrb[0].mxu0 %v674
        %v1167 = vpop.f32.mrb[0].mxu0
        %v1168 = vadd.f32 %v959, %v1167
        %v1169 = vpop.f32.mrb[0].mxu0
        %v1170 = vpop.f32.mrb[0].mxu0
        %v1171 = vadd.f32 %v962, %v1170
        %v1172 = vpop.f32.mrb[0].mxu0
        %1173 = vmatprep.mubr.bf16.mxu0 0
        %1174 = vmatmul.mubr.bf16.gmra.mrb[0].mxu0 %v686
        %v1175 = vpop.f32.mrb[0].mxu0
        %v1176 = vadd.f32 %v967, %v1175
        %v1177 = vpop.f32.mrb[0].mxu0
        %v1178 = vpop.f32.mrb[0].mxu0
        %v1179 = vadd.f32 %v970, %v1178
        %v1180 = vpop.f32.mrb[0].mxu0
        %1181 = vmatprep.mubr.bf16.mxu0 0
        %1182 = vmatmul.mubr.bf16.gmra.mrb[0].mxu0 %v698
        %v1183 = vpop.f32.mrb[0].mxu0
        %v1184 = vadd.f32 %v975, %v1183
        %v1185 = vpop.f32.mrb[0].mxu0
        %v1186 = vpop.f32.mrb[0].mxu0
        %v1187 = vadd.f32 %v978, %v1186
        %v1188 = vpop.f32.mrb[0].mxu0
        %1189 = vmatprep.mubr.bf16.mxu0 0
        %1190 = vmatmul.mubr.bf16.gmra.mrb[0].mxu0 %v710
        %v1191 = vpop.f32.mrb[0].mxu0
        %v1192 = vadd.f32 %v983, %v1191
        %v1193 = vpop.f32.mrb[0].mxu0
        %v1194 = vpop.f32.mrb[0].mxu0
        %v1195 = vadd.f32 %v986, %v1194
        %v1196 = vpop.f32.mrb[0].mxu0
        %1197 = vmatprep.mubr.bf16.mxu0 0
        %1198 = vmatmul.mubr.bf16.gmra.mrb[0].mxu0 %v722
        %v1199 = vpop.f32.mrb[0].mxu0
        %v1200 = vadd.f32 %v991, %v1199
        %v1201 = vpop.f32.mrb[0].mxu0
        %v1202 = vpop.f32.mrb[0].mxu0
        %v1203 = vadd.f32 %v994, %v1202
        %v1204 = vpop.f32.mrb[0].mxu0
        %1205 = vmatprep.mubr.bf16.mxu0 0
        %1206 = vmatmul.mubr.bf16.gmra.mrb[0].mxu0 %v734
        %v1207 = vpop.f32.mrb[0].mxu0
        %v1208 = vadd.f32 %v999, %v1207
        %v1209 = vpop.f32.mrb[0].mxu0
        %v1210 = vpop.f32.mrb[0].mxu0
        %v1211 = vadd.f32 %v1002, %v1210
        %v1212 = vpop.f32.mrb[0].mxu0
        %1213 = vmatprep.mubr.bf16.mxu0 0
        %1214 = vmatmul.mubr.bf16.gmra.mrb[0].mxu0 %v746
        %v1215 = vpop.f32.mrb[0].mxu0
        %v1216 = vadd.f32 %v1007, %v1215
        %v1217 = vpop.f32.mrb[0].mxu0
        %v1218 = vpop.f32.mrb[0].mxu0
        %v1219 = vadd.f32 %v1010, %v1218
        %v1220 = vpop.f32.mrb[0].mxu0
        %1221 = vmatprep.mubr.bf16.mxu0 0
        %1222 = vmatmul.mubr.bf16.gmra.mrb[0].mxu0 %v758
        %v1223 = vpop.f32.mrb[0].mxu0
        %v1224 = vadd.f32 %v1015, %v1223
        %v1225 = vpop.f32.mrb[0].mxu0
        %v1226 = vpop.f32.mrb[0].mxu0
        %v1227 = vadd.f32 %v1018, %v1226
        %v1228 = vpop.f32.mrb[0].mxu0
        %1229 = vmatprep.mubr.bf16.mxu0 0
        %1230 = vmatmul.mubr.bf16.gmra.mrb[0].mxu0 %v770
        %v1231 = vpop.f32.mrb[0].mxu0
        %v1232 = vadd.f32 %v1023, %v1231
        %v1233 = vpop.f32.mrb[0].mxu0
        %v1234 = vpop.f32.mrb[0].mxu0
        %v1235 = vadd.f32 %v1026, %v1234
        %v1236 = vpop.f32.mrb[0].mxu0
        %1237 = vdwg.mxu0
        %v1238 = vld [vmem:[#allocation2 + $0x8] sm:$0xff]
        %v1239 = vld [vmem:[#allocation2 + $0x10] sm:$0x1]
        %v1240 = vld [vmem:[#allocation2 + $0x20] sm:$0xff]
        %v1241 = vld [vmem:[#allocation2 + $0x28] sm:$0x1]
        %v1242 = vld [vmem:[#allocation2 + $0x38] sm:$0xff]
        %v1243 = vld [vmem:[#allocation2 + $0x40] sm:$0x1]
        %v1244 = vld [vmem:[#allocation2 + $0x50] sm:$0xff]
        %v1245 = vld [vmem:[#allocation2 + $0x58] sm:$0x1]
        %v1246 = vld [vmem:[#allocation2 + $0x68] sm:$0xff]
        %v1247 = vld [vmem:[#allocation2 + $0x70] sm:$0x1]
        %v1248 = vld [vmem:[#allocation2 + $0x80] sm:$0xff]
        %v1249 = vld [vmem:[#allocation2 + $0x88] sm:$0x1]
        %v1250 = vld [vmem:[#allocation2 + $0x98] sm:$0xff]
        %v1251 = vld [vmem:[#allocation2 + $0xa0] sm:$0x1]
        %v1252 = vld [vmem:[#allocation2 + $0xb0] sm:$0xff]
        %v1253 = vld [vmem:[#allocation2 + $0xb8] sm:$0x1]
        %v1254 = vld [vmem:[#allocation2 + $0xc8] sm:$0xff]
        %v1255 = vld [vmem:[#allocation2 + $0xd0] sm:$0x1]
        %v1256 = vld [vmem:[#allocation2 + $0xe0] sm:$0xff]
        %v1257 = vld [vmem:[#allocation2 + $0xe8] sm:$0x1]
        %v1258 = vld [vmem:[#allocation2 + $0xf8] sm:$0xff]
        %v1259 = vld [vmem:[#allocation2 + $0x100] sm:$0x1]
        %v1260 = vld [vmem:[#allocation2 + $0x110] sm:$0xff]
        %v1261 = vld [vmem:[#allocation2 + $0x118] sm:$0x1]
        %v1262 = vld [vmem:[#allocation2 + $0x128] sm:$0xff]
        %v1263 = vld [vmem:[#allocation2 + $0x130] sm:$0x1]
        %v1264 = vld [vmem:[#allocation2 + $0x140] sm:$0xff]
        %v1265 = vld [vmem:[#allocation2 + $0x148] sm:$0x1]
        %v1266 = vld [vmem:[#allocation2 + $0x158] sm:$0xff]
        %v1267 = vld [vmem:[#allocation2 + $0x160] sm:$0x1]
        %v1268 = vld [vmem:[#allocation2 + $0x170] sm:$0xff]
        %v1269 = vld [vmem:[#allocation2 + $0x178] sm:$0x1]
        %vm1270 = vsmask.f32 7424
        %v1272 = vshrl.u32 %v1238, 16
        %v1274 = vshll.u32 %v1238, 16
        %v1276 = vrot.slane %v1274, 1
        %v1277 = vor.u32 %v1272, %v1276
        %v1279 = vshll.u32 %v1239, 16
        %v1281 = vrot.slane %v1279, 1
        %v1282 = vsel %vm1270, %v1277, %v1281
        %v1284 = vshrl.u32 %v1240, 16
        %v1286 = vshll.u32 %v1240, 16
        %v1288 = vrot.slane %v1286, 1
        %v1289 = vor.u32 %v1284, %v1288
        %v1291 = vshll.u32 %v1241, 16
        %v1293 = vrot.slane %v1291, 1
        %v1294 = vsel %vm1270, %v1289, %v1293
        %v1296 = vshrl.u32 %v1242, 16
        %v1298 = vshll.u32 %v1242, 16
        %v1300 = vrot.slane %v1298, 1
        %v1301 = vor.u32 %v1296, %v1300
        %v1303 = vshll.u32 %v1243, 16
        %v1305 = vrot.slane %v1303, 1
        %v1306 = vsel %vm1270, %v1301, %v1305
        %v1308 = vshrl.u32 %v1244, 16
        %v1310 = vshll.u32 %v1244, 16
        %v1312 = vrot.slane %v1310, 1
        %v1313 = vor.u32 %v1308, %v1312
        %v1315 = vshll.u32 %v1245, 16
        %v1317 = vrot.slane %v1315, 1
        %v1318 = vsel %vm1270, %v1313, %v1317
        %v1320 = vshrl.u32 %v1246, 16
        %v1322 = vshll.u32 %v1246, 16
        %v1324 = vrot.slane %v1322, 1
        %v1325 = vor.u32 %v1320, %v1324
        %v1327 = vshll.u32 %v1247, 16
        %v1329 = vrot.slane %v1327, 1
        %v1330 = vsel %vm1270, %v1325, %v1329
        %v1332 = vshrl.u32 %v1248, 16
        %v1334 = vshll.u32 %v1248, 16
        %v1336 = vrot.slane %v1334, 1
        %v1337 = vor.u32 %v1332, %v1336
        %v1339 = vshll.u32 %v1249, 16
        %v1341 = vrot.slane %v1339, 1
        %v1342 = vsel %vm1270, %v1337, %v1341
        %v1344 = vshrl.u32 %v1250, 16
        %v1346 = vshll.u32 %v1250, 16
        %v1348 = vrot.slane %v1346, 1
        %v1349 = vor.u32 %v1344, %v1348
        %v1351 = vshll.u32 %v1251, 16
        %v1353 = vrot.slane %v1351, 1
        %v1354 = vsel %vm1270, %v1349, %v1353
        %v1356 = vshrl.u32 %v1252, 16
        %v1358 = vshll.u32 %v1252, 16
        %v1360 = vrot.slane %v1358, 1
        %v1361 = vor.u32 %v1356, %v1360
        %v1363 = vshll.u32 %v1253, 16
        %v1365 = vrot.slane %v1363, 1
        %v1366 = vsel %vm1270, %v1361, %v1365
        %v1368 = vshrl.u32 %v1254, 16
        %v1370 = vshll.u32 %v1254, 16
        %v1372 = vrot.slane %v1370, 1
        %v1373 = vor.u32 %v1368, %v1372
        %v1375 = vshll.u32 %v1255, 16
        %v1377 = vrot.slane %v1375, 1
        %v1378 = vsel %vm1270, %v1373, %v1377
        %v1380 = vshrl.u32 %v1256, 16
        %v1382 = vshll.u32 %v1256, 16
        %v1384 = vrot.slane %v1382, 1
        %v1385 = vor.u32 %v1380, %v1384
        %v1387 = vshll.u32 %v1257, 16
        %v1389 = vrot.slane %v1387, 1
        %v1390 = vsel %vm1270, %v1385, %v1389
        %v1392 = vshrl.u32 %v1258, 16
        %v1394 = vshll.u32 %v1258, 16
        %v1396 = vrot.slane %v1394, 1
        %v1397 = vor.u32 %v1392, %v1396
        %v1399 = vshll.u32 %v1259, 16
        %v1401 = vrot.slane %v1399, 1
        %v1402 = vsel %vm1270, %v1397, %v1401
        %v1404 = vshrl.u32 %v1260, 16
        %v1406 = vshll.u32 %v1260, 16
        %v1408 = vrot.slane %v1406, 1
        %v1409 = vor.u32 %v1404, %v1408
        %v1411 = vshll.u32 %v1261, 16
        %v1413 = vrot.slane %v1411, 1
        %v1414 = vsel %vm1270, %v1409, %v1413
        %v1416 = vshrl.u32 %v1262, 16
        %v1418 = vshll.u32 %v1262, 16
        %v1420 = vrot.slane %v1418, 1
        %v1421 = vor.u32 %v1416, %v1420
        %v1423 = vshll.u32 %v1263, 16
        %v1425 = vrot.slane %v1423, 1
        %v1426 = vsel %vm1270, %v1421, %v1425
        %v1428 = vshrl.u32 %v1264, 16
        %v1430 = vshll.u32 %v1264, 16
        %v1432 = vrot.slane %v1430, 1
        %v1433 = vor.u32 %v1428, %v1432
        %v1435 = vshll.u32 %v1265, 16
        %v1437 = vrot.slane %v1435, 1
        %v1438 = vsel %vm1270, %v1433, %v1437
        %v1440 = vshrl.u32 %v1266, 16
        %v1442 = vshll.u32 %v1266, 16
        %v1444 = vrot.slane %v1442, 1
        %v1445 = vor.u32 %v1440, %v1444
        %v1447 = vshll.u32 %v1267, 16
        %v1449 = vrot.slane %v1447, 1
        %v1450 = vsel %vm1270, %v1445, %v1449
        %v1452 = vshrl.u32 %v1268, 16
        %v1454 = vshll.u32 %v1268, 16
        %v1456 = vrot.slane %v1454, 1
        %v1457 = vor.u32 %v1452, %v1456
        %v1459 = vshll.u32 %v1269, 16
        %v1461 = vrot.slane %v1459, 1
        %v1462 = vsel %vm1270, %v1457, %v1461
        %s1479 = scalar_lea.vmem %s284, 128 [#allocation6]
        %v1480 = vld [vmem:[%s1479] sm:$0xf]
        %v1481 = vld [vmem:[%s1479 + $0x4] sm:$0xf]
        %v1482 = vld [vmem:[%s1479 + $0x8] sm:$0xf]
        %v1483 = vld [vmem:[%s1479 + $0xc] sm:$0xf]
        %v1484 = vld [vmem:[%s1479 + $0x10] sm:$0xf]
        %v1485 = vld [vmem:[%s1479 + $0x14] sm:$0xf]
        %v1486 = vld [vmem:[%s1479 + $0x18] sm:$0xf]
        %v1487 = vld [vmem:[%s1479 + $0x1c] sm:$0xf]
        %v1488 = vld [vmem:[%s1479 + $0x20] sm:$0xf]
        %v1489 = vld [vmem:[%s1479 + $0x24] sm:$0xf]
        %v1490 = vld [vmem:[%s1479 + $0x28] sm:$0xf]
        %v1491 = vld [vmem:[%s1479 + $0x2c] sm:$0xf]
        %v1492 = vld [vmem:[%s1479 + $0x30] sm:$0xf]
        %v1493 = vld [vmem:[%s1479 + $0x34] sm:$0xf]
        %v1494 = vld [vmem:[%s1479 + $0x38] sm:$0xf]
        %v1495 = vld [vmem:[%s1479 + $0x3c] sm:$0xf]
        %v1512 = vunpack.c.l.b16 %v1480
        %v1513 = vunpack.c.l.b16 %v1481
        %v1514 = vunpack.c.l.b16 %v1482
        %v1515 = vunpack.c.l.b16 %v1483
        %v1516 = vunpack.c.l.b16 %v1484
        %v1517 = vunpack.c.l.b16 %v1485
        %v1518 = vunpack.c.l.b16 %v1486
        %v1519 = vunpack.c.l.b16 %v1487
        %v1520 = vunpack.c.l.b16 %v1488
        %v1521 = vunpack.c.l.b16 %v1489
        %v1522 = vunpack.c.l.b16 %v1490
        %v1523 = vunpack.c.l.b16 %v1491
        %v1524 = vunpack.c.l.b16 %v1492
        %v1525 = vunpack.c.l.b16 %v1493
        %v1526 = vunpack.c.l.b16 %v1494
        %v1527 = vunpack.c.l.b16 %v1495
        %v1528 = vpack.c.b16 %v1513, %v1512
        %v1529 = vpack.c.b16 %v1515, %v1514
        %v1530 = vpack.c.b16 %v1517, %v1516
        %v1531 = vpack.c.b16 %v1519, %v1518
        %v1532 = vpack.c.b16 %v1521, %v1520
        %v1533 = vpack.c.b16 %v1523, %v1522
        %v1534 = vpack.c.b16 %v1525, %v1524
        %v1535 = vpack.c.b16 %v1527, %v1526
        %1544 = vmatprep.subr.bf16.mxu0 0
        %1545 = vmatpush1.bf16.msra.mxu0 %v1528
        %1546 = vmatprep.subr.bf16.mxu0 0
        %1547 = vmatpush1.bf16.msra.mxu0 %v1529
        %1548 = vmatprep.subr.bf16.mxu0 0
        %1549 = vmatpush1.bf16.msra.mxu0 %v1530
        %1550 = vmatprep.subr.bf16.mxu0 0
        %1551 = vmatpush1.bf16.msra.mxu0 %v1531
        %1552 = vmatprep.subr.bf16.mxu0 0
        %1553 = vmatpush1.bf16.msra.mxu0 %v1532
        %1554 = vmatprep.subr.bf16.mxu0 0
        %1555 = vmatpush1.bf16.msra.mxu0 %v1533
        %1556 = vmatprep.subr.bf16.mxu0 0
        %1557 = vmatpush1.bf16.msra.mxu0 %v1534
        %1558 = vmatprep.subr.bf16.mxu0 0
        %1559 = vmatpush1.bf16.msra.mxu0 %v1535
        %1560 = vmatprep.subr.bf16.mxu0 0
        %1561 = vmatpush1.bf16.msra.mxu0 0
        %1562 = vmatprep.subr.bf16.mxu0 0
        %1563 = vmatpush1.bf16.msra.mxu0 0
        %1564 = vmatprep.subr.bf16.mxu0 0
        %1565 = vmatpush1.bf16.msra.mxu0 0
        %1566 = vmatprep.subr.bf16.mxu0 0
        %1567 = vmatpush1.bf16.msra.mxu0 0
        %1568 = vmatprep.subr.bf16.mxu0 0
        %1569 = vmatpush1.bf16.msra.mxu0 0
        %1570 = vmatprep.subr.bf16.mxu0 0
        %1571 = vmatpush1.bf16.msra.mxu0 0
        %1572 = vmatprep.subr.bf16.mxu0 0
        %1573 = vmatpush1.bf16.msra.mxu0 0
        %1574 = vmatprep.subr.bf16.mxu0 0
        %1575 = vmatpush1.bf16.msra.mxu0 0
        %1576 = vmatprep.mubr.bf16.mxu0 0
        %1577 = vmatmul.mubr.bf16.gmra.mrb[0].mxu0 %v1282
        %v1578 = vpop.f32.mrb[0].mxu0
        %v1579 = vadd.f32 0.0, %v1578
        %v1580 = vpop.f32.mrb[0].mxu0
        %v1581 = vpop.f32.mrb[0].mxu0
        %v1582 = vadd.f32 0.0, %v1581
        %v1583 = vpop.f32.mrb[0].mxu0
        %1584 = vmatprep.mubr.bf16.mxu0 0
        %1585 = vmatmul.mubr.bf16.gmra.mrb[0].mxu0 %v1294
        %v1586 = vpop.f32.mrb[0].mxu0
        %v1587 = vadd.f32 0.0, %v1586
        %v1588 = vpop.f32.mrb[0].mxu0
        %v1589 = vpop.f32.mrb[0].mxu0
        %v1590 = vadd.f32 0.0, %v1589
        %v1591 = vpop.f32.mrb[0].mxu0
        %1592 = vmatprep.mubr.bf16.mxu0 0
        %1593 = vmatmul.mubr.bf16.gmra.mrb[0].mxu0 %v1306
        %v1594 = vpop.f32.mrb[0].mxu0
        %v1595 = vadd.f32 0.0, %v1594
        %v1596 = vpop.f32.mrb[0].mxu0
        %v1597 = vpop.f32.mrb[0].mxu0
        %v1598 = vadd.f32 0.0, %v1597
        %v1599 = vpop.f32.mrb[0].mxu0
        %1600 = vmatprep.mubr.bf16.mxu0 0
        %1601 = vmatmul.mubr.bf16.gmra.mrb[0].mxu0 %v1318
        %v1602 = vpop.f32.mrb[0].mxu0
        %v1603 = vadd.f32 0.0, %v1602
        %v1604 = vpop.f32.mrb[0].mxu0
        %v1605 = vpop.f32.mrb[0].mxu0
        %v1606 = vadd.f32 0.0, %v1605
        %v1607 = vpop.f32.mrb[0].mxu0
        %1608 = vmatprep.mubr.bf16.mxu0 0
        %1609 = vmatmul.mubr.bf16.gmra.mrb[0].mxu0 %v1330
        %v1610 = vpop.f32.mrb[0].mxu0
        %v1611 = vadd.f32 0.0, %v1610
        %v1612 = vpop.f32.mrb[0].mxu0
        %v1613 = vpop.f32.mrb[0].mxu0
        %v1614 = vadd.f32 0.0, %v1613
        %v1615 = vpop.f32.mrb[0].mxu0
        %1616 = vmatprep.mubr.bf16.mxu0 0
        %1617 = vmatmul.mubr.bf16.gmra.mrb[0].mxu0 %v1342
        %v1618 = vpop.f32.mrb[0].mxu0
        %v1619 = vadd.f32 0.0, %v1618
        %v1620 = vpop.f32.mrb[0].mxu0
        %v1621 = vpop.f32.mrb[0].mxu0
        %v1622 = vadd.f32 0.0, %v1621
        %v1623 = vpop.f32.mrb[0].mxu0
        %1624 = vmatprep.mubr.bf16.mxu0 0
        %1625 = vmatmul.mubr.bf16.gmra.mrb[0].mxu0 %v1354
        %v1626 = vpop.f32.mrb[0].mxu0
        %v1627 = vadd.f32 0.0, %v1626
        %v1628 = vpop.f32.mrb[0].mxu0
        %v1629 = vpop.f32.mrb[0].mxu0
        %v1630 = vadd.f32 0.0, %v1629
        %v1631 = vpop.f32.mrb[0].mxu0
        %1632 = vmatprep.mubr.bf16.mxu0 0
        %1633 = vmatmul.mubr.bf16.gmra.mrb[0].mxu0 %v1366
        %v1634 = vpop.f32.mrb[0].mxu0
        %v1635 = vadd.f32 0.0, %v1634
        %v1636 = vpop.f32.mrb[0].mxu0
        %v1637 = vpop.f32.mrb[0].mxu0
        %v1638 = vadd.f32 0.0, %v1637
        %v1639 = vpop.f32.mrb[0].mxu0
        %1640 = vmatprep.mubr.bf16.mxu0 0
        %1641 = vmatmul.mubr.bf16.gmra.mrb[0].mxu0 %v1378
        %v1642 = vpop.f32.mrb[0].mxu0
        %v1643 = vadd.f32 0.0, %v1642
        %v1644 = vpop.f32.mrb[0].mxu0
        %v1645 = vpop.f32.mrb[0].mxu0
        %v1646 = vadd.f32 0.0, %v1645
        %v1647 = vpop.f32.mrb[0].mxu0
        %1648 = vmatprep.mubr.bf16.mxu0 0
        %1649 = vmatmul.mubr.bf16.gmra.mrb[0].mxu0 %v1390
        %v1650 = vpop.f32.mrb[0].mxu0
        %v1651 = vadd.f32 0.0, %v1650
        %v1652 = vpop.f32.mrb[0].mxu0
        %v1653 = vpop.f32.mrb[0].mxu0
        %v1654 = vadd.f32 0.0, %v1653
        %v1655 = vpop.f32.mrb[0].mxu0
        %1656 = vmatprep.mubr.bf16.mxu0 0
        %1657 = vmatmul.mubr.bf16.gmra.mrb[0].mxu0 %v1402
        %v1658 = vpop.f32.mrb[0].mxu0
        %v1659 = vadd.f32 0.0, %v1658
        %v1660 = vpop.f32.mrb[0].mxu0
        %v1661 = vpop.f32.mrb[0].mxu0
        %v1662 = vadd.f32 0.0, %v1661
        %v1663 = vpop.f32.mrb[0].mxu0
        %1664 = vmatprep.mubr.bf16.mxu0 0
        %1665 = vmatmul.mubr.bf16.gmra.mrb[0].mxu0 %v1414
        %v1666 = vpop.f32.mrb[0].mxu0
        %v1667 = vadd.f32 0.0, %v1666
        %v1668 = vpop.f32.mrb[0].mxu0
        %v1669 = vpop.f32.mrb[0].mxu0
        %v1670 = vadd.f32 0.0, %v1669
        %v1671 = vpop.f32.mrb[0].mxu0
        %1672 = vmatprep.mubr.bf16.mxu0 0
        %1673 = vmatmul.mubr.bf16.gmra.mrb[0].mxu0 %v1426
        %v1674 = vpop.f32.mrb[0].mxu0
        %v1675 = vadd.f32 0.0, %v1674
        %v1676 = vpop.f32.mrb[0].mxu0
        %v1677 = vpop.f32.mrb[0].mxu0
        %v1678 = vadd.f32 0.0, %v1677
        %v1679 = vpop.f32.mrb[0].mxu0
        %1680 = vmatprep.mubr.bf16.mxu0 0
        %1681 = vmatmul.mubr.bf16.gmra.mrb[0].mxu0 %v1438
        %v1682 = vpop.f32.mrb[0].mxu0
        %v1683 = vadd.f32 0.0, %v1682
        %v1684 = vpop.f32.mrb[0].mxu0
        %v1685 = vpop.f32.mrb[0].mxu0
        %v1686 = vadd.f32 0.0, %v1685
        %v1687 = vpop.f32.mrb[0].mxu0
        %1688 = vmatprep.mubr.bf16.mxu0 0
        %1689 = vmatmul.mubr.bf16.gmra.mrb[0].mxu0 %v1450
        %v1690 = vpop.f32.mrb[0].mxu0
        %v1691 = vadd.f32 0.0, %v1690
        %v1692 = vpop.f32.mrb[0].mxu0
        %v1693 = vpop.f32.mrb[0].mxu0
        %v1694 = vadd.f32 0.0, %v1693
        %v1695 = vpop.f32.mrb[0].mxu0
        %1696 = vmatprep.mubr.bf16.mxu0 0
        %1697 = vmatmul.mubr.bf16.gmra.mrb[0].mxu0 %v1462
        %v1698 = vpop.f32.mrb[0].mxu0
        %v1699 = vadd.f32 0.0, %v1698
        %v1700 = vpop.f32.mrb[0].mxu0
        %v1701 = vpop.f32.mrb[0].mxu0
        %v1702 = vadd.f32 0.0, %v1701
        %v1703 = vpop.f32.mrb[0].mxu0
        %1704 = vdwg.mxu0
        %v1705 = vadd.f32 %v1112, %v1579
        %v1706 = vadd.f32 %v1115, %v1582
        %v1707 = vadd.f32 %v1120, %v1587
        %v1708 = vadd.f32 %v1123, %v1590
        %v1709 = vadd.f32 %v1128, %v1595
        %v1710 = vadd.f32 %v1131, %v1598
        %v1711 = vadd.f32 %v1136, %v1603
        %v1712 = vadd.f32 %v1139, %v1606
        %v1713 = vadd.f32 %v1144, %v1611
        %v1714 = vadd.f32 %v1147, %v1614
        %v1715 = vadd.f32 %v1152, %v1619
        %v1716 = vadd.f32 %v1155, %v1622
        %v1717 = vadd.f32 %v1160, %v1627
        %v1718 = vadd.f32 %v1163, %v1630
        %v1719 = vadd.f32 %v1168, %v1635
        %v1720 = vadd.f32 %v1171, %v1638
        %v1721 = vadd.f32 %v1176, %v1643
        %v1722 = vadd.f32 %v1179, %v1646
        %v1723 = vadd.f32 %v1184, %v1651
        %v1724 = vadd.f32 %v1187, %v1654
        %v1725 = vadd.f32 %v1192, %v1659
        %v1726 = vadd.f32 %v1195, %v1662
        %v1727 = vadd.f32 %v1200, %v1667
        %v1728 = vadd.f32 %v1203, %v1670
        %v1729 = vadd.f32 %v1208, %v1675
        %v1730 = vadd.f32 %v1211, %v1678
        %v1731 = vadd.f32 %v1216, %v1683
        %v1732 = vadd.f32 %v1219, %v1686
        %v1733 = vadd.f32 %v1224, %v1691
        %v1734 = vadd.f32 %v1227, %v1694
        %v1735 = vadd.f32 %v1232, %v1699
        %v1736 = vadd.f32 %v1235, %v1702
        %s1737 = scalar_lea.vmem [#allocation2], 24
        %v1738 = vld [vmem:[%s1737] sm:$0x80]
        %v1739 = vld [vmem:[%s1737 + $0x8] sm:$0xff]
        %v1740 = vld [vmem:[%s1737 + $0x18] sm:$0x80]
        %v1741 = vld [vmem:[%s1737 + $0x20] sm:$0xff]
        %v1742 = vld [vmem:[%s1737 + $0x30] sm:$0x80]
        %v1743 = vld [vmem:[%s1737 + $0x38] sm:$0xff]
        %v1744 = vld [vmem:[%s1737 + $0x48] sm:$0x80]
        %v1745 = vld [vmem:[%s1737 + $0x50] sm:$0xff]
        %v1746 = vld [vmem:[%s1737 + $0x60] sm:$0x80]
        %v1747 = vld [vmem:[%s1737 + $0x68] sm:$0xff]
        %v1748 = vld [vmem:[%s1737 + $0x78] sm:$0x80]
        %v1749 = vld [vmem:[%s1737 + $0x80] sm:$0xff]
        %v1750 = vld [vmem:[%s1737 + $0x90] sm:$0x80]
        %v1751 = vld [vmem:[%s1737 + $0x98] sm:$0xff]
        %v1752 = vld [vmem:[%s1737 + $0xa8] sm:$0x80]
        %v1753 = vld [vmem:[%s1737 + $0xb0] sm:$0xff]
        %v1754 = vld [vmem:[%s1737 + $0xc0] sm:$0x80]
        %v1755 = vld [vmem:[%s1737 + $0xc8] sm:$0xff]
        %v1756 = vld [vmem:[%s1737 + $0xd8] sm:$0x80]
        %v1757 = vld [vmem:[%s1737 + $0xe0] sm:$0xff]
        %v1758 = vld [vmem:[%s1737 + $0xf0] sm:$0x80]
        %v1759 = vld [vmem:[%s1737 + $0xf8] sm:$0xff]
        %v1760 = vld [vmem:[%s1737 + $0x108] sm:$0x80]
        %v1761 = vld [vmem:[%s1737 + $0x110] sm:$0xff]
        %v1762 = vld [vmem:[%s1737 + $0x120] sm:$0x80]
        %v1763 = vld [vmem:[%s1737 + $0x128] sm:$0xff]
        %v1764 = vld [vmem:[%s1737 + $0x138] sm:$0x80]
        %v1765 = vld [vmem:[%s1737 + $0x140] sm:$0xff]
        %v1766 = vld [vmem:[%s1737 + $0x150] sm:$0x80]
        %v1767 = vld [vmem:[%s1737 + $0x158] sm:$0xff]
        %v1768 = vld [vmem:[%s1737 + $0x168] sm:$0x80]
        %v1769 = vld [vmem:[%s1737 + $0x170] sm:$0xff]
        %v1771 = vshrl.u32 %v1738, 16
        %v1773 = vrot.slane %v1771, 7
        %v1775 = vshrl.u32 %v1739, 16
        %v1777 = vrot.slane %v1775, 7
        %v1778 = vshll.u32 %v1739, 16
        %v1780 = vor.u32 %v1777, %v1778
        %v1781 = vsel %vm578, %v1773, %v1780
        %v1783 = vshrl.u32 %v1740, 16
        %v1785 = vrot.slane %v1783, 7
        %v1787 = vshrl.u32 %v1741, 16
        %v1789 = vrot.slane %v1787, 7
        %v1790 = vshll.u32 %v1741, 16
        %v1792 = vor.u32 %v1789, %v1790
        %v1793 = vsel %vm578, %v1785, %v1792
        %v1795 = vshrl.u32 %v1742, 16
        %v1797 = vrot.slane %v1795, 7
        %v1799 = vshrl.u32 %v1743, 16
        %v1801 = vrot.slane %v1799, 7
        %v1802 = vshll.u32 %v1743, 16
        %v1804 = vor.u32 %v1801, %v1802
        %v1805 = vsel %vm578, %v1797, %v1804
        %v1807 = vshrl.u32 %v1744, 16
        %v1809 = vrot.slane %v1807, 7
        %v1811 = vshrl.u32 %v1745, 16
        %v1813 = vrot.slane %v1811, 7
        %v1814 = vshll.u32 %v1745, 16
        %v1816 = vor.u32 %v1813, %v1814
        %v1817 = vsel %vm578, %v1809, %v1816
        %v1819 = vshrl.u32 %v1746, 16
        %v1821 = vrot.slane %v1819, 7
        %v1823 = vshrl.u32 %v1747, 16
        %v1825 = vrot.slane %v1823, 7
        %v1826 = vshll.u32 %v1747, 16
        %v1828 = vor.u32 %v1825, %v1826
        %v1829 = vsel %vm578, %v1821, %v1828
        %v1831 = vshrl.u32 %v1748, 16
        %v1833 = vrot.slane %v1831, 7
        %v1835 = vshrl.u32 %v1749, 16
        %v1837 = vrot.slane %v1835, 7
        %v1838 = vshll.u32 %v1749, 16
        %v1840 = vor.u32 %v1837, %v1838
        %v1841 = vsel %vm578, %v1833, %v1840
        %v1843 = vshrl.u32 %v1750, 16
        %v1845 = vrot.slane %v1843, 7
        %v1847 = vshrl.u32 %v1751, 16
        %v1849 = vrot.slane %v1847, 7
        %v1850 = vshll.u32 %v1751, 16
        %v1852 = vor.u32 %v1849, %v1850
        %v1853 = vsel %vm578, %v1845, %v1852
        %v1855 = vshrl.u32 %v1752, 16
        %v1857 = vrot.slane %v1855, 7
        %v1859 = vshrl.u32 %v1753, 16
        %v1861 = vrot.slane %v1859, 7
        %v1862 = vshll.u32 %v1753, 16
        %v1864 = vor.u32 %v1861, %v1862
        %v1865 = vsel %vm578, %v1857, %v1864
        %v1867 = vshrl.u32 %v1754, 16
        %v1869 = vrot.slane %v1867, 7
        %v1871 = vshrl.u32 %v1755, 16
        %v1873 = vrot.slane %v1871, 7
        %v1874 = vshll.u32 %v1755, 16
        %v1876 = vor.u32 %v1873, %v1874
        %v1877 = vsel %vm578, %v1869, %v1876
        %v1879 = vshrl.u32 %v1756, 16
        %v1881 = vrot.slane %v1879, 7
        %v1883 = vshrl.u32 %v1757, 16
        %v1885 = vrot.slane %v1883, 7
        %v1886 = vshll.u32 %v1757, 16
        %v1888 = vor.u32 %v1885, %v1886
        %v1889 = vsel %vm578, %v1881, %v1888
        %v1891 = vshrl.u32 %v1758, 16
        %v1893 = vrot.slane %v1891, 7
        %v1895 = vshrl.u32 %v1759, 16
        %v1897 = vrot.slane %v1895, 7
        %v1898 = vshll.u32 %v1759, 16
        %v1900 = vor.u32 %v1897, %v1898
        %v1901 = vsel %vm578, %v1893, %v1900
        %v1903 = vshrl.u32 %v1760, 16
        %v1905 = vrot.slane %v1903, 7
        %v1907 = vshrl.u32 %v1761, 16
        %v1909 = vrot.slane %v1907, 7
        %v1910 = vshll.u32 %v1761, 16
        %v1912 = vor.u32 %v1909, %v1910
        %v1913 = vsel %vm578, %v1905, %v1912
        %v1915 = vshrl.u32 %v1762, 16
        %v1917 = vrot.slane %v1915, 7
        %v1919 = vshrl.u32 %v1763, 16
        %v1921 = vrot.slane %v1919, 7
        %v1922 = vshll.u32 %v1763, 16
        %v1924 = vor.u32 %v1921, %v1922
        %v1925 = vsel %vm578, %v1917, %v1924
        %v1927 = vshrl.u32 %v1764, 16
        %v1929 = vrot.slane %v1927, 7
        %v1931 = vshrl.u32 %v1765, 16
        %v1933 = vrot.slane %v1931, 7
        %v1934 = vshll.u32 %v1765, 16
        %v1936 = vor.u32 %v1933, %v1934
        %v1937 = vsel %vm578, %v1929, %v1936
        %v1939 = vshrl.u32 %v1766, 16
        %v1941 = vrot.slane %v1939, 7
        %v1943 = vshrl.u32 %v1767, 16
        %v1945 = vrot.slane %v1943, 7
        %v1946 = vshll.u32 %v1767, 16
        %v1948 = vor.u32 %v1945, %v1946
        %v1949 = vsel %vm578, %v1941, %v1948
        %v1951 = vshrl.u32 %v1768, 16
        %v1953 = vrot.slane %v1951, 7
        %v1955 = vshrl.u32 %v1769, 16
        %v1957 = vrot.slane %v1955, 7
        %v1958 = vshll.u32 %v1769, 16
        %v1960 = vor.u32 %v1957, %v1958
        %v1961 = vsel %vm578, %v1953, %v1960
        %s1978 = scalar_lea.vmem %s284, 192 [#allocation6]
        %v1979 = vld [vmem:[%s1978] sm:$0xf]
        %v1980 = vld [vmem:[%s1978 + $0x4] sm:$0xf]
        %v1981 = vld [vmem:[%s1978 + $0x8] sm:$0xf]
        %v1982 = vld [vmem:[%s1978 + $0xc] sm:$0xf]
        %v1983 = vld [vmem:[%s1978 + $0x10] sm:$0xf]
        %v1984 = vld [vmem:[%s1978 + $0x14] sm:$0xf]
        %v1985 = vld [vmem:[%s1978 + $0x18] sm:$0xf]
        %v1986 = vld [vmem:[%s1978 + $0x1c] sm:$0xf]
        %v1987 = vld [vmem:[%s1978 + $0x20] sm:$0xf]
        %v1988 = vld [vmem:[%s1978 + $0x24] sm:$0xf]
        %v1989 = vld [vmem:[%s1978 + $0x28] sm:$0xf]
        %v1990 = vld [vmem:[%s1978 + $0x2c] sm:$0xf]
        %v1991 = vld [vmem:[%s1978 + $0x30] sm:$0xf]
        %v1992 = vld [vmem:[%s1978 + $0x34] sm:$0xf]
        %v1993 = vld [vmem:[%s1978 + $0x38] sm:$0xf]
        %v1994 = vld [vmem:[%s1978 + $0x3c] sm:$0xf]
        %v2011 = vunpack.c.l.b16 %v1979
        %v2012 = vunpack.c.l.b16 %v1980
        %v2013 = vunpack.c.l.b16 %v1981
        %v2014 = vunpack.c.l.b16 %v1982
        %v2015 = vunpack.c.l.b16 %v1983
        %v2016 = vunpack.c.l.b16 %v1984
        %v2017 = vunpack.c.l.b16 %v1985
        %v2018 = vunpack.c.l.b16 %v1986
        %v2019 = vunpack.c.l.b16 %v1987
        %v2020 = vunpack.c.l.b16 %v1988
        %v2021 = vunpack.c.l.b16 %v1989
        %v2022 = vunpack.c.l.b16 %v1990
        %v2023 = vunpack.c.l.b16 %v1991
        %v2024 = vunpack.c.l.b16 %v1992
        %v2025 = vunpack.c.l.b16 %v1993
        %v2026 = vunpack.c.l.b16 %v1994
        %v2027 = vpack.c.b16 %v2012, %v2011
        %v2028 = vpack.c.b16 %v2014, %v2013
        %v2029 = vpack.c.b16 %v2016, %v2015
        %v2030 = vpack.c.b16 %v2018, %v2017
        %v2031 = vpack.c.b16 %v2020, %v2019
        %v2032 = vpack.c.b16 %v2022, %v2021
        %v2033 = vpack.c.b16 %v2024, %v2023
        %v2034 = vpack.c.b16 %v2026, %v2025
        %2043 = vmatprep.subr.bf16.mxu0 0
        %2044 = vmatpush1.bf16.msra.mxu0 %v2027
        %2045 = vmatprep.subr.bf16.mxu0 0
        %2046 = vmatpush1.bf16.msra.mxu0 %v2028
        %2047 = vmatprep.subr.bf16.mxu0 0
        %2048 = vmatpush1.bf16.msra.mxu0 %v2029
        %2049 = vmatprep.subr.bf16.mxu0 0
        %2050 = vmatpush1.bf16.msra.mxu0 %v2030
        %2051 = vmatprep.subr.bf16.mxu0 0
        %2052 = vmatpush1.bf16.msra.mxu0 %v2031
        %2053 = vmatprep.subr.bf16.mxu0 0
        %2054 = vmatpush1.bf16.msra.mxu0 %v2032
        %2055 = vmatprep.subr.bf16.mxu0 0
        %2056 = vmatpush1.bf16.msra.mxu0 %v2033
        %2057 = vmatprep.subr.bf16.mxu0 0
        %2058 = vmatpush1.bf16.msra.mxu0 %v2034
        %2059 = vmatprep.subr.bf16.mxu0 0
        %2060 = vmatpush1.bf16.msra.mxu0 0
        %2061 = vmatprep.subr.bf16.mxu0 0
        %2062 = vmatpush1.bf16.msra.mxu0 0
        %2063 = vmatprep.subr.bf16.mxu0 0
        %2064 = vmatpush1.bf16.msra.mxu0 0
        %2065 = vmatprep.subr.bf16.mxu0 0
        %2066 = vmatpush1.bf16.msra.mxu0 0
        %2067 = vmatprep.subr.bf16.mxu0 0
        %2068 = vmatpush1.bf16.msra.mxu0 0
        %2069 = vmatprep.subr.bf16.mxu0 0
        %2070 = vmatpush1.bf16.msra.mxu0 0
        %2071 = vmatprep.subr.bf16.mxu0 0
        %2072 = vmatpush1.bf16.msra.mxu0 0
        %2073 = vmatprep.subr.bf16.mxu0 0
        %2074 = vmatpush1.bf16.msra.mxu0 0
        %2075 = vmatprep.mubr.bf16.mxu0 0
        %2076 = vmatmul.mubr.bf16.gmra.mrb[0].mxu0 %v1781
        %v2077 = vpop.f32.mrb[0].mxu0
        %v2078 = vadd.f32 0.0, %v2077
        %v2079 = vpop.f32.mrb[0].mxu0
        %v2080 = vpop.f32.mrb[0].mxu0
        %v2081 = vadd.f32 0.0, %v2080
        %v2082 = vpop.f32.mrb[0].mxu0
        %2083 = vmatprep.mubr.bf16.mxu0 0
        %2084 = vmatmul.mubr.bf16.gmra.mrb[0].mxu0 %v1793
        %v2085 = vpop.f32.mrb[0].mxu0
        %v2086 = vadd.f32 0.0, %v2085
        %v2087 = vpop.f32.mrb[0].mxu0
        %v2088 = vpop.f32.mrb[0].mxu0
        %v2089 = vadd.f32 0.0, %v2088
        %v2090 = vpop.f32.mrb[0].mxu0
        %2091 = vmatprep.mubr.bf16.mxu0 0
        %2092 = vmatmul.mubr.bf16.gmra.mrb[0].mxu0 %v1805
        %v2093 = vpop.f32.mrb[0].mxu0
        %v2094 = vadd.f32 0.0, %v2093
        %v2095 = vpop.f32.mrb[0].mxu0
        %v2096 = vpop.f32.mrb[0].mxu0
        %v2097 = vadd.f32 0.0, %v2096
        %v2098 = vpop.f32.mrb[0].mxu0
        %2099 = vmatprep.mubr.bf16.mxu0 0
        %2100 = vmatmul.mubr.bf16.gmra.mrb[0].mxu0 %v1817
        %v2101 = vpop.f32.mrb[0].mxu0
        %v2102 = vadd.f32 0.0, %v2101
        %v2103 = vpop.f32.mrb[0].mxu0
        %v2104 = vpop.f32.mrb[0].mxu0
        %v2105 = vadd.f32 0.0, %v2104
        %v2106 = vpop.f32.mrb[0].mxu0
        %2107 = vmatprep.mubr.bf16.mxu0 0
        %2108 = vmatmul.mubr.bf16.gmra.mrb[0].mxu0 %v1829
        %v2109 = vpop.f32.mrb[0].mxu0
        %v2110 = vadd.f32 0.0, %v2109
        %v2111 = vpop.f32.mrb[0].mxu0
        %v2112 = vpop.f32.mrb[0].mxu0
        %v2113 = vadd.f32 0.0, %v2112
        %v2114 = vpop.f32.mrb[0].mxu0
        %2115 = vmatprep.mubr.bf16.mxu0 0
        %2116 = vmatmul.mubr.bf16.gmra.mrb[0].mxu0 %v1841
        %v2117 = vpop.f32.mrb[0].mxu0
        %v2118 = vadd.f32 0.0, %v2117
        %v2119 = vpop.f32.mrb[0].mxu0
        %v2120 = vpop.f32.mrb[0].mxu0
        %v2121 = vadd.f32 0.0, %v2120
        %v2122 = vpop.f32.mrb[0].mxu0
        %2123 = vmatprep.mubr.bf16.mxu0 0
        %2124 = vmatmul.mubr.bf16.gmra.mrb[0].mxu0 %v1853
        %v2125 = vpop.f32.mrb[0].mxu0
        %v2126 = vadd.f32 0.0, %v2125
        %v2127 = vpop.f32.mrb[0].mxu0
        %v2128 = vpop.f32.mrb[0].mxu0
        %v2129 = vadd.f32 0.0, %v2128
        %v2130 = vpop.f32.mrb[0].mxu0
        %2131 = vmatprep.mubr.bf16.mxu0 0
        %2132 = vmatmul.mubr.bf16.gmra.mrb[0].mxu0 %v1865
        %v2133 = vpop.f32.mrb[0].mxu0
        %v2134 = vadd.f32 0.0, %v2133
        %v2135 = vpop.f32.mrb[0].mxu0
        %v2136 = vpop.f32.mrb[0].mxu0
        %v2137 = vadd.f32 0.0, %v2136
        %v2138 = vpop.f32.mrb[0].mxu0
        %2139 = vmatprep.mubr.bf16.mxu0 0
        %2140 = vmatmul.mubr.bf16.gmra.mrb[0].mxu0 %v1877
        %v2141 = vpop.f32.mrb[0].mxu0
        %v2142 = vadd.f32 0.0, %v2141
        %v2143 = vpop.f32.mrb[0].mxu0
        %v2144 = vpop.f32.mrb[0].mxu0
        %v2145 = vadd.f32 0.0, %v2144
        %v2146 = vpop.f32.mrb[0].mxu0
        %2147 = vmatprep.mubr.bf16.mxu0 0
        %2148 = vmatmul.mubr.bf16.gmra.mrb[0].mxu0 %v1889
        %v2149 = vpop.f32.mrb[0].mxu0
        %v2150 = vadd.f32 0.0, %v2149
        %v2151 = vpop.f32.mrb[0].mxu0
        %v2152 = vpop.f32.mrb[0].mxu0
        %v2153 = vadd.f32 0.0, %v2152
        %v2154 = vpop.f32.mrb[0].mxu0
        %2155 = vmatprep.mubr.bf16.mxu0 0
        %2156 = vmatmul.mubr.bf16.gmra.mrb[0].mxu0 %v1901
        %v2157 = vpop.f32.mrb[0].mxu0
        %v2158 = vadd.f32 0.0, %v2157
        %v2159 = vpop.f32.mrb[0].mxu0
        %v2160 = vpop.f32.mrb[0].mxu0
        %v2161 = vadd.f32 0.0, %v2160
        %v2162 = vpop.f32.mrb[0].mxu0
        %2163 = vmatprep.mubr.bf16.mxu0 0
        %2164 = vmatmul.mubr.bf16.gmra.mrb[0].mxu0 %v1913
        %v2165 = vpop.f32.mrb[0].mxu0
        %v2166 = vadd.f32 0.0, %v2165
        %v2167 = vpop.f32.mrb[0].mxu0
        %v2168 = vpop.f32.mrb[0].mxu0
        %v2169 = vadd.f32 0.0, %v2168
        %v2170 = vpop.f32.mrb[0].mxu0
        %2171 = vmatprep.mubr.bf16.mxu0 0
        %2172 = vmatmul.mubr.bf16.gmra.mrb[0].mxu0 %v1925
        %v2173 = vpop.f32.mrb[0].mxu0
        %v2174 = vadd.f32 0.0, %v2173
        %v2175 = vpop.f32.mrb[0].mxu0
        %v2176 = vpop.f32.mrb[0].mxu0
        %v2177 = vadd.f32 0.0, %v2176
        %v2178 = vpop.f32.mrb[0].mxu0
        %2179 = vmatprep.mubr.bf16.mxu0 0
        %2180 = vmatmul.mubr.bf16.gmra.mrb[0].mxu0 %v1937
        %v2181 = vpop.f32.mrb[0].mxu0
        %v2182 = vadd.f32 0.0, %v2181
        %v2183 = vpop.f32.mrb[0].mxu0
        %v2184 = vpop.f32.mrb[0].mxu0
        %v2185 = vadd.f32 0.0, %v2184
        %v2186 = vpop.f32.mrb[0].mxu0
        %2187 = vmatprep.mubr.bf16.mxu0 0
        %2188 = vmatmul.mubr.bf16.gmra.mrb[0].mxu0 %v1949
        %v2189 = vpop.f32.mrb[0].mxu0
        %v2190 = vadd.f32 0.0, %v2189
        %v2191 = vpop.f32.mrb[0].mxu0
        %v2192 = vpop.f32.mrb[0].mxu0
        %v2193 = vadd.f32 0.0, %v2192
        %v2194 = vpop.f32.mrb[0].mxu0
        %2195 = vmatprep.mubr.bf16.mxu0 0
        %2196 = vmatmul.mubr.bf16.gmra.mrb[0].mxu0 %v1961
        %v2197 = vpop.f32.mrb[0].mxu0
        %v2198 = vadd.f32 0.0, %v2197
        %v2199 = vpop.f32.mrb[0].mxu0
        %v2200 = vpop.f32.mrb[0].mxu0
        %v2201 = vadd.f32 0.0, %v2200
        %v2202 = vpop.f32.mrb[0].mxu0
        %2203 = vdwg.mxu0
        %v2204 = vadd.f32 %v1705, %v2078
        %v2205 = vadd.f32 %v1706, %v2081
        %v2206 = vadd.f32 %v1707, %v2086
        %v2207 = vadd.f32 %v1708, %v2089
        %v2208 = vadd.f32 %v1709, %v2094
        %v2209 = vadd.f32 %v1710, %v2097
        %v2210 = vadd.f32 %v1711, %v2102
        %v2211 = vadd.f32 %v1712, %v2105
        %v2212 = vadd.f32 %v1713, %v2110
        %v2213 = vadd.f32 %v1714, %v2113
        %v2214 = vadd.f32 %v1715, %v2118
        %v2215 = vadd.f32 %v1716, %v2121
        %v2216 = vadd.f32 %v1717, %v2126
        %v2217 = vadd.f32 %v1718, %v2129
        %v2218 = vadd.f32 %v1719, %v2134
        %v2219 = vadd.f32 %v1720, %v2137
        %v2220 = vadd.f32 %v1721, %v2142
        %v2221 = vadd.f32 %v1722, %v2145
        %v2222 = vadd.f32 %v1723, %v2150
        %v2223 = vadd.f32 %v1724, %v2153
        %v2224 = vadd.f32 %v1725, %v2158
        %v2225 = vadd.f32 %v1726, %v2161
        %v2226 = vadd.f32 %v1727, %v2166
        %v2227 = vadd.f32 %v1728, %v2169
        %v2228 = vadd.f32 %v1729, %v2174
        %v2229 = vadd.f32 %v1730, %v2177
        %v2230 = vadd.f32 %v1731, %v2182
        %v2231 = vadd.f32 %v1732, %v2185
        %v2232 = vadd.f32 %v1733, %v2190
        %v2233 = vadd.f32 %v1734, %v2193
        %v2234 = vadd.f32 %v1735, %v2198
        %v2235 = vadd.f32 %v1736, %v2201
        %s2236 = scalar_lea.vmem %s284, 256 [#allocation6]
        %v2237 = vld [vmem:[%s2236] sm:$0xf]
        %v2238 = vld [vmem:[%s2236 + $0x4] sm:$0xf]
        %v2239 = vld [vmem:[%s2236 + $0x8] sm:$0xf]
        %v2240 = vld [vmem:[%s2236 + $0xc] sm:$0xf]
        %v2241 = vld [vmem:[%s2236 + $0x10] sm:$0xf]
        %v2242 = vld [vmem:[%s2236 + $0x14] sm:$0xf]
        %v2243 = vld [vmem:[%s2236 + $0x18] sm:$0xf]
        %v2244 = vld [vmem:[%s2236 + $0x1c] sm:$0xf]
        %v2245 = vld [vmem:[%s2236 + $0x20] sm:$0xf]
        %v2246 = vld [vmem:[%s2236 + $0x24] sm:$0xf]
        %v2247 = vld [vmem:[%s2236 + $0x28] sm:$0xf]
        %v2248 = vld [vmem:[%s2236 + $0x2c] sm:$0xf]
        %v2249 = vld [vmem:[%s2236 + $0x30] sm:$0xf]
        %v2250 = vld [vmem:[%s2236 + $0x34] sm:$0xf]
        %v2251 = vld [vmem:[%s2236 + $0x38] sm:$0xf]
        %v2252 = vld [vmem:[%s2236 + $0x3c] sm:$0xf]
        %v2269 = vunpack.c.l.b16 %v2237
        %v2270 = vunpack.c.l.b16 %v2238
        %v2271 = vunpack.c.l.b16 %v2239
        %v2272 = vunpack.c.l.b16 %v2240
        %v2273 = vunpack.c.l.b16 %v2241
        %v2274 = vunpack.c.l.b16 %v2242
        %v2275 = vunpack.c.l.b16 %v2243
        %v2276 = vunpack.c.l.b16 %v2244
        %v2277 = vunpack.c.l.b16 %v2245
        %v2278 = vunpack.c.l.b16 %v2246
        %v2279 = vunpack.c.l.b16 %v2247
        %v2280 = vunpack.c.l.b16 %v2248
        %v2281 = vunpack.c.l.b16 %v2249
        %v2282 = vunpack.c.l.b16 %v2250
        %v2283 = vunpack.c.l.b16 %v2251
        %v2284 = vunpack.c.l.b16 %v2252
        %v2285 = vpack.c.b16 %v2270, %v2269
        %v2286 = vpack.c.b16 %v2272, %v2271
        %v2287 = vpack.c.b16 %v2274, %v2273
        %v2288 = vpack.c.b16 %v2276, %v2275
        %v2289 = vpack.c.b16 %v2278, %v2277
        %v2290 = vpack.c.b16 %v2280, %v2279
        %v2291 = vpack.c.b16 %v2282, %v2281
        %v2292 = vpack.c.b16 %v2284, %v2283
        %2301 = vmatprep.subr.bf16.mxu0 0
        %2302 = vmatpush1.bf16.msra.mxu0 %v2285
        %2303 = vmatprep.subr.bf16.mxu0 0
        %2304 = vmatpush1.bf16.msra.mxu0 %v2286
        %2305 = vmatprep.subr.bf16.mxu0 0
        %2306 = vmatpush1.bf16.msra.mxu0 %v2287
        %2307 = vmatprep.subr.bf16.mxu0 0
        %2308 = vmatpush1.bf16.msra.mxu0 %v2288
        %2309 = vmatprep.subr.bf16.mxu0 0
        %2310 = vmatpush1.bf16.msra.mxu0 %v2289
        %2311 = vmatprep.subr.bf16.mxu0 0
        %2312 = vmatpush1.bf16.msra.mxu0 %v2290
        %2313 = vmatprep.subr.bf16.mxu0 0
        %2314 = vmatpush1.bf16.msra.mxu0 %v2291
        %2315 = vmatprep.subr.bf16.mxu0 0
        %2316 = vmatpush1.bf16.msra.mxu0 %v2292
        %2317 = vmatprep.subr.bf16.mxu0 0
        %2318 = vmatpush1.bf16.msra.mxu0 0
        %2319 = vmatprep.subr.bf16.mxu0 0
        %2320 = vmatpush1.bf16.msra.mxu0 0
        %2321 = vmatprep.subr.bf16.mxu0 0
        %2322 = vmatpush1.bf16.msra.mxu0 0
        %2323 = vmatprep.subr.bf16.mxu0 0
        %2324 = vmatpush1.bf16.msra.mxu0 0
        %2325 = vmatprep.subr.bf16.mxu0 0
        %2326 = vmatpush1.bf16.msra.mxu0 0
        %2327 = vmatprep.subr.bf16.mxu0 0
        %2328 = vmatpush1.bf16.msra.mxu0 0
        %2329 = vmatprep.subr.bf16.mxu0 0
        %2330 = vmatpush1.bf16.msra.mxu0 0
        %2331 = vmatprep.subr.bf16.mxu0 0
        %2332 = vmatpush1.bf16.msra.mxu0 0
        %2333 = vmatprep.mubr.bf16.mxu0 0
        %2334 = vmatmul.mubr.bf16.gmra.mrb[0].mxu0 %v1739
        %v2335 = vpop.f32.mrb[0].mxu0
        %v2336 = vadd.f32 0.0, %v2335
        %v2337 = vpop.f32.mrb[0].mxu0
        %v2338 = vpop.f32.mrb[0].mxu0
        %v2339 = vadd.f32 0.0, %v2338
        %v2340 = vpop.f32.mrb[0].mxu0
        %2341 = vmatprep.mubr.bf16.mxu0 0
        %2342 = vmatmul.mubr.bf16.gmra.mrb[0].mxu0 %v1741
        %v2343 = vpop.f32.mrb[0].mxu0
        %v2344 = vadd.f32 0.0, %v2343
        %v2345 = vpop.f32.mrb[0].mxu0
        %v2346 = vpop.f32.mrb[0].mxu0
        %v2347 = vadd.f32 0.0, %v2346
        %v2348 = vpop.f32.mrb[0].mxu0
        %2349 = vmatprep.mubr.bf16.mxu0 0
        %2350 = vmatmul.mubr.bf16.gmra.mrb[0].mxu0 %v1743
        %v2351 = vpop.f32.mrb[0].mxu0
        %v2352 = vadd.f32 0.0, %v2351
        %v2353 = vpop.f32.mrb[0].mxu0
        %v2354 = vpop.f32.mrb[0].mxu0
        %v2355 = vadd.f32 0.0, %v2354
        %v2356 = vpop.f32.mrb[0].mxu0
        %2357 = vmatprep.mubr.bf16.mxu0 0
        %2358 = vmatmul.mubr.bf16.gmra.mrb[0].mxu0 %v1745
        %v2359 = vpop.f32.mrb[0].mxu0
        %v2360 = vadd.f32 0.0, %v2359
        %v2361 = vpop.f32.mrb[0].mxu0
        %v2362 = vpop.f32.mrb[0].mxu0
        %v2363 = vadd.f32 0.0, %v2362
        %v2364 = vpop.f32.mrb[0].mxu0
        %2365 = vmatprep.mubr.bf16.mxu0 0
        %2366 = vmatmul.mubr.bf16.gmra.mrb[0].mxu0 %v1747
        %v2367 = vpop.f32.mrb[0].mxu0
        %v2368 = vadd.f32 0.0, %v2367
        %v2369 = vpop.f32.mrb[0].mxu0
        %v2370 = vpop.f32.mrb[0].mxu0
        %v2371 = vadd.f32 0.0, %v2370
        %v2372 = vpop.f32.mrb[0].mxu0
        %2373 = vmatprep.mubr.bf16.mxu0 0
        %2374 = vmatmul.mubr.bf16.gmra.mrb[0].mxu0 %v1749
        %v2375 = vpop.f32.mrb[0].mxu0
        %v2376 = vadd.f32 0.0, %v2375
        %v2377 = vpop.f32.mrb[0].mxu0
        %v2378 = vpop.f32.mrb[0].mxu0
        %v2379 = vadd.f32 0.0, %v2378
        %v2380 = vpop.f32.mrb[0].mxu0
        %2381 = vmatprep.mubr.bf16.mxu0 0
        %2382 = vmatmul.mubr.bf16.gmra.mrb[0].mxu0 %v1751
        %v2383 = vpop.f32.mrb[0].mxu0
        %v2384 = vadd.f32 0.0, %v2383
        %v2385 = vpop.f32.mrb[0].mxu0
        %v2386 = vpop.f32.mrb[0].mxu0
        %v2387 = vadd.f32 0.0, %v2386
        %v2388 = vpop.f32.mrb[0].mxu0
        %2389 = vmatprep.mubr.bf16.mxu0 0
        %2390 = vmatmul.mubr.bf16.gmra.mrb[0].mxu0 %v1753
        %v2391 = vpop.f32.mrb[0].mxu0
        %v2392 = vadd.f32 0.0, %v2391
        %v2393 = vpop.f32.mrb[0].mxu0
        %v2394 = vpop.f32.mrb[0].mxu0
        %v2395 = vadd.f32 0.0, %v2394
        %v2396 = vpop.f32.mrb[0].mxu0
        %2397 = vmatprep.mubr.bf16.mxu0 0
        %2398 = vmatmul.mubr.bf16.gmra.mrb[0].mxu0 %v1755
        %v2399 = vpop.f32.mrb[0].mxu0
        %v2400 = vadd.f32 0.0, %v2399
        %v2401 = vpop.f32.mrb[0].mxu0
        %v2402 = vpop.f32.mrb[0].mxu0
        %v2403 = vadd.f32 0.0, %v2402
        %v2404 = vpop.f32.mrb[0].mxu0
        %2405 = vmatprep.mubr.bf16.mxu0 0
        %2406 = vmatmul.mubr.bf16.gmra.mrb[0].mxu0 %v1757
        %v2407 = vpop.f32.mrb[0].mxu0
        %v2408 = vadd.f32 0.0, %v2407
        %v2409 = vpop.f32.mrb[0].mxu0
        %v2410 = vpop.f32.mrb[0].mxu0
        %v2411 = vadd.f32 0.0, %v2410
        %v2412 = vpop.f32.mrb[0].mxu0
        %2413 = vmatprep.mubr.bf16.mxu0 0
        %2414 = vmatmul.mubr.bf16.gmra.mrb[0].mxu0 %v1759
        %v2415 = vpop.f32.mrb[0].mxu0
        %v2416 = vadd.f32 0.0, %v2415
        %v2417 = vpop.f32.mrb[0].mxu0
        %v2418 = vpop.f32.mrb[0].mxu0
        %v2419 = vadd.f32 0.0, %v2418
        %v2420 = vpop.f32.mrb[0].mxu0
        %2421 = vmatprep.mubr.bf16.mxu0 0
        %2422 = vmatmul.mubr.bf16.gmra.mrb[0].mxu0 %v1761
        %v2423 = vpop.f32.mrb[0].mxu0
        %v2424 = vadd.f32 0.0, %v2423
        %v2425 = vpop.f32.mrb[0].mxu0
        %v2426 = vpop.f32.mrb[0].mxu0
        %v2427 = vadd.f32 0.0, %v2426
        %v2428 = vpop.f32.mrb[0].mxu0
        %2429 = vmatprep.mubr.bf16.mxu0 0
        %2430 = vmatmul.mubr.bf16.gmra.mrb[0].mxu0 %v1763
        %v2431 = vpop.f32.mrb[0].mxu0
        %v2432 = vadd.f32 0.0, %v2431
        %v2433 = vpop.f32.mrb[0].mxu0
        %v2434 = vpop.f32.mrb[0].mxu0
        %v2435 = vadd.f32 0.0, %v2434
        %v2436 = vpop.f32.mrb[0].mxu0
        %2437 = vmatprep.mubr.bf16.mxu0 0
        %2438 = vmatmul.mubr.bf16.gmra.mrb[0].mxu0 %v1765
        %v2439 = vpop.f32.mrb[0].mxu0
        %v2440 = vadd.f32 0.0, %v2439
        %v2441 = vpop.f32.mrb[0].mxu0
        %v2442 = vpop.f32.mrb[0].mxu0
        %v2443 = vadd.f32 0.0, %v2442
        %v2444 = vpop.f32.mrb[0].mxu0
        %2445 = vmatprep.mubr.bf16.mxu0 0
        %2446 = vmatmul.mubr.bf16.gmra.mrb[0].mxu0 %v1767
        %v2447 = vpop.f32.mrb[0].mxu0
        %v2448 = vadd.f32 0.0, %v2447
        %v2449 = vpop.f32.mrb[0].mxu0
        %v2450 = vpop.f32.mrb[0].mxu0
        %v2451 = vadd.f32 0.0, %v2450
        %v2452 = vpop.f32.mrb[0].mxu0
        %2453 = vmatprep.mubr.bf16.mxu0 0
        %2454 = vmatmul.mubr.bf16.gmra.mrb[0].mxu0 %v1769
        %v2455 = vpop.f32.mrb[0].mxu0
        %v2456 = vadd.f32 0.0, %v2455
        %v2457 = vpop.f32.mrb[0].mxu0
        %v2458 = vpop.f32.mrb[0].mxu0
        %v2459 = vadd.f32 0.0, %v2458
        %v2460 = vpop.f32.mrb[0].mxu0
        %2461 = vdwg.mxu0
        %v2462 = vadd.f32 %v2204, %v2336
        %v2463 = vadd.f32 %v2205, %v2339
        %v2464 = vadd.f32 %v2206, %v2344
        %v2465 = vadd.f32 %v2207, %v2347
        %v2466 = vadd.f32 %v2208, %v2352
        %v2467 = vadd.f32 %v2209, %v2355
        %v2468 = vadd.f32 %v2210, %v2360
        %v2469 = vadd.f32 %v2211, %v2363
        %v2470 = vadd.f32 %v2212, %v2368
        %v2471 = vadd.f32 %v2213, %v2371
        %v2472 = vadd.f32 %v2214, %v2376
        %v2473 = vadd.f32 %v2215, %v2379
        %v2474 = vadd.f32 %v2216, %v2384
        %v2475 = vadd.f32 %v2217, %v2387
        %v2476 = vadd.f32 %v2218, %v2392
        %v2477 = vadd.f32 %v2219, %v2395
        %v2478 = vadd.f32 %v2220, %v2400
        %v2479 = vadd.f32 %v2221, %v2403
        %v2480 = vadd.f32 %v2222, %v2408
        %v2481 = vadd.f32 %v2223, %v2411
        %v2482 = vadd.f32 %v2224, %v2416
        %v2483 = vadd.f32 %v2225, %v2419
        %v2484 = vadd.f32 %v2226, %v2424
        %v2485 = vadd.f32 %v2227, %v2427
        %v2486 = vadd.f32 %v2228, %v2432
        %v2487 = vadd.f32 %v2229, %v2435
        %v2488 = vadd.f32 %v2230, %v2440
        %v2489 = vadd.f32 %v2231, %v2443
        %v2490 = vadd.f32 %v2232, %v2448
        %v2491 = vadd.f32 %v2233, %v2451
        %v2492 = vadd.f32 %v2234, %v2456
        %v2493 = vadd.f32 %v2235, %v2459
        %v2494 = vld [vmem:[%s1737 + $0x8] sm:$0xff]
        %v2495 = vld [vmem:[%s1737 + $0x10] sm:$0x1]
        %v2496 = vld [vmem:[%s1737 + $0x20] sm:$0xff]
        %v2497 = vld [vmem:[%s1737 + $0x28] sm:$0x1]
        %v2498 = vld [vmem:[%s1737 + $0x38] sm:$0xff]
        %v2499 = vld [vmem:[%s1737 + $0x40] sm:$0x1]
        %v2500 = vld [vmem:[%s1737 + $0x50] sm:$0xff]
        %v2501 = vld [vmem:[%s1737 + $0x58] sm:$0x1]
        %v2502 = vld [vmem:[%s1737 + $0x68] sm:$0xff]
        %v2503 = vld [vmem:[%s1737 + $0x70] sm:$0x1]
        %v2504 = vld [vmem:[%s1737 + $0x80] sm:$0xff]
        %v2505 = vld [vmem:[%s1737 + $0x88] sm:$0x1]
        %v2506 = vld [vmem:[%s1737 + $0x98] sm:$0xff]
        %v2507 = vld [vmem:[%s1737 + $0xa0] sm:$0x1]
        %v2508 = vld [vmem:[%s1737 + $0xb0] sm:$0xff]
        %v2509 = vld [vmem:[%s1737 + $0xb8] sm:$0x1]
        %v2510 = vld [vmem:[%s1737 + $0xc8] sm:$0xff]
        %v2511 = vld [vmem:[%s1737 + $0xd0] sm:$0x1]
        %v2512 = vld [vmem:[%s1737 + $0xe0] sm:$0xff]
        %v2513 = vld [vmem:[%s1737 + $0xe8] sm:$0x1]
        %v2514 = vld [vmem:[%s1737 + $0xf8] sm:$0xff]
        %v2515 = vld [vmem:[%s1737 + $0x100] sm:$0x1]
        %v2516 = vld [vmem:[%s1737 + $0x110] sm:$0xff]
        %v2517 = vld [vmem:[%s1737 + $0x118] sm:$0x1]
        %v2518 = vld [vmem:[%s1737 + $0x128] sm:$0xff]
        %v2519 = vld [vmem:[%s1737 + $0x130] sm:$0x1]
        %v2520 = vld [vmem:[%s1737 + $0x140] sm:$0xff]
        %v2521 = vld [vmem:[%s1737 + $0x148] sm:$0x1]
        %v2522 = vld [vmem:[%s1737 + $0x158] sm:$0xff]
        %v2523 = vld [vmem:[%s1737 + $0x160] sm:$0x1]
        %v2524 = vld [vmem:[%s1737 + $0x170] sm:$0xff]
        %v2525 = vld [vmem:[%s1737 + $0x178] sm:$0x1]
        %v2527 = vshrl.u32 %v2494, 16
        %v2529 = vshll.u32 %v2494, 16
        %v2531 = vrot.slane %v2529, 1
        %v2532 = vor.u32 %v2527, %v2531
        %v2534 = vshll.u32 %v2495, 16
        %v2536 = vrot.slane %v2534, 1
        %v2537 = vsel %vm1270, %v2532, %v2536
        %v2539 = vshrl.u32 %v2496, 16
        %v2541 = vshll.u32 %v2496, 16
        %v2543 = vrot.slane %v2541, 1
        %v2544 = vor.u32 %v2539, %v2543
        %v2546 = vshll.u32 %v2497, 16
        %v2548 = vrot.slane %v2546, 1
        %v2549 = vsel %vm1270, %v2544, %v2548
        %v2551 = vshrl.u32 %v2498, 16
        %v2553 = vshll.u32 %v2498, 16
        %v2555 = vrot.slane %v2553, 1
        %v2556 = vor.u32 %v2551, %v2555
        %v2558 = vshll.u32 %v2499, 16
        %v2560 = vrot.slane %v2558, 1
        %v2561 = vsel %vm1270, %v2556, %v2560
        %v2563 = vshrl.u32 %v2500, 16
        %v2565 = vshll.u32 %v2500, 16
        %v2567 = vrot.slane %v2565, 1
        %v2568 = vor.u32 %v2563, %v2567
        %v2570 = vshll.u32 %v2501, 16
        %v2572 = vrot.slane %v2570, 1
        %v2573 = vsel %vm1270, %v2568, %v2572
        %v2575 = vshrl.u32 %v2502, 16
        %v2577 = vshll.u32 %v2502, 16
        %v2579 = vrot.slane %v2577, 1
        %v2580 = vor.u32 %v2575, %v2579
        %v2582 = vshll.u32 %v2503, 16
        %v2584 = vrot.slane %v2582, 1
        %v2585 = vsel %vm1270, %v2580, %v2584
        %v2587 = vshrl.u32 %v2504, 16
        %v2589 = vshll.u32 %v2504, 16
        %v2591 = vrot.slane %v2589, 1
        %v2592 = vor.u32 %v2587, %v2591
        %v2594 = vshll.u32 %v2505, 16
        %v2596 = vrot.slane %v2594, 1
        %v2597 = vsel %vm1270, %v2592, %v2596
        %v2599 = vshrl.u32 %v2506, 16
        %v2601 = vshll.u32 %v2506, 16
        %v2603 = vrot.slane %v2601, 1
        %v2604 = vor.u32 %v2599, %v2603
        %v2606 = vshll.u32 %v2507, 16
        %v2608 = vrot.slane %v2606, 1
        %v2609 = vsel %vm1270, %v2604, %v2608
        %v2611 = vshrl.u32 %v2508, 16
        %v2613 = vshll.u32 %v2508, 16
        %v2615 = vrot.slane %v2613, 1
        %v2616 = vor.u32 %v2611, %v2615
        %v2618 = vshll.u32 %v2509, 16
        %v2620 = vrot.slane %v2618, 1
        %v2621 = vsel %vm1270, %v2616, %v2620
        %v2623 = vshrl.u32 %v2510, 16
        %v2625 = vshll.u32 %v2510, 16
        %v2627 = vrot.slane %v2625, 1
        %v2628 = vor.u32 %v2623, %v2627
        %v2630 = vshll.u32 %v2511, 16
        %v2632 = vrot.slane %v2630, 1
        %v2633 = vsel %vm1270, %v2628, %v2632
        %v2635 = vshrl.u32 %v2512, 16
        %v2637 = vshll.u32 %v2512, 16
        %v2639 = vrot.slane %v2637, 1
        %v2640 = vor.u32 %v2635, %v2639
        %v2642 = vshll.u32 %v2513, 16
        %v2644 = vrot.slane %v2642, 1
        %v2645 = vsel %vm1270, %v2640, %v2644
        %v2647 = vshrl.u32 %v2514, 16
        %v2649 = vshll.u32 %v2514, 16
        %v2651 = vrot.slane %v2649, 1
        %v2652 = vor.u32 %v2647, %v2651
        %v2654 = vshll.u32 %v2515, 16
        %v2656 = vrot.slane %v2654, 1
        %v2657 = vsel %vm1270, %v2652, %v2656
        %v2659 = vshrl.u32 %v2516, 16
        %v2661 = vshll.u32 %v2516, 16
        %v2663 = vrot.slane %v2661, 1
        %v2664 = vor.u32 %v2659, %v2663
        %v2666 = vshll.u32 %v2517, 16
        %v2668 = vrot.slane %v2666, 1
        %v2669 = vsel %vm1270, %v2664, %v2668
        %v2671 = vshrl.u32 %v2518, 16
        %v2673 = vshll.u32 %v2518, 16
        %v2675 = vrot.slane %v2673, 1
        %v2676 = vor.u32 %v2671, %v2675
        %v2678 = vshll.u32 %v2519, 16
        %v2680 = vrot.slane %v2678, 1
        %v2681 = vsel %vm1270, %v2676, %v2680
        %v2683 = vshrl.u32 %v2520, 16
        %v2685 = vshll.u32 %v2520, 16
        %v2687 = vrot.slane %v2685, 1
        %v2688 = vor.u32 %v2683, %v2687
        %v2690 = vshll.u32 %v2521, 16
        %v2692 = vrot.slane %v2690, 1
        %v2693 = vsel %vm1270, %v2688, %v2692
        %v2695 = vshrl.u32 %v2522, 16
        %v2697 = vshll.u32 %v2522, 16
        %v2699 = vrot.slane %v2697, 1
        %v2700 = vor.u32 %v2695, %v2699
        %v2702 = vshll.u32 %v2523, 16
        %v2704 = vrot.slane %v2702, 1
        %v2705 = vsel %vm1270, %v2700, %v2704
        %v2707 = vshrl.u32 %v2524, 16
        %v2709 = vshll.u32 %v2524, 16
        %v2711 = vrot.slane %v2709, 1
        %v2712 = vor.u32 %v2707, %v2711
        %v2714 = vshll.u32 %v2525, 16
        %v2716 = vrot.slane %v2714, 1
        %v2717 = vsel %vm1270, %v2712, %v2716
        %s2734 = scalar_lea.vmem %s284, 320 [#allocation6]
        %v2735 = vld [vmem:[%s2734] sm:$0xf]
        %v2736 = vld [vmem:[%s2734 + $0x4] sm:$0xf]
        %v2737 = vld [vmem:[%s2734 + $0x8] sm:$0xf]
        %v2738 = vld [vmem:[%s2734 + $0xc] sm:$0xf]
        %v2739 = vld [vmem:[%s2734 + $0x10] sm:$0xf]
        %v2740 = vld [vmem:[%s2734 + $0x14] sm:$0xf]
        %v2741 = vld [vmem:[%s2734 + $0x18] sm:$0xf]
        %v2742 = vld [vmem:[%s2734 + $0x1c] sm:$0xf]
        %v2743 = vld [vmem:[%s2734 + $0x20] sm:$0xf]
        %v2744 = vld [vmem:[%s2734 + $0x24] sm:$0xf]
        %v2745 = vld [vmem:[%s2734 + $0x28] sm:$0xf]
        %v2746 = vld [vmem:[%s2734 + $0x2c] sm:$0xf]
        %v2747 = vld [vmem:[%s2734 + $0x30] sm:$0xf]
        %v2748 = vld [vmem:[%s2734 + $0x34] sm:$0xf]
        %v2749 = vld [vmem:[%s2734 + $0x38] sm:$0xf]
        %v2750 = vld [vmem:[%s2734 + $0x3c] sm:$0xf]
        %v2767 = vunpack.c.l.b16 %v2735
        %v2768 = vunpack.c.l.b16 %v2736
        %v2769 = vunpack.c.l.b16 %v2737
        %v2770 = vunpack.c.l.b16 %v2738
        %v2771 = vunpack.c.l.b16 %v2739
        %v2772 = vunpack.c.l.b16 %v2740
        %v2773 = vunpack.c.l.b16 %v2741
        %v2774 = vunpack.c.l.b16 %v2742
        %v2775 = vunpack.c.l.b16 %v2743
        %v2776 = vunpack.c.l.b16 %v2744
        %v2777 = vunpack.c.l.b16 %v2745
        %v2778 = vunpack.c.l.b16 %v2746
        %v2779 = vunpack.c.l.b16 %v2747
        %v2780 = vunpack.c.l.b16 %v2748
        %v2781 = vunpack.c.l.b16 %v2749
        %v2782 = vunpack.c.l.b16 %v2750
        %v2783 = vpack.c.b16 %v2768, %v2767
        %v2784 = vpack.c.b16 %v2770, %v2769
        %v2785 = vpack.c.b16 %v2772, %v2771
        %v2786 = vpack.c.b16 %v2774, %v2773
        %v2787 = vpack.c.b16 %v2776, %v2775
        %v2788 = vpack.c.b16 %v2778, %v2777
        %v2789 = vpack.c.b16 %v2780, %v2779
        %v2790 = vpack.c.b16 %v2782, %v2781
        %2799 = vmatprep.subr.bf16.mxu0 0
        %2800 = vmatpush1.bf16.msra.mxu0 %v2783
        %2801 = vmatprep.subr.bf16.mxu0 0
        %2802 = vmatpush1.bf16.msra.mxu0 %v2784
        %2803 = vmatprep.subr.bf16.mxu0 0
        %2804 = vmatpush1.bf16.msra.mxu0 %v2785
        %2805 = vmatprep.subr.bf16.mxu0 0
        %2806 = vmatpush1.bf16.msra.mxu0 %v2786
        %2807 = vmatprep.subr.bf16.mxu0 0
        %2808 = vmatpush1.bf16.msra.mxu0 %v2787
        %2809 = vmatprep.subr.bf16.mxu0 0
        %2810 = vmatpush1.bf16.msra.mxu0 %v2788
        %2811 = vmatprep.subr.bf16.mxu0 0
        %2812 = vmatpush1.bf16.msra.mxu0 %v2789
        %2813 = vmatprep.subr.bf16.mxu0 0
        %2814 = vmatpush1.bf16.msra.mxu0 %v2790
        %2815 = vmatprep.subr.bf16.mxu0 0
        %2816 = vmatpush1.bf16.msra.mxu0 0
        %2817 = vmatprep.subr.bf16.mxu0 0
        %2818 = vmatpush1.bf16.msra.mxu0 0
        %2819 = vmatprep.subr.bf16.mxu0 0
        %2820 = vmatpush1.bf16.msra.mxu0 0
        %2821 = vmatprep.subr.bf16.mxu0 0
        %2822 = vmatpush1.bf16.msra.mxu0 0
        %2823 = vmatprep.subr.bf16.mxu0 0
        %2824 = vmatpush1.bf16.msra.mxu0 0
        %2825 = vmatprep.subr.bf16.mxu0 0
        %2826 = vmatpush1.bf16.msra.mxu0 0
        %2827 = vmatprep.subr.bf16.mxu0 0
        %2828 = vmatpush1.bf16.msra.mxu0 0
        %2829 = vmatprep.subr.bf16.mxu0 0
        %2830 = vmatpush1.bf16.msra.mxu0 0
        %2831 = vmatprep.mubr.bf16.mxu0 0
        %2832 = vmatmul.mubr.bf16.gmra.mrb[0].mxu0 %v2537
        %v2833 = vpop.f32.mrb[0].mxu0
        %v2834 = vadd.f32 0.0, %v2833
        %v2835 = vpop.f32.mrb[0].mxu0
        %v2836 = vpop.f32.mrb[0].mxu0
        %v2837 = vadd.f32 0.0, %v2836
        %v2838 = vpop.f32.mrb[0].mxu0
        %2839 = vmatprep.mubr.bf16.mxu0 0
        %2840 = vmatmul.mubr.bf16.gmra.mrb[0].mxu0 %v2549
        %v2841 = vpop.f32.mrb[0].mxu0
        %v2842 = vadd.f32 0.0, %v2841
        %v2843 = vpop.f32.mrb[0].mxu0
        %v2844 = vpop.f32.mrb[0].mxu0
        %v2845 = vadd.f32 0.0, %v2844
        %v2846 = vpop.f32.mrb[0].mxu0
        %2847 = vmatprep.mubr.bf16.mxu0 0
        %2848 = vmatmul.mubr.bf16.gmra.mrb[0].mxu0 %v2561
        %v2849 = vpop.f32.mrb[0].mxu0
        %v2850 = vadd.f32 0.0, %v2849
        %v2851 = vpop.f32.mrb[0].mxu0
        %v2852 = vpop.f32.mrb[0].mxu0
        %v2853 = vadd.f32 0.0, %v2852
        %v2854 = vpop.f32.mrb[0].mxu0
        %2855 = vmatprep.mubr.bf16.mxu0 0
        %2856 = vmatmul.mubr.bf16.gmra.mrb[0].mxu0 %v2573
        %v2857 = vpop.f32.mrb[0].mxu0
        %v2858 = vadd.f32 0.0, %v2857
        %v2859 = vpop.f32.mrb[0].mxu0
        %v2860 = vpop.f32.mrb[0].mxu0
        %v2861 = vadd.f32 0.0, %v2860
        %v2862 = vpop.f32.mrb[0].mxu0
        %2863 = vmatprep.mubr.bf16.mxu0 0
        %2864 = vmatmul.mubr.bf16.gmra.mrb[0].mxu0 %v2585
        %v2865 = vpop.f32.mrb[0].mxu0
        %v2866 = vadd.f32 0.0, %v2865
        %v2867 = vpop.f32.mrb[0].mxu0
        %v2868 = vpop.f32.mrb[0].mxu0
        %v2869 = vadd.f32 0.0, %v2868
        %v2870 = vpop.f32.mrb[0].mxu0
        %2871 = vmatprep.mubr.bf16.mxu0 0
        %2872 = vmatmul.mubr.bf16.gmra.mrb[0].mxu0 %v2597
        %v2873 = vpop.f32.mrb[0].mxu0
        %v2874 = vadd.f32 0.0, %v2873
        %v2875 = vpop.f32.mrb[0].mxu0
        %v2876 = vpop.f32.mrb[0].mxu0
        %v2877 = vadd.f32 0.0, %v2876
        %v2878 = vpop.f32.mrb[0].mxu0
        %2879 = vmatprep.mubr.bf16.mxu0 0
        %2880 = vmatmul.mubr.bf16.gmra.mrb[0].mxu0 %v2609
        %v2881 = vpop.f32.mrb[0].mxu0
        %v2882 = vadd.f32 0.0, %v2881
        %v2883 = vpop.f32.mrb[0].mxu0
        %v2884 = vpop.f32.mrb[0].mxu0
        %v2885 = vadd.f32 0.0, %v2884
        %v2886 = vpop.f32.mrb[0].mxu0
        %2887 = vmatprep.mubr.bf16.mxu0 0
        %2888 = vmatmul.mubr.bf16.gmra.mrb[0].mxu0 %v2621
        %v2889 = vpop.f32.mrb[0].mxu0
        %v2890 = vadd.f32 0.0, %v2889
        %v2891 = vpop.f32.mrb[0].mxu0
        %v2892 = vpop.f32.mrb[0].mxu0
        %v2893 = vadd.f32 0.0, %v2892
        %v2894 = vpop.f32.mrb[0].mxu0
        %2895 = vmatprep.mubr.bf16.mxu0 0
        %2896 = vmatmul.mubr.bf16.gmra.mrb[0].mxu0 %v2633
        %v2897 = vpop.f32.mrb[0].mxu0
        %v2898 = vadd.f32 0.0, %v2897
        %v2899 = vpop.f32.mrb[0].mxu0
        %v2900 = vpop.f32.mrb[0].mxu0
        %v2901 = vadd.f32 0.0, %v2900
        %v2902 = vpop.f32.mrb[0].mxu0
        %2903 = vmatprep.mubr.bf16.mxu0 0
        %2904 = vmatmul.mubr.bf16.gmra.mrb[0].mxu0 %v2645
        %v2905 = vpop.f32.mrb[0].mxu0
        %v2906 = vadd.f32 0.0, %v2905
        %v2907 = vpop.f32.mrb[0].mxu0
        %v2908 = vpop.f32.mrb[0].mxu0
        %v2909 = vadd.f32 0.0, %v2908
        %v2910 = vpop.f32.mrb[0].mxu0
        %2911 = vmatprep.mubr.bf16.mxu0 0
        %2912 = vmatmul.mubr.bf16.gmra.mrb[0].mxu0 %v2657
        %v2913 = vpop.f32.mrb[0].mxu0
        %v2914 = vadd.f32 0.0, %v2913
        %v2915 = vpop.f32.mrb[0].mxu0
        %v2916 = vpop.f32.mrb[0].mxu0
        %v2917 = vadd.f32 0.0, %v2916
        %v2918 = vpop.f32.mrb[0].mxu0
        %2919 = vmatprep.mubr.bf16.mxu0 0
        %2920 = vmatmul.mubr.bf16.gmra.mrb[0].mxu0 %v2669
        %v2921 = vpop.f32.mrb[0].mxu0
        %v2922 = vadd.f32 0.0, %v2921
        %v2923 = vpop.f32.mrb[0].mxu0
        %v2924 = vpop.f32.mrb[0].mxu0
        %v2925 = vadd.f32 0.0, %v2924
        %v2926 = vpop.f32.mrb[0].mxu0
        %2927 = vmatprep.mubr.bf16.mxu0 0
        %2928 = vmatmul.mubr.bf16.gmra.mrb[0].mxu0 %v2681
        %v2929 = vpop.f32.mrb[0].mxu0
        %v2930 = vadd.f32 0.0, %v2929
        %v2931 = vpop.f32.mrb[0].mxu0
        %v2932 = vpop.f32.mrb[0].mxu0
        %v2933 = vadd.f32 0.0, %v2932
        %v2934 = vpop.f32.mrb[0].mxu0
        %2935 = vmatprep.mubr.bf16.mxu0 0
        %2936 = vmatmul.mubr.bf16.gmra.mrb[0].mxu0 %v2693
        %v2937 = vpop.f32.mrb[0].mxu0
        %v2938 = vadd.f32 0.0, %v2937
        %v2939 = vpop.f32.mrb[0].mxu0
        %v2940 = vpop.f32.mrb[0].mxu0
        %v2941 = vadd.f32 0.0, %v2940
        %v2942 = vpop.f32.mrb[0].mxu0
        %2943 = vmatprep.mubr.bf16.mxu0 0
        %2944 = vmatmul.mubr.bf16.gmra.mrb[0].mxu0 %v2705
        %v2945 = vpop.f32.mrb[0].mxu0
        %v2946 = vadd.f32 0.0, %v2945
        %v2947 = vpop.f32.mrb[0].mxu0
        %v2948 = vpop.f32.mrb[0].mxu0
        %v2949 = vadd.f32 0.0, %v2948
        %v2950 = vpop.f32.mrb[0].mxu0
        %2951 = vmatprep.mubr.bf16.mxu0 0
        %2952 = vmatmul.mubr.bf16.gmra.mrb[0].mxu0 %v2717
        %v2953 = vpop.f32.mrb[0].mxu0
        %v2954 = vadd.f32 0.0, %v2953
        %v2955 = vpop.f32.mrb[0].mxu0
        %v2956 = vpop.f32.mrb[0].mxu0
        %v2957 = vadd.f32 0.0, %v2956
        %v2958 = vpop.f32.mrb[0].mxu0
        %2959 = vdwg.mxu0
        %v2960 = vadd.f32 %v2462, %v2834
        %v2961 = vadd.f32 %v2463, %v2837
        %v2962 = vadd.f32 %v2464, %v2842
        %v2963 = vadd.f32 %v2465, %v2845
        %v2964 = vadd.f32 %v2466, %v2850
        %v2965 = vadd.f32 %v2467, %v2853
        %v2966 = vadd.f32 %v2468, %v2858
        %v2967 = vadd.f32 %v2469, %v2861
        %v2968 = vadd.f32 %v2470, %v2866
        %v2969 = vadd.f32 %v2471, %v2869
        %v2970 = vadd.f32 %v2472, %v2874
        %v2971 = vadd.f32 %v2473, %v2877
        %v2972 = vadd.f32 %v2474, %v2882
        %v2973 = vadd.f32 %v2475, %v2885
        %v2974 = vadd.f32 %v2476, %v2890
        %v2975 = vadd.f32 %v2477, %v2893
        %v2976 = vadd.f32 %v2478, %v2898
        %v2977 = vadd.f32 %v2479, %v2901
        %v2978 = vadd.f32 %v2480, %v2906
        %v2979 = vadd.f32 %v2481, %v2909
        %v2980 = vadd.f32 %v2482, %v2914
        %v2981 = vadd.f32 %v2483, %v2917
        %v2982 = vadd.f32 %v2484, %v2922
        %v2983 = vadd.f32 %v2485, %v2925
        %v2984 = vadd.f32 %v2486, %v2930
        %v2985 = vadd.f32 %v2487, %v2933
        %v2986 = vadd.f32 %v2488, %v2938
        %v2987 = vadd.f32 %v2489, %v2941
        %v2988 = vadd.f32 %v2490, %v2946
        %v2989 = vadd.f32 %v2491, %v2949
        %v2990 = vadd.f32 %v2492, %v2954
        %v2991 = vadd.f32 %v2493, %v2957
        %s2992 = scalar_lea.vmem [#allocation2], 48
        %v2993 = vld [vmem:[%s2992] sm:$0x80]
        %v2994 = vld [vmem:[%s2992 + $0x8] sm:$0xff]
        %v2995 = vld [vmem:[%s2992 + $0x18] sm:$0x80]
        %v2996 = vld [vmem:[%s2992 + $0x20] sm:$0xff]
        %v2997 = vld [vmem:[%s2992 + $0x30] sm:$0x80]
        %v2998 = vld [vmem:[%s2992 + $0x38] sm:$0xff]
        %v2999 = vld [vmem:[%s2992 + $0x48] sm:$0x80]
        %v3000 = vld [vmem:[%s2992 + $0x50] sm:$0xff]
        %v3001 = vld [vmem:[%s2992 + $0x60] sm:$0x80]
        %v3002 = vld [vmem:[%s2992 + $0x68] sm:$0xff]
        %v3003 = vld [vmem:[%s2992 + $0x78] sm:$0x80]
        %v3004 = vld [vmem:[%s2992 + $0x80] sm:$0xff]
        %v3005 = vld [vmem:[%s2992 + $0x90] sm:$0x80]
        %v3006 = vld [vmem:[%s2992 + $0x98] sm:$0xff]
        %v3007 = vld [vmem:[%s2992 + $0xa8] sm:$0x80]
        %v3008 = vld [vmem:[%s2992 + $0xb0] sm:$0xff]
        %v3009 = vld [vmem:[%s2992 + $0xc0] sm:$0x80]
        %v3010 = vld [vmem:[%s2992 + $0xc8] sm:$0xff]
        %v3011 = vld [vmem:[%s2992 + $0xd8] sm:$0x80]
        %v3012 = vld [vmem:[%s2992 + $0xe0] sm:$0xff]
        %v3013 = vld [vmem:[%s2992 + $0xf0] sm:$0x80]
        %v3014 = vld [vmem:[%s2992 + $0xf8] sm:$0xff]
        %v3015 = vld [vmem:[%s2992 + $0x108] sm:$0x80]
        %v3016 = vld [vmem:[%s2992 + $0x110] sm:$0xff]
        %v3017 = vld [vmem:[%s2992 + $0x120] sm:$0x80]
        %v3018 = vld [vmem:[%s2992 + $0x128] sm:$0xff]
        %v3019 = vld [vmem:[%s2992 + $0x138] sm:$0x80]
        %v3020 = vld [vmem:[%s2992 + $0x140] sm:$0xff]
        %v3021 = vld [vmem:[%s2992 + $0x150] sm:$0x80]
        %v3022 = vld [vmem:[%s2992 + $0x158] sm:$0xff]
        %v3023 = vld [vmem:[%s2992 + $0x168] sm:$0x80]
        %v3024 = vld [vmem:[%s2992 + $0x170] sm:$0xff]
        %v3026 = vshrl.u32 %v2993, 16
        %v3028 = vrot.slane %v3026, 7
        %v3030 = vshrl.u32 %v2994, 16
        %v3032 = vrot.slane %v3030, 7
        %v3033 = vshll.u32 %v2994, 16
        %v3035 = vor.u32 %v3032, %v3033
        %v3036 = vsel %vm578, %v3028, %v3035
        %v3038 = vshrl.u32 %v2995, 16
        %v3040 = vrot.slane %v3038, 7
        %v3042 = vshrl.u32 %v2996, 16
        %v3044 = vrot.slane %v3042, 7
        %v3045 = vshll.u32 %v2996, 16
        %v3047 = vor.u32 %v3044, %v3045
        %v3048 = vsel %vm578, %v3040, %v3047
        %v3050 = vshrl.u32 %v2997, 16
        %v3052 = vrot.slane %v3050, 7
        %v3054 = vshrl.u32 %v2998, 16
        %v3056 = vrot.slane %v3054, 7
        %v3057 = vshll.u32 %v2998, 16
        %v3059 = vor.u32 %v3056, %v3057
        %v3060 = vsel %vm578, %v3052, %v3059
        %v3062 = vshrl.u32 %v2999, 16
        %v3064 = vrot.slane %v3062, 7
        %v3066 = vshrl.u32 %v3000, 16
        %v3068 = vrot.slane %v3066, 7
        %v3069 = vshll.u32 %v3000, 16
        %v3071 = vor.u32 %v3068, %v3069
        %v3072 = vsel %vm578, %v3064, %v3071
        %v3074 = vshrl.u32 %v3001, 16
        %v3076 = vrot.slane %v3074, 7
        %v3078 = vshrl.u32 %v3002, 16
        %v3080 = vrot.slane %v3078, 7
        %v3081 = vshll.u32 %v3002, 16
        %v3083 = vor.u32 %v3080, %v3081
        %v3084 = vsel %vm578, %v3076, %v3083
        %v3086 = vshrl.u32 %v3003, 16
        %v3088 = vrot.slane %v3086, 7
        %v3090 = vshrl.u32 %v3004, 16
        %v3092 = vrot.slane %v3090, 7
        %v3093 = vshll.u32 %v3004, 16
        %v3095 = vor.u32 %v3092, %v3093
        %v3096 = vsel %vm578, %v3088, %v3095
        %v3098 = vshrl.u32 %v3005, 16
        %v3100 = vrot.slane %v3098, 7
        %v3102 = vshrl.u32 %v3006, 16
        %v3104 = vrot.slane %v3102, 7
        %v3105 = vshll.u32 %v3006, 16
        %v3107 = vor.u32 %v3104, %v3105
        %v3108 = vsel %vm578, %v3100, %v3107
        %v3110 = vshrl.u32 %v3007, 16
        %v3112 = vrot.slane %v3110, 7
        %v3114 = vshrl.u32 %v3008, 16
        %v3116 = vrot.slane %v3114, 7
        %v3117 = vshll.u32 %v3008, 16
        %v3119 = vor.u32 %v3116, %v3117
        %v3120 = vsel %vm578, %v3112, %v3119
        %v3122 = vshrl.u32 %v3009, 16
        %v3124 = vrot.slane %v3122, 7
        %v3126 = vshrl.u32 %v3010, 16
        %v3128 = vrot.slane %v3126, 7
        %v3129 = vshll.u32 %v3010, 16
        %v3131 = vor.u32 %v3128, %v3129
        %v3132 = vsel %vm578, %v3124, %v3131
        %v3134 = vshrl.u32 %v3011, 16
        %v3136 = vrot.slane %v3134, 7
        %v3138 = vshrl.u32 %v3012, 16
        %v3140 = vrot.slane %v3138, 7
        %v3141 = vshll.u32 %v3012, 16
        %v3143 = vor.u32 %v3140, %v3141
        %v3144 = vsel %vm578, %v3136, %v3143
        %v3146 = vshrl.u32 %v3013, 16
        %v3148 = vrot.slane %v3146, 7
        %v3150 = vshrl.u32 %v3014, 16
        %v3152 = vrot.slane %v3150, 7
        %v3153 = vshll.u32 %v3014, 16
        %v3155 = vor.u32 %v3152, %v3153
        %v3156 = vsel %vm578, %v3148, %v3155
        %v3158 = vshrl.u32 %v3015, 16
        %v3160 = vrot.slane %v3158, 7
        %v3162 = vshrl.u32 %v3016, 16
        %v3164 = vrot.slane %v3162, 7
        %v3165 = vshll.u32 %v3016, 16
        %v3167 = vor.u32 %v3164, %v3165
        %v3168 = vsel %vm578, %v3160, %v3167
        %v3170 = vshrl.u32 %v3017, 16
        %v3172 = vrot.slane %v3170, 7
        %v3174 = vshrl.u32 %v3018, 16
        %v3176 = vrot.slane %v3174, 7
        %v3177 = vshll.u32 %v3018, 16
        %v3179 = vor.u32 %v3176, %v3177
        %v3180 = vsel %vm578, %v3172, %v3179
        %v3182 = vshrl.u32 %v3019, 16
        %v3184 = vrot.slane %v3182, 7
        %v3186 = vshrl.u32 %v3020, 16
        %v3188 = vrot.slane %v3186, 7
        %v3189 = vshll.u32 %v3020, 16
        %v3191 = vor.u32 %v3188, %v3189
        %v3192 = vsel %vm578, %v3184, %v3191
        %v3194 = vshrl.u32 %v3021, 16
        %v3196 = vrot.slane %v3194, 7
        %v3198 = vshrl.u32 %v3022, 16
        %v3200 = vrot.slane %v3198, 7
        %v3201 = vshll.u32 %v3022, 16
        %v3203 = vor.u32 %v3200, %v3201
        %v3204 = vsel %vm578, %v3196, %v3203
        %v3206 = vshrl.u32 %v3023, 16
        %v3208 = vrot.slane %v3206, 7
        %v3210 = vshrl.u32 %v3024, 16
        %v3212 = vrot.slane %v3210, 7
        %v3213 = vshll.u32 %v3024, 16
        %v3215 = vor.u32 %v3212, %v3213
        %v3216 = vsel %vm578, %v3208, %v3215
        %s3233 = scalar_lea.vmem %s284, 384 [#allocation6]
        %v3234 = vld [vmem:[%s3233] sm:$0xf]
        %v3235 = vld [vmem:[%s3233 + $0x4] sm:$0xf]
        %v3236 = vld [vmem:[%s3233 + $0x8] sm:$0xf]
        %v3237 = vld [vmem:[%s3233 + $0xc] sm:$0xf]
        %v3238 = vld [vmem:[%s3233 + $0x10] sm:$0xf]
        %v3239 = vld [vmem:[%s3233 + $0x14] sm:$0xf]
        %v3240 = vld [vmem:[%s3233 + $0x18] sm:$0xf]
        %v3241 = vld [vmem:[%s3233 + $0x1c] sm:$0xf]
        %v3242 = vld [vmem:[%s3233 + $0x20] sm:$0xf]
        %v3243 = vld [vmem:[%s3233 + $0x24] sm:$0xf]
        %v3244 = vld [vmem:[%s3233 + $0x28] sm:$0xf]
        %v3245 = vld [vmem:[%s3233 + $0x2c] sm:$0xf]
        %v3246 = vld [vmem:[%s3233 + $0x30] sm:$0xf]
        %v3247 = vld [vmem:[%s3233 + $0x34] sm:$0xf]
        %v3248 = vld [vmem:[%s3233 + $0x38] sm:$0xf]
        %v3249 = vld [vmem:[%s3233 + $0x3c] sm:$0xf]
        %v3266 = vunpack.c.l.b16 %v3234
        %v3267 = vunpack.c.l.b16 %v3235
        %v3268 = vunpack.c.l.b16 %v3236
        %v3269 = vunpack.c.l.b16 %v3237
        %v3270 = vunpack.c.l.b16 %v3238
        %v3271 = vunpack.c.l.b16 %v3239
        %v3272 = vunpack.c.l.b16 %v3240
        %v3273 = vunpack.c.l.b16 %v3241
        %v3274 = vunpack.c.l.b16 %v3242
        %v3275 = vunpack.c.l.b16 %v3243
        %v3276 = vunpack.c.l.b16 %v3244
        %v3277 = vunpack.c.l.b16 %v3245
        %v3278 = vunpack.c.l.b16 %v3246
        %v3279 = vunpack.c.l.b16 %v3247
        %v3280 = vunpack.c.l.b16 %v3248
        %v3281 = vunpack.c.l.b16 %v3249
        %v3282 = vpack.c.b16 %v3267, %v3266
        %v3283 = vpack.c.b16 %v3269, %v3268
        %v3284 = vpack.c.b16 %v3271, %v3270
        %v3285 = vpack.c.b16 %v3273, %v3272
        %v3286 = vpack.c.b16 %v3275, %v3274
        %v3287 = vpack.c.b16 %v3277, %v3276
        %v3288 = vpack.c.b16 %v3279, %v3278
        %v3289 = vpack.c.b16 %v3281, %v3280
        %3298 = vmatprep.subr.bf16.mxu0 0
        %3299 = vmatpush1.bf16.msra.mxu0 %v3282
        %3300 = vmatprep.subr.bf16.mxu0 0
        %3301 = vmatpush1.bf16.msra.mxu0 %v3283
        %3302 = vmatprep.subr.bf16.mxu0 0
        %3303 = vmatpush1.bf16.msra.mxu0 %v3284
        %3304 = vmatprep.subr.bf16.mxu0 0
        %3305 = vmatpush1.bf16.msra.mxu0 %v3285
        %3306 = vmatprep.subr.bf16.mxu0 0
        %3307 = vmatpush1.bf16.msra.mxu0 %v3286
        %3308 = vmatprep.subr.bf16.mxu0 0
        %3309 = vmatpush1.bf16.msra.mxu0 %v3287
        %3310 = vmatprep.subr.bf16.mxu0 0
        %3311 = vmatpush1.bf16.msra.mxu0 %v3288
        %3312 = vmatprep.subr.bf16.mxu0 0
        %3313 = vmatpush1.bf16.msra.mxu0 %v3289
        %3314 = vmatprep.subr.bf16.mxu0 0
        %3315 = vmatpush1.bf16.msra.mxu0 0
        %3316 = vmatprep.subr.bf16.mxu0 0
        %3317 = vmatpush1.bf16.msra.mxu0 0
        %3318 = vmatprep.subr.bf16.mxu0 0
        %3319 = vmatpush1.bf16.msra.mxu0 0
        %3320 = vmatprep.subr.bf16.mxu0 0
        %3321 = vmatpush1.bf16.msra.mxu0 0
        %3322 = vmatprep.subr.bf16.mxu0 0
        %3323 = vmatpush1.bf16.msra.mxu0 0
        %3324 = vmatprep.subr.bf16.mxu0 0
        %3325 = vmatpush1.bf16.msra.mxu0 0
        %3326 = vmatprep.subr.bf16.mxu0 0
        %3327 = vmatpush1.bf16.msra.mxu0 0
        %3328 = vmatprep.subr.bf16.mxu0 0
        %3329 = vmatpush1.bf16.msra.mxu0 0
        %3330 = vmatprep.mubr.bf16.mxu0 0
        %3331 = vmatmul.mubr.bf16.gmra.mrb[0].mxu0 %v3036
        %v3332 = vpop.f32.mrb[0].mxu0
        %v3333 = vadd.f32 0.0, %v3332
        %v3334 = vpop.f32.mrb[0].mxu0
        %v3335 = vpop.f32.mrb[0].mxu0
        %v3336 = vadd.f32 0.0, %v3335
        %v3337 = vpop.f32.mrb[0].mxu0
        %3338 = vmatprep.mubr.bf16.mxu0 0
        %3339 = vmatmul.mubr.bf16.gmra.mrb[0].mxu0 %v3048
        %v3340 = vpop.f32.mrb[0].mxu0
        %v3341 = vadd.f32 0.0, %v3340
        %v3342 = vpop.f32.mrb[0].mxu0
        %v3343 = vpop.f32.mrb[0].mxu0
        %v3344 = vadd.f32 0.0, %v3343
        %v3345 = vpop.f32.mrb[0].mxu0
        %3346 = vmatprep.mubr.bf16.mxu0 0
        %3347 = vmatmul.mubr.bf16.gmra.mrb[0].mxu0 %v3060
        %v3348 = vpop.f32.mrb[0].mxu0
        %v3349 = vadd.f32 0.0, %v3348
        %v3350 = vpop.f32.mrb[0].mxu0
        %v3351 = vpop.f32.mrb[0].mxu0
        %v3352 = vadd.f32 0.0, %v3351
        %v3353 = vpop.f32.mrb[0].mxu0
        %3354 = vmatprep.mubr.bf16.mxu0 0
        %3355 = vmatmul.mubr.bf16.gmra.mrb[0].mxu0 %v3072
        %v3356 = vpop.f32.mrb[0].mxu0
        %v3357 = vadd.f32 0.0, %v3356
        %v3358 = vpop.f32.mrb[0].mxu0
        %v3359 = vpop.f32.mrb[0].mxu0
        %v3360 = vadd.f32 0.0, %v3359
        %v3361 = vpop.f32.mrb[0].mxu0
        %3362 = vmatprep.mubr.bf16.mxu0 0
        %3363 = vmatmul.mubr.bf16.gmra.mrb[0].mxu0 %v3084
        %v3364 = vpop.f32.mrb[0].mxu0
        %v3365 = vadd.f32 0.0, %v3364
        %v3366 = vpop.f32.mrb[0].mxu0
        %v3367 = vpop.f32.mrb[0].mxu0
        %v3368 = vadd.f32 0.0, %v3367
        %v3369 = vpop.f32.mrb[0].mxu0
        %3370 = vmatprep.mubr.bf16.mxu0 0
        %3371 = vmatmul.mubr.bf16.gmra.mrb[0].mxu0 %v3096
        %v3372 = vpop.f32.mrb[0].mxu0
        %v3373 = vadd.f32 0.0, %v3372
        %v3374 = vpop.f32.mrb[0].mxu0
        %v3375 = vpop.f32.mrb[0].mxu0
        %v3376 = vadd.f32 0.0, %v3375
        %v3377 = vpop.f32.mrb[0].mxu0
        %3378 = vmatprep.mubr.bf16.mxu0 0
        %3379 = vmatmul.mubr.bf16.gmra.mrb[0].mxu0 %v3108
        %v3380 = vpop.f32.mrb[0].mxu0
        %v3381 = vadd.f32 0.0, %v3380
        %v3382 = vpop.f32.mrb[0].mxu0
        %v3383 = vpop.f32.mrb[0].mxu0
        %v3384 = vadd.f32 0.0, %v3383
        %v3385 = vpop.f32.mrb[0].mxu0
        %3386 = vmatprep.mubr.bf16.mxu0 0
        %3387 = vmatmul.mubr.bf16.gmra.mrb[0].mxu0 %v3120
        %v3388 = vpop.f32.mrb[0].mxu0
        %v3389 = vadd.f32 0.0, %v3388
        %v3390 = vpop.f32.mrb[0].mxu0
        %v3391 = vpop.f32.mrb[0].mxu0
        %v3392 = vadd.f32 0.0, %v3391
        %v3393 = vpop.f32.mrb[0].mxu0
        %3394 = vmatprep.mubr.bf16.mxu0 0
        %3395 = vmatmul.mubr.bf16.gmra.mrb[0].mxu0 %v3132
        %v3396 = vpop.f32.mrb[0].mxu0
        %v3397 = vadd.f32 0.0, %v3396
        %v3398 = vpop.f32.mrb[0].mxu0
        %v3399 = vpop.f32.mrb[0].mxu0
        %v3400 = vadd.f32 0.0, %v3399
        %v3401 = vpop.f32.mrb[0].mxu0
        %3402 = vmatprep.mubr.bf16.mxu0 0
        %3403 = vmatmul.mubr.bf16.gmra.mrb[0].mxu0 %v3144
        %v3404 = vpop.f32.mrb[0].mxu0
        %v3405 = vadd.f32 0.0, %v3404
        %v3406 = vpop.f32.mrb[0].mxu0
        %v3407 = vpop.f32.mrb[0].mxu0
        %v3408 = vadd.f32 0.0, %v3407
        %v3409 = vpop.f32.mrb[0].mxu0
        %3410 = vmatprep.mubr.bf16.mxu0 0
        %3411 = vmatmul.mubr.bf16.gmra.mrb[0].mxu0 %v3156
        %v3412 = vpop.f32.mrb[0].mxu0
        %v3413 = vadd.f32 0.0, %v3412
        %v3414 = vpop.f32.mrb[0].mxu0
        %v3415 = vpop.f32.mrb[0].mxu0
        %v3416 = vadd.f32 0.0, %v3415
        %v3417 = vpop.f32.mrb[0].mxu0
        %3418 = vmatprep.mubr.bf16.mxu0 0
        %3419 = vmatmul.mubr.bf16.gmra.mrb[0].mxu0 %v3168
        %v3420 = vpop.f32.mrb[0].mxu0
        %v3421 = vadd.f32 0.0, %v3420
        %v3422 = vpop.f32.mrb[0].mxu0
        %v3423 = vpop.f32.mrb[0].mxu0
        %v3424 = vadd.f32 0.0, %v3423
        %v3425 = vpop.f32.mrb[0].mxu0
        %3426 = vmatprep.mubr.bf16.mxu0 0
        %3427 = vmatmul.mubr.bf16.gmra.mrb[0].mxu0 %v3180
        %v3428 = vpop.f32.mrb[0].mxu0
        %v3429 = vadd.f32 0.0, %v3428
        %v3430 = vpop.f32.mrb[0].mxu0
        %v3431 = vpop.f32.mrb[0].mxu0
        %v3432 = vadd.f32 0.0, %v3431
        %v3433 = vpop.f32.mrb[0].mxu0
        %3434 = vmatprep.mubr.bf16.mxu0 0
        %3435 = vmatmul.mubr.bf16.gmra.mrb[0].mxu0 %v3192
        %v3436 = vpop.f32.mrb[0].mxu0
        %v3437 = vadd.f32 0.0, %v3436
        %v3438 = vpop.f32.mrb[0].mxu0
        %v3439 = vpop.f32.mrb[0].mxu0
        %v3440 = vadd.f32 0.0, %v3439
        %v3441 = vpop.f32.mrb[0].mxu0
        %3442 = vmatprep.mubr.bf16.mxu0 0
        %3443 = vmatmul.mubr.bf16.gmra.mrb[0].mxu0 %v3204
        %v3444 = vpop.f32.mrb[0].mxu0
        %v3445 = vadd.f32 0.0, %v3444
        %v3446 = vpop.f32.mrb[0].mxu0
        %v3447 = vpop.f32.mrb[0].mxu0
        %v3448 = vadd.f32 0.0, %v3447
        %v3449 = vpop.f32.mrb[0].mxu0
        %3450 = vmatprep.mubr.bf16.mxu0 0
        %3451 = vmatmul.mubr.bf16.gmra.mrb[0].mxu0 %v3216
        %v3452 = vpop.f32.mrb[0].mxu0
        %v3453 = vadd.f32 0.0, %v3452
        %v3454 = vpop.f32.mrb[0].mxu0
        %v3455 = vpop.f32.mrb[0].mxu0
        %v3456 = vadd.f32 0.0, %v3455
        %v3457 = vpop.f32.mrb[0].mxu0
        %3458 = vdwg.mxu0
        %v3459 = vadd.f32 %v2960, %v3333
        %v3460 = vadd.f32 %v2961, %v3336
        %v3461 = vadd.f32 %v2962, %v3341
        %v3462 = vadd.f32 %v2963, %v3344
        %v3463 = vadd.f32 %v2964, %v3349
        %v3464 = vadd.f32 %v2965, %v3352
        %v3465 = vadd.f32 %v2966, %v3357
        %v3466 = vadd.f32 %v2967, %v3360
        %v3467 = vadd.f32 %v2968, %v3365
        %v3468 = vadd.f32 %v2969, %v3368
        %v3469 = vadd.f32 %v2970, %v3373
        %v3470 = vadd.f32 %v2971, %v3376
        %v3471 = vadd.f32 %v2972, %v3381
        %v3472 = vadd.f32 %v2973, %v3384
        %v3473 = vadd.f32 %v2974, %v3389
        %v3474 = vadd.f32 %v2975, %v3392
        %v3475 = vadd.f32 %v2976, %v3397
        %v3476 = vadd.f32 %v2977, %v3400
        %v3477 = vadd.f32 %v2978, %v3405
        %v3478 = vadd.f32 %v2979, %v3408
        %v3479 = vadd.f32 %v2980, %v3413
        %v3480 = vadd.f32 %v2981, %v3416
        %v3481 = vadd.f32 %v2982, %v3421
        %v3482 = vadd.f32 %v2983, %v3424
        %v3483 = vadd.f32 %v2984, %v3429
        %v3484 = vadd.f32 %v2985, %v3432
        %v3485 = vadd.f32 %v2986, %v3437
        %v3486 = vadd.f32 %v2987, %v3440
        %v3487 = vadd.f32 %v2988, %v3445
        %v3488 = vadd.f32 %v2989, %v3448
        %v3489 = vadd.f32 %v2990, %v3453
        %v3490 = vadd.f32 %v2991, %v3456
        %s3491 = scalar_lea.vmem %s284, 448 [#allocation6]
        %v3492 = vld [vmem:[%s3491] sm:$0xf]
        %v3493 = vld [vmem:[%s3491 + $0x4] sm:$0xf]
        %v3494 = vld [vmem:[%s3491 + $0x8] sm:$0xf]
        %v3495 = vld [vmem:[%s3491 + $0xc] sm:$0xf]
        %v3496 = vld [vmem:[%s3491 + $0x10] sm:$0xf]
        %v3497 = vld [vmem:[%s3491 + $0x14] sm:$0xf]
        %v3498 = vld [vmem:[%s3491 + $0x18] sm:$0xf]
        %v3499 = vld [vmem:[%s3491 + $0x1c] sm:$0xf]
        %v3500 = vld [vmem:[%s3491 + $0x20] sm:$0xf]
        %v3501 = vld [vmem:[%s3491 + $0x24] sm:$0xf]
        %v3502 = vld [vmem:[%s3491 + $0x28] sm:$0xf]
        %v3503 = vld [vmem:[%s3491 + $0x2c] sm:$0xf]
        %v3504 = vld [vmem:[%s3491 + $0x30] sm:$0xf]
        %v3505 = vld [vmem:[%s3491 + $0x34] sm:$0xf]
        %v3506 = vld [vmem:[%s3491 + $0x38] sm:$0xf]
        %v3507 = vld [vmem:[%s3491 + $0x3c] sm:$0xf]
        %v3524 = vunpack.c.l.b16 %v3492
        %v3525 = vunpack.c.l.b16 %v3493
        %v3526 = vunpack.c.l.b16 %v3494
        %v3527 = vunpack.c.l.b16 %v3495
        %v3528 = vunpack.c.l.b16 %v3496
        %v3529 = vunpack.c.l.b16 %v3497
        %v3530 = vunpack.c.l.b16 %v3498
        %v3531 = vunpack.c.l.b16 %v3499
        %v3532 = vunpack.c.l.b16 %v3500
        %v3533 = vunpack.c.l.b16 %v3501
        %v3534 = vunpack.c.l.b16 %v3502
        %v3535 = vunpack.c.l.b16 %v3503
        %v3536 = vunpack.c.l.b16 %v3504
        %v3537 = vunpack.c.l.b16 %v3505
        %v3538 = vunpack.c.l.b16 %v3506
        %v3539 = vunpack.c.l.b16 %v3507
        %v3540 = vpack.c.b16 %v3525, %v3524
        %v3541 = vpack.c.b16 %v3527, %v3526
        %v3542 = vpack.c.b16 %v3529, %v3528
        %v3543 = vpack.c.b16 %v3531, %v3530
        %v3544 = vpack.c.b16 %v3533, %v3532
        %v3545 = vpack.c.b16 %v3535, %v3534
        %v3546 = vpack.c.b16 %v3537, %v3536
        %v3547 = vpack.c.b16 %v3539, %v3538
        %3556 = vmatprep.subr.bf16.mxu0 0
        %3557 = vmatpush1.bf16.msra.mxu0 %v3540
        %3558 = vmatprep.subr.bf16.mxu0 0
        %3559 = vmatpush1.bf16.msra.mxu0 %v3541
        %3560 = vmatprep.subr.bf16.mxu0 0
        %3561 = vmatpush1.bf16.msra.mxu0 %v3542
        %3562 = vmatprep.subr.bf16.mxu0 0
        %3563 = vmatpush1.bf16.msra.mxu0 %v3543
        %3564 = vmatprep.subr.bf16.mxu0 0
        %3565 = vmatpush1.bf16.msra.mxu0 %v3544
        %3566 = vmatprep.subr.bf16.mxu0 0
        %3567 = vmatpush1.bf16.msra.mxu0 %v3545
        %3568 = vmatprep.subr.bf16.mxu0 0
        %3569 = vmatpush1.bf16.msra.mxu0 %v3546
        %3570 = vmatprep.subr.bf16.mxu0 0
        %3571 = vmatpush1.bf16.msra.mxu0 %v3547
        %3572 = vmatprep.subr.bf16.mxu0 0
        %3573 = vmatpush1.bf16.msra.mxu0 0
        %3574 = vmatprep.subr.bf16.mxu0 0
        %3575 = vmatpush1.bf16.msra.mxu0 0
        %3576 = vmatprep.subr.bf16.mxu0 0
        %3577 = vmatpush1.bf16.msra.mxu0 0
        %3578 = vmatprep.subr.bf16.mxu0 0
        %3579 = vmatpush1.bf16.msra.mxu0 0
        %3580 = vmatprep.subr.bf16.mxu0 0
        %3581 = vmatpush1.bf16.msra.mxu0 0
        %3582 = vmatprep.subr.bf16.mxu0 0
        %3583 = vmatpush1.bf16.msra.mxu0 0
        %3584 = vmatprep.subr.bf16.mxu0 0
        %3585 = vmatpush1.bf16.msra.mxu0 0
        %3586 = vmatprep.subr.bf16.mxu0 0
        %3587 = vmatpush1.bf16.msra.mxu0 0
        %3588 = vmatprep.mubr.bf16.mxu0 0
        %3589 = vmatmul.mubr.bf16.gmra.mrb[0].mxu0 %v2994
        %v3590 = vpop.f32.mrb[0].mxu0
        %v3591 = vadd.f32 0.0, %v3590
        %v3592 = vpop.f32.mrb[0].mxu0
        %v3593 = vpop.f32.mrb[0].mxu0
        %v3594 = vadd.f32 0.0, %v3593
        %v3595 = vpop.f32.mrb[0].mxu0
        %3596 = vmatprep.mubr.bf16.mxu0 0
        %3597 = vmatmul.mubr.bf16.gmra.mrb[0].mxu0 %v2996
        %v3598 = vpop.f32.mrb[0].mxu0
        %v3599 = vadd.f32 0.0, %v3598
        %v3600 = vpop.f32.mrb[0].mxu0
        %v3601 = vpop.f32.mrb[0].mxu0
        %v3602 = vadd.f32 0.0, %v3601
        %v3603 = vpop.f32.mrb[0].mxu0
        %3604 = vmatprep.mubr.bf16.mxu0 0
        %3605 = vmatmul.mubr.bf16.gmra.mrb[0].mxu0 %v2998
        %v3606 = vpop.f32.mrb[0].mxu0
        %v3607 = vadd.f32 0.0, %v3606
        %v3608 = vpop.f32.mrb[0].mxu0
        %v3609 = vpop.f32.mrb[0].mxu0
        %v3610 = vadd.f32 0.0, %v3609
        %v3611 = vpop.f32.mrb[0].mxu0
        %3612 = vmatprep.mubr.bf16.mxu0 0
        %3613 = vmatmul.mubr.bf16.gmra.mrb[0].mxu0 %v3000
        %v3614 = vpop.f32.mrb[0].mxu0
        %v3615 = vadd.f32 0.0, %v3614
        %v3616 = vpop.f32.mrb[0].mxu0
        %v3617 = vpop.f32.mrb[0].mxu0
        %v3618 = vadd.f32 0.0, %v3617
        %v3619 = vpop.f32.mrb[0].mxu0
        %3620 = vmatprep.mubr.bf16.mxu0 0
        %3621 = vmatmul.mubr.bf16.gmra.mrb[0].mxu0 %v3002
        %v3622 = vpop.f32.mrb[0].mxu0
        %v3623 = vadd.f32 0.0, %v3622
        %v3624 = vpop.f32.mrb[0].mxu0
        %v3625 = vpop.f32.mrb[0].mxu0
        %v3626 = vadd.f32 0.0, %v3625
        %v3627 = vpop.f32.mrb[0].mxu0
        %3628 = vmatprep.mubr.bf16.mxu0 0
        %3629 = vmatmul.mubr.bf16.gmra.mrb[0].mxu0 %v3004
        %v3630 = vpop.f32.mrb[0].mxu0
        %v3631 = vadd.f32 0.0, %v3630
        %v3632 = vpop.f32.mrb[0].mxu0
        %v3633 = vpop.f32.mrb[0].mxu0
        %v3634 = vadd.f32 0.0, %v3633
        %v3635 = vpop.f32.mrb[0].mxu0
        %3636 = vmatprep.mubr.bf16.mxu0 0
        %3637 = vmatmul.mubr.bf16.gmra.mrb[0].mxu0 %v3006
        %v3638 = vpop.f32.mrb[0].mxu0
        %v3639 = vadd.f32 0.0, %v3638
        %v3640 = vpop.f32.mrb[0].mxu0
        %v3641 = vpop.f32.mrb[0].mxu0
        %v3642 = vadd.f32 0.0, %v3641
        %v3643 = vpop.f32.mrb[0].mxu0
        %3644 = vmatprep.mubr.bf16.mxu0 0
        %3645 = vmatmul.mubr.bf16.gmra.mrb[0].mxu0 %v3008
        %v3646 = vpop.f32.mrb[0].mxu0
        %v3647 = vadd.f32 0.0, %v3646
        %v3648 = vpop.f32.mrb[0].mxu0
        %v3649 = vpop.f32.mrb[0].mxu0
        %v3650 = vadd.f32 0.0, %v3649
        %v3651 = vpop.f32.mrb[0].mxu0
        %3652 = vmatprep.mubr.bf16.mxu0 0
        %3653 = vmatmul.mubr.bf16.gmra.mrb[0].mxu0 %v3010
        %v3654 = vpop.f32.mrb[0].mxu0
        %v3655 = vadd.f32 0.0, %v3654
        %v3656 = vpop.f32.mrb[0].mxu0
        %v3657 = vpop.f32.mrb[0].mxu0
        %v3658 = vadd.f32 0.0, %v3657
        %v3659 = vpop.f32.mrb[0].mxu0
        %3660 = vmatprep.mubr.bf16.mxu0 0
        %3661 = vmatmul.mubr.bf16.gmra.mrb[0].mxu0 %v3012
        %v3662 = vpop.f32.mrb[0].mxu0
        %v3663 = vadd.f32 0.0, %v3662
        %v3664 = vpop.f32.mrb[0].mxu0
        %v3665 = vpop.f32.mrb[0].mxu0
        %v3666 = vadd.f32 0.0, %v3665
        %v3667 = vpop.f32.mrb[0].mxu0
        %3668 = vmatprep.mubr.bf16.mxu0 0
        %3669 = vmatmul.mubr.bf16.gmra.mrb[0].mxu0 %v3014
        %v3670 = vpop.f32.mrb[0].mxu0
        %v3671 = vadd.f32 0.0, %v3670
        %v3672 = vpop.f32.mrb[0].mxu0
        %v3673 = vpop.f32.mrb[0].mxu0
        %v3674 = vadd.f32 0.0, %v3673
        %v3675 = vpop.f32.mrb[0].mxu0
        %3676 = vmatprep.mubr.bf16.mxu0 0
        %3677 = vmatmul.mubr.bf16.gmra.mrb[0].mxu0 %v3016
        %v3678 = vpop.f32.mrb[0].mxu0
        %v3679 = vadd.f32 0.0, %v3678
        %v3680 = vpop.f32.mrb[0].mxu0
        %v3681 = vpop.f32.mrb[0].mxu0
        %v3682 = vadd.f32 0.0, %v3681
        %v3683 = vpop.f32.mrb[0].mxu0
        %3684 = vmatprep.mubr.bf16.mxu0 0
        %3685 = vmatmul.mubr.bf16.gmra.mrb[0].mxu0 %v3018
        %v3686 = vpop.f32.mrb[0].mxu0
        %v3687 = vadd.f32 0.0, %v3686
        %v3688 = vpop.f32.mrb[0].mxu0
        %v3689 = vpop.f32.mrb[0].mxu0
        %v3690 = vadd.f32 0.0, %v3689
        %v3691 = vpop.f32.mrb[0].mxu0
        %3692 = vmatprep.mubr.bf16.mxu0 0
        %3693 = vmatmul.mubr.bf16.gmra.mrb[0].mxu0 %v3020
        %v3694 = vpop.f32.mrb[0].mxu0
        %v3695 = vadd.f32 0.0, %v3694
        %v3696 = vpop.f32.mrb[0].mxu0
        %v3697 = vpop.f32.mrb[0].mxu0
        %v3698 = vadd.f32 0.0, %v3697
        %v3699 = vpop.f32.mrb[0].mxu0
        %3700 = vmatprep.mubr.bf16.mxu0 0
        %3701 = vmatmul.mubr.bf16.gmra.mrb[0].mxu0 %v3022
        %v3702 = vpop.f32.mrb[0].mxu0
        %v3703 = vadd.f32 0.0, %v3702
        %v3704 = vpop.f32.mrb[0].mxu0
        %v3705 = vpop.f32.mrb[0].mxu0
        %v3706 = vadd.f32 0.0, %v3705
        %v3707 = vpop.f32.mrb[0].mxu0
        %3708 = vmatprep.mubr.bf16.mxu0 0
        %3709 = vmatmul.mubr.bf16.gmra.mrb[0].mxu0 %v3024
        %v3710 = vpop.f32.mrb[0].mxu0
        %v3711 = vadd.f32 0.0, %v3710
        %v3712 = vpop.f32.mrb[0].mxu0
        %v3713 = vpop.f32.mrb[0].mxu0
        %v3714 = vadd.f32 0.0, %v3713
        %v3715 = vpop.f32.mrb[0].mxu0
        %3716 = vdwg.mxu0
        %v3717 = vadd.f32 %v3459, %v3591
        %v3718 = vadd.f32 %v3460, %v3594
        %v3719 = vadd.f32 %v3461, %v3599
        %v3720 = vadd.f32 %v3462, %v3602
        %v3721 = vadd.f32 %v3463, %v3607
        %v3722 = vadd.f32 %v3464, %v3610
        %v3723 = vadd.f32 %v3465, %v3615
        %v3724 = vadd.f32 %v3466, %v3618
        %v3725 = vadd.f32 %v3467, %v3623
        %v3726 = vadd.f32 %v3468, %v3626
        %v3727 = vadd.f32 %v3469, %v3631
        %v3728 = vadd.f32 %v3470, %v3634
        %v3729 = vadd.f32 %v3471, %v3639
        %v3730 = vadd.f32 %v3472, %v3642
        %v3731 = vadd.f32 %v3473, %v3647
        %v3732 = vadd.f32 %v3474, %v3650
        %v3733 = vadd.f32 %v3475, %v3655
        %v3734 = vadd.f32 %v3476, %v3658
        %v3735 = vadd.f32 %v3477, %v3663
        %v3736 = vadd.f32 %v3478, %v3666
        %v3737 = vadd.f32 %v3479, %v3671
        %v3738 = vadd.f32 %v3480, %v3674
        %v3739 = vadd.f32 %v3481, %v3679
        %v3740 = vadd.f32 %v3482, %v3682
        %v3741 = vadd.f32 %v3483, %v3687
        %v3742 = vadd.f32 %v3484, %v3690
        %v3743 = vadd.f32 %v3485, %v3695
        %v3744 = vadd.f32 %v3486, %v3698
        %v3745 = vadd.f32 %v3487, %v3703
        %v3746 = vadd.f32 %v3488, %v3706
        %v3747 = vadd.f32 %v3489, %v3711
        %v3748 = vadd.f32 %v3490, %v3714
        %v3749 = vld [vmem:[%s2992 + $0x8] sm:$0xff]
        %v3750 = vld [vmem:[%s2992 + $0x10] sm:$0x1]
        %v3751 = vld [vmem:[%s2992 + $0x20] sm:$0xff]
        %v3752 = vld [vmem:[%s2992 + $0x28] sm:$0x1]
        %v3753 = vld [vmem:[%s2992 + $0x38] sm:$0xff]
        %v3754 = vld [vmem:[%s2992 + $0x40] sm:$0x1]
        %v3755 = vld [vmem:[%s2992 + $0x50] sm:$0xff]
        %v3756 = vld [vmem:[%s2992 + $0x58] sm:$0x1]
        %v3757 = vld [vmem:[%s2992 + $0x68] sm:$0xff]
        %v3758 = vld [vmem:[%s2992 + $0x70] sm:$0x1]
        %v3759 = vld [vmem:[%s2992 + $0x80] sm:$0xff]
        %v3760 = vld [vmem:[%s2992 + $0x88] sm:$0x1]
        %v3761 = vld [vmem:[%s2992 + $0x98] sm:$0xff]
        %v3762 = vld [vmem:[%s2992 + $0xa0] sm:$0x1]
        %v3763 = vld [vmem:[%s2992 + $0xb0] sm:$0xff]
        %v3764 = vld [vmem:[%s2992 + $0xb8] sm:$0x1]
        %v3765 = vld [vmem:[%s2992 + $0xc8] sm:$0xff]
        %v3766 = vld [vmem:[%s2992 + $0xd0] sm:$0x1]
        %v3767 = vld [vmem:[%s2992 + $0xe0] sm:$0xff]
        %v3768 = vld [vmem:[%s2992 + $0xe8] sm:$0x1]
        %v3769 = vld [vmem:[%s2992 + $0xf8] sm:$0xff]
        %v3770 = vld [vmem:[%s2992 + $0x100] sm:$0x1]
        %v3771 = vld [vmem:[%s2992 + $0x110] sm:$0xff]
        %v3772 = vld [vmem:[%s2992 + $0x118] sm:$0x1]
        %v3773 = vld [vmem:[%s2992 + $0x128] sm:$0xff]
        %v3774 = vld [vmem:[%s2992 + $0x130] sm:$0x1]
        %v3775 = vld [vmem:[%s2992 + $0x140] sm:$0xff]
        %v3776 = vld [vmem:[%s2992 + $0x148] sm:$0x1]
        %v3777 = vld [vmem:[%s2992 + $0x158] sm:$0xff]
        %v3778 = vld [vmem:[%s2992 + $0x160] sm:$0x1]
        %v3779 = vld [vmem:[%s2992 + $0x170] sm:$0xff]
        %v3780 = vld [vmem:[%s2992 + $0x178] sm:$0x1]
        %v3782 = vshrl.u32 %v3749, 16
        %v3784 = vshll.u32 %v3749, 16
        %v3786 = vrot.slane %v3784, 1
        %v3787 = vor.u32 %v3782, %v3786
        %v3789 = vshll.u32 %v3750, 16
        %v3791 = vrot.slane %v3789, 1
        %v3792 = vsel %vm1270, %v3787, %v3791
        %v3794 = vshrl.u32 %v3751, 16
        %v3796 = vshll.u32 %v3751, 16
        %v3798 = vrot.slane %v3796, 1
        %v3799 = vor.u32 %v3794, %v3798
        %v3801 = vshll.u32 %v3752, 16
        %v3803 = vrot.slane %v3801, 1
        %v3804 = vsel %vm1270, %v3799, %v3803
        %v3806 = vshrl.u32 %v3753, 16
        %v3808 = vshll.u32 %v3753, 16
        %v3810 = vrot.slane %v3808, 1
        %v3811 = vor.u32 %v3806, %v3810
        %v3813 = vshll.u32 %v3754, 16
        %v3815 = vrot.slane %v3813, 1
        %v3816 = vsel %vm1270, %v3811, %v3815
        %v3818 = vshrl.u32 %v3755, 16
        %v3820 = vshll.u32 %v3755, 16
        %v3822 = vrot.slane %v3820, 1
        %v3823 = vor.u32 %v3818, %v3822
        %v3825 = vshll.u32 %v3756, 16
        %v3827 = vrot.slane %v3825, 1
        %v3828 = vsel %vm1270, %v3823, %v3827
        %v3830 = vshrl.u32 %v3757, 16
        %v3832 = vshll.u32 %v3757, 16
        %v3834 = vrot.slane %v3832, 1
        %v3835 = vor.u32 %v3830, %v3834
        %v3837 = vshll.u32 %v3758, 16
        %v3839 = vrot.slane %v3837, 1
        %v3840 = vsel %vm1270, %v3835, %v3839
        %v3842 = vshrl.u32 %v3759, 16
        %v3844 = vshll.u32 %v3759, 16
        %v3846 = vrot.slane %v3844, 1
        %v3847 = vor.u32 %v3842, %v3846
        %v3849 = vshll.u32 %v3760, 16
        %v3851 = vrot.slane %v3849, 1
        %v3852 = vsel %vm1270, %v3847, %v3851
        %v3854 = vshrl.u32 %v3761, 16
        %v3856 = vshll.u32 %v3761, 16
        %v3858 = vrot.slane %v3856, 1
        %v3859 = vor.u32 %v3854, %v3858
        %v3861 = vshll.u32 %v3762, 16
        %v3863 = vrot.slane %v3861, 1
        %v3864 = vsel %vm1270, %v3859, %v3863
        %v3866 = vshrl.u32 %v3763, 16
        %v3868 = vshll.u32 %v3763, 16
        %v3870 = vrot.slane %v3868, 1
        %v3871 = vor.u32 %v3866, %v3870
        %v3873 = vshll.u32 %v3764, 16
        %v3875 = vrot.slane %v3873, 1
        %v3876 = vsel %vm1270, %v3871, %v3875
        %v3878 = vshrl.u32 %v3765, 16
        %v3880 = vshll.u32 %v3765, 16
        %v3882 = vrot.slane %v3880, 1
        %v3883 = vor.u32 %v3878, %v3882
        %v3885 = vshll.u32 %v3766, 16
        %v3887 = vrot.slane %v3885, 1
        %v3888 = vsel %vm1270, %v3883, %v3887
        %v3890 = vshrl.u32 %v3767, 16
        %v3892 = vshll.u32 %v3767, 16
        %v3894 = vrot.slane %v3892, 1
        %v3895 = vor.u32 %v3890, %v3894
        %v3897 = vshll.u32 %v3768, 16
        %v3899 = vrot.slane %v3897, 1
        %v3900 = vsel %vm1270, %v3895, %v3899
        %v3902 = vshrl.u32 %v3769, 16
        %v3904 = vshll.u32 %v3769, 16
        %v3906 = vrot.slane %v3904, 1
        %v3907 = vor.u32 %v3902, %v3906
        %v3909 = vshll.u32 %v3770, 16
        %v3911 = vrot.slane %v3909, 1
        %v3912 = vsel %vm1270, %v3907, %v3911
        %v3914 = vshrl.u32 %v3771, 16
        %v3916 = vshll.u32 %v3771, 16
        %v3918 = vrot.slane %v3916, 1
        %v3919 = vor.u32 %v3914, %v3918
        %v3921 = vshll.u32 %v3772, 16
        %v3923 = vrot.slane %v3921, 1
        %v3924 = vsel %vm1270, %v3919, %v3923
        %v3926 = vshrl.u32 %v3773, 16
        %v3928 = vshll.u32 %v3773, 16
        %v3930 = vrot.slane %v3928, 1
        %v3931 = vor.u32 %v3926, %v3930
        %v3933 = vshll.u32 %v3774, 16
        %v3935 = vrot.slane %v3933, 1
        %v3936 = vsel %vm1270, %v3931, %v3935
        %v3938 = vshrl.u32 %v3775, 16
        %v3940 = vshll.u32 %v3775, 16
        %v3942 = vrot.slane %v3940, 1
        %v3943 = vor.u32 %v3938, %v3942
        %v3945 = vshll.u32 %v3776, 16
        %v3947 = vrot.slane %v3945, 1
        %v3948 = vsel %vm1270, %v3943, %v3947
        %v3950 = vshrl.u32 %v3777, 16
        %v3952 = vshll.u32 %v3777, 16
        %v3954 = vrot.slane %v3952, 1
        %v3955 = vor.u32 %v3950, %v3954
        %v3957 = vshll.u32 %v3778, 16
        %v3959 = vrot.slane %v3957, 1
        %v3960 = vsel %vm1270, %v3955, %v3959
        %v3962 = vshrl.u32 %v3779, 16
        %v3964 = vshll.u32 %v3779, 16
        %v3966 = vrot.slane %v3964, 1
        %v3967 = vor.u32 %v3962, %v3966
        %v3969 = vshll.u32 %v3780, 16
        %v3971 = vrot.slane %v3969, 1
        %v3972 = vsel %vm1270, %v3967, %v3971
        %s3989 = scalar_lea.vmem %s284, 512 [#allocation6]
        %v3990 = vld [vmem:[%s3989] sm:$0xf]
        %v3991 = vld [vmem:[%s3989 + $0x4] sm:$0xf]
        %v3992 = vld [vmem:[%s3989 + $0x8] sm:$0xf]
        %v3993 = vld [vmem:[%s3989 + $0xc] sm:$0xf]
        %v3994 = vld [vmem:[%s3989 + $0x10] sm:$0xf]
        %v3995 = vld [vmem:[%s3989 + $0x14] sm:$0xf]
        %v3996 = vld [vmem:[%s3989 + $0x18] sm:$0xf]
        %v3997 = vld [vmem:[%s3989 + $0x1c] sm:$0xf]
        %v3998 = vld [vmem:[%s3989 + $0x20] sm:$0xf]
        %v3999 = vld [vmem:[%s3989 + $0x24] sm:$0xf]
        %v4000 = vld [vmem:[%s3989 + $0x28] sm:$0xf]
        %v4001 = vld [vmem:[%s3989 + $0x2c] sm:$0xf]
        %v4002 = vld [vmem:[%s3989 + $0x30] sm:$0xf]
        %v4003 = vld [vmem:[%s3989 + $0x34] sm:$0xf]
        %v4004 = vld [vmem:[%s3989 + $0x38] sm:$0xf]
        %v4005 = vld [vmem:[%s3989 + $0x3c] sm:$0xf]
        %v4022 = vunpack.c.l.b16 %v3990
        %v4023 = vunpack.c.l.b16 %v3991
        %v4024 = vunpack.c.l.b16 %v3992
        %v4025 = vunpack.c.l.b16 %v3993
        %v4026 = vunpack.c.l.b16 %v3994
        %v4027 = vunpack.c.l.b16 %v3995
        %v4028 = vunpack.c.l.b16 %v3996
        %v4029 = vunpack.c.l.b16 %v3997
        %v4030 = vunpack.c.l.b16 %v3998
        %v4031 = vunpack.c.l.b16 %v3999
        %v4032 = vunpack.c.l.b16 %v4000
        %v4033 = vunpack.c.l.b16 %v4001
        %v4034 = vunpack.c.l.b16 %v4002
        %v4035 = vunpack.c.l.b16 %v4003
        %v4036 = vunpack.c.l.b16 %v4004
        %v4037 = vunpack.c.l.b16 %v4005
        %v4038 = vpack.c.b16 %v4023, %v4022
        %v4039 = vpack.c.b16 %v4025, %v4024
        %v4040 = vpack.c.b16 %v4027, %v4026
        %v4041 = vpack.c.b16 %v4029, %v4028
        %v4042 = vpack.c.b16 %v4031, %v4030
        %v4043 = vpack.c.b16 %v4033, %v4032
        %v4044 = vpack.c.b16 %v4035, %v4034
        %v4045 = vpack.c.b16 %v4037, %v4036
        %4054 = vmatprep.subr.bf16.mxu0 0
        %4055 = vmatpush1.bf16.msra.mxu0 %v4038
        %4056 = vmatprep.subr.bf16.mxu0 0
        %4057 = vmatpush1.bf16.msra.mxu0 %v4039
        %4058 = vmatprep.subr.bf16.mxu0 0
        %4059 = vmatpush1.bf16.msra.mxu0 %v4040
        %4060 = vmatprep.subr.bf16.mxu0 0
        %4061 = vmatpush1.bf16.msra.mxu0 %v4041
        %4062 = vmatprep.subr.bf16.mxu0 0
        %4063 = vmatpush1.bf16.msra.mxu0 %v4042
        %4064 = vmatprep.subr.bf16.mxu0 0
        %4065 = vmatpush1.bf16.msra.mxu0 %v4043
        %4066 = vmatprep.subr.bf16.mxu0 0
        %4067 = vmatpush1.bf16.msra.mxu0 %v4044
        %4068 = vmatprep.subr.bf16.mxu0 0
        %4069 = vmatpush1.bf16.msra.mxu0 %v4045
        %4070 = vmatprep.subr.bf16.mxu0 0
        %4071 = vmatpush1.bf16.msra.mxu0 0
        %4072 = vmatprep.subr.bf16.mxu0 0
        %4073 = vmatpush1.bf16.msra.mxu0 0
        %4074 = vmatprep.subr.bf16.mxu0 0
        %4075 = vmatpush1.bf16.msra.mxu0 0
        %4076 = vmatprep.subr.bf16.mxu0 0
        %4077 = vmatpush1.bf16.msra.mxu0 0
        %4078 = vmatprep.subr.bf16.mxu0 0
        %4079 = vmatpush1.bf16.msra.mxu0 0
        %4080 = vmatprep.subr.bf16.mxu0 0
        %4081 = vmatpush1.bf16.msra.mxu0 0
        %4082 = vmatprep.subr.bf16.mxu0 0
        %4083 = vmatpush1.bf16.msra.mxu0 0
        %4084 = vmatprep.subr.bf16.mxu0 0
        %4085 = vmatpush1.bf16.msra.mxu0 0
        %4086 = vmatprep.mubr.bf16.mxu0 0
        %4087 = vmatmul.mubr.bf16.gmra.mrb[0].mxu0 %v3792
        %v4088 = vpop.f32.mrb[0].mxu0
        %v4089 = vadd.f32 0.0, %v4088
        %v4090 = vpop.f32.mrb[0].mxu0
        %v4091 = vpop.f32.mrb[0].mxu0
        %v4092 = vadd.f32 0.0, %v4091
        %v4093 = vpop.f32.mrb[0].mxu0
        %4094 = vmatprep.mubr.bf16.mxu0 0
        %4095 = vmatmul.mubr.bf16.gmra.mrb[0].mxu0 %v3804
        %v4096 = vpop.f32.mrb[0].mxu0
        %v4097 = vadd.f32 0.0, %v4096
        %v4098 = vpop.f32.mrb[0].mxu0
        %v4099 = vpop.f32.mrb[0].mxu0
        %v4100 = vadd.f32 0.0, %v4099
        %v4101 = vpop.f32.mrb[0].mxu0
        %4102 = vmatprep.mubr.bf16.mxu0 0
        %4103 = vmatmul.mubr.bf16.gmra.mrb[0].mxu0 %v3816
        %v4104 = vpop.f32.mrb[0].mxu0
        %v4105 = vadd.f32 0.0, %v4104
        %v4106 = vpop.f32.mrb[0].mxu0
        %v4107 = vpop.f32.mrb[0].mxu0
        %v4108 = vadd.f32 0.0, %v4107
        %v4109 = vpop.f32.mrb[0].mxu0
        %4110 = vmatprep.mubr.bf16.mxu0 0
        %4111 = vmatmul.mubr.bf16.gmra.mrb[0].mxu0 %v3828
        %v4112 = vpop.f32.mrb[0].mxu0
        %v4113 = vadd.f32 0.0, %v4112
        %v4114 = vpop.f32.mrb[0].mxu0
        %v4115 = vpop.f32.mrb[0].mxu0
        %v4116 = vadd.f32 0.0, %v4115
        %v4117 = vpop.f32.mrb[0].mxu0
        %4118 = vmatprep.mubr.bf16.mxu0 0
        %4119 = vmatmul.mubr.bf16.gmra.mrb[0].mxu0 %v3840
        %v4120 = vpop.f32.mrb[0].mxu0
        %v4121 = vadd.f32 0.0, %v4120
        %v4122 = vpop.f32.mrb[0].mxu0
        %v4123 = vpop.f32.mrb[0].mxu0
        %v4124 = vadd.f32 0.0, %v4123
        %v4125 = vpop.f32.mrb[0].mxu0
        %4126 = vmatprep.mubr.bf16.mxu0 0
        %4127 = vmatmul.mubr.bf16.gmra.mrb[0].mxu0 %v3852
        %v4128 = vpop.f32.mrb[0].mxu0
        %v4129 = vadd.f32 0.0, %v4128
        %v4130 = vpop.f32.mrb[0].mxu0
        %v4131 = vpop.f32.mrb[0].mxu0
        %v4132 = vadd.f32 0.0, %v4131
        %v4133 = vpop.f32.mrb[0].mxu0
        %4134 = vmatprep.mubr.bf16.mxu0 0
        %4135 = vmatmul.mubr.bf16.gmra.mrb[0].mxu0 %v3864
        %v4136 = vpop.f32.mrb[0].mxu0
        %v4137 = vadd.f32 0.0, %v4136
        %v4138 = vpop.f32.mrb[0].mxu0
        %v4139 = vpop.f32.mrb[0].mxu0
        %v4140 = vadd.f32 0.0, %v4139
        %v4141 = vpop.f32.mrb[0].mxu0
        %4142 = vmatprep.mubr.bf16.mxu0 0
        %4143 = vmatmul.mubr.bf16.gmra.mrb[0].mxu0 %v3876
        %v4144 = vpop.f32.mrb[0].mxu0
        %v4145 = vadd.f32 0.0, %v4144
        %v4146 = vpop.f32.mrb[0].mxu0
        %v4147 = vpop.f32.mrb[0].mxu0
        %v4148 = vadd.f32 0.0, %v4147
        %v4149 = vpop.f32.mrb[0].mxu0
        %4150 = vmatprep.mubr.bf16.mxu0 0
        %4151 = vmatmul.mubr.bf16.gmra.mrb[0].mxu0 %v3888
        %v4152 = vpop.f32.mrb[0].mxu0
        %v4153 = vadd.f32 0.0, %v4152
        %v4154 = vpop.f32.mrb[0].mxu0
        %v4155 = vpop.f32.mrb[0].mxu0
        %v4156 = vadd.f32 0.0, %v4155
        %v4157 = vpop.f32.mrb[0].mxu0
        %4158 = vmatprep.mubr.bf16.mxu0 0
        %4159 = vmatmul.mubr.bf16.gmra.mrb[0].mxu0 %v3900
        %v4160 = vpop.f32.mrb[0].mxu0
        %v4161 = vadd.f32 0.0, %v4160
        %v4162 = vpop.f32.mrb[0].mxu0
        %v4163 = vpop.f32.mrb[0].mxu0
        %v4164 = vadd.f32 0.0, %v4163
        %v4165 = vpop.f32.mrb[0].mxu0
        %4166 = vmatprep.mubr.bf16.mxu0 0
        %4167 = vmatmul.mubr.bf16.gmra.mrb[0].mxu0 %v3912
        %v4168 = vpop.f32.mrb[0].mxu0
        %v4169 = vadd.f32 0.0, %v4168
        %v4170 = vpop.f32.mrb[0].mxu0
        %v4171 = vpop.f32.mrb[0].mxu0
        %v4172 = vadd.f32 0.0, %v4171
        %v4173 = vpop.f32.mrb[0].mxu0
        %4174 = vmatprep.mubr.bf16.mxu0 0
        %4175 = vmatmul.mubr.bf16.gmra.mrb[0].mxu0 %v3924
        %v4176 = vpop.f32.mrb[0].mxu0
        %v4177 = vadd.f32 0.0, %v4176
        %v4178 = vpop.f32.mrb[0].mxu0
        %v4179 = vpop.f32.mrb[0].mxu0
        %v4180 = vadd.f32 0.0, %v4179
        %v4181 = vpop.f32.mrb[0].mxu0
        %4182 = vmatprep.mubr.bf16.mxu0 0
        %4183 = vmatmul.mubr.bf16.gmra.mrb[0].mxu0 %v3936
        %v4184 = vpop.f32.mrb[0].mxu0
        %v4185 = vadd.f32 0.0, %v4184
        %v4186 = vpop.f32.mrb[0].mxu0
        %v4187 = vpop.f32.mrb[0].mxu0
        %v4188 = vadd.f32 0.0, %v4187
        %v4189 = vpop.f32.mrb[0].mxu0
        %4190 = vmatprep.mubr.bf16.mxu0 0
        %4191 = vmatmul.mubr.bf16.gmra.mrb[0].mxu0 %v3948
        %v4192 = vpop.f32.mrb[0].mxu0
        %v4193 = vadd.f32 0.0, %v4192
        %v4194 = vpop.f32.mrb[0].mxu0
        %v4195 = vpop.f32.mrb[0].mxu0
        %v4196 = vadd.f32 0.0, %v4195
        %v4197 = vpop.f32.mrb[0].mxu0
        %4198 = vmatprep.mubr.bf16.mxu0 0
        %4199 = vmatmul.mubr.bf16.gmra.mrb[0].mxu0 %v3960
        %v4200 = vpop.f32.mrb[0].mxu0
        %v4201 = vadd.f32 0.0, %v4200
        %v4202 = vpop.f32.mrb[0].mxu0
        %v4203 = vpop.f32.mrb[0].mxu0
        %v4204 = vadd.f32 0.0, %v4203
        %v4205 = vpop.f32.mrb[0].mxu0
        %4206 = vmatprep.mubr.bf16.mxu0 0
        %4207 = vmatmul.mubr.bf16.gmra.mrb[0].mxu0 %v3972
        %v4208 = vpop.f32.mrb[0].mxu0
        %v4209 = vadd.f32 0.0, %v4208
        %v4210 = vpop.f32.mrb[0].mxu0
        %v4211 = vpop.f32.mrb[0].mxu0
        %v4212 = vadd.f32 0.0, %v4211
        %v4213 = vpop.f32.mrb[0].mxu0
        %4214 = vdwg.mxu0
        %v4215 = vadd.f32 %v3717, %v4089
        %v4216 = vadd.f32 %v3718, %v4092
        %v4217 = vadd.f32 %v3719, %v4097
        %v4218 = vadd.f32 %v3720, %v4100
        %v4219 = vadd.f32 %v3721, %v4105
        %v4220 = vadd.f32 %v3722, %v4108
        %v4221 = vadd.f32 %v3723, %v4113
        %v4222 = vadd.f32 %v3724, %v4116
        %v4223 = vadd.f32 %v3725, %v4121
        %v4224 = vadd.f32 %v3726, %v4124
        %v4225 = vadd.f32 %v3727, %v4129
        %v4226 = vadd.f32 %v3728, %v4132
        %v4227 = vadd.f32 %v3729, %v4137
        %v4228 = vadd.f32 %v3730, %v4140
        %v4229 = vadd.f32 %v3731, %v4145
        %v4230 = vadd.f32 %v3732, %v4148
        %v4231 = vadd.f32 %v3733, %v4153
        %v4232 = vadd.f32 %v3734, %v4156
        %v4233 = vadd.f32 %v3735, %v4161
        %v4234 = vadd.f32 %v3736, %v4164
        %v4235 = vadd.f32 %v3737, %v4169
        %v4236 = vadd.f32 %v3738, %v4172
        %v4237 = vadd.f32 %v3739, %v4177
        %v4238 = vadd.f32 %v3740, %v4180
        %v4239 = vadd.f32 %v3741, %v4185
        %v4240 = vadd.f32 %v3742, %v4188
        %v4241 = vadd.f32 %v3743, %v4193
        %v4242 = vadd.f32 %v3744, %v4196
        %v4243 = vadd.f32 %v3745, %v4201
        %v4244 = vadd.f32 %v3746, %v4204
        %v4245 = vadd.f32 %v3747, %v4209
        %v4246 = vadd.f32 %v3748, %v4212
        %v4247 = vld [vmem:[%s302] sm:$0x1]
        %v4248 = vld [vmem:[%s302 + $0x1] sm:$0x1]
        %v4249 = vld [vmem:[%s302 + $0x2] sm:$0x1]
        %v4250 = vld [vmem:[%s302 + $0x3] sm:$0x1]
        %v4251 = vlaneseq
        %v4252 = vshrl.u32 %v4251, 7
        %v4253 = vsub.s32 0, %v4252
        %v4254 = vrot.slane %v4247, %v4253
        %v4255 = vadd.f32 %v4215, %v4254
        %v4256 = vadd.f32 %v4216, %v4254
        %v4257 = vadd.f32 %v4217, %v4254
        %v4258 = vadd.f32 %v4218, %v4254
        %v4259 = vadd.f32 %v4219, %v4254
        %v4260 = vadd.f32 %v4220, %v4254
        %v4261 = vadd.f32 %v4221, %v4254
        %v4262 = vadd.f32 %v4222, %v4254
        %v4263 = vadd.f32 %v4223, %v4254
        %v4264 = vadd.f32 %v4224, %v4254
        %v4265 = vadd.f32 %v4225, %v4254
        %v4266 = vadd.f32 %v4226, %v4254
        %v4267 = vadd.f32 %v4227, %v4254
        %v4268 = vadd.f32 %v4228, %v4254
        %v4269 = vadd.f32 %v4229, %v4254
        %v4270 = vadd.f32 %v4230, %v4254
        %v4271 = vadd.f32 %v4231, %v4254
        %v4272 = vadd.f32 %v4232, %v4254
        %v4273 = vadd.f32 %v4233, %v4254
        %v4274 = vadd.f32 %v4234, %v4254
        %v4275 = vadd.f32 %v4235, %v4254
        %v4276 = vadd.f32 %v4236, %v4254
        %v4277 = vadd.f32 %v4237, %v4254
        %v4278 = vadd.f32 %v4238, %v4254
        %v4279 = vadd.f32 %v4239, %v4254
        %v4280 = vadd.f32 %v4240, %v4254
        %v4281 = vadd.f32 %v4241, %v4254
        %v4282 = vadd.f32 %v4242, %v4254
        %v4283 = vadd.f32 %v4243, %v4254
        %v4284 = vadd.f32 %v4244, %v4254
        %v4285 = vadd.f32 %v4245, %v4254
        %v4286 = vadd.f32 %v4246, %v4254
        %v4287 = vmax.f32 %v4255, 0.0
        %v4288 = vmax.f32 %v4256, 0.0
        %v4289 = vmax.f32 %v4257, 0.0
        %v4290 = vmax.f32 %v4258, 0.0
        %v4291 = vmax.f32 %v4259, 0.0
        %v4292 = vmax.f32 %v4260, 0.0
        %v4293 = vmax.f32 %v4261, 0.0
        %v4294 = vmax.f32 %v4262, 0.0
        %v4295 = vmax.f32 %v4263, 0.0
        %v4296 = vmax.f32 %v4264, 0.0
        %v4297 = vmax.f32 %v4265, 0.0
        %v4298 = vmax.f32 %v4266, 0.0
        %v4299 = vmax.f32 %v4267, 0.0
        %v4300 = vmax.f32 %v4268, 0.0
        %v4301 = vmax.f32 %v4269, 0.0
        %v4302 = vmax.f32 %v4270, 0.0
        %v4303 = vmax.f32 %v4271, 0.0
        %v4304 = vmax.f32 %v4272, 0.0
        %v4305 = vmax.f32 %v4273, 0.0
        %v4306 = vmax.f32 %v4274, 0.0
        %v4307 = vmax.f32 %v4275, 0.0
        %v4308 = vmax.f32 %v4276, 0.0
        %v4309 = vmax.f32 %v4277, 0.0
        %v4310 = vmax.f32 %v4278, 0.0
        %v4311 = vmax.f32 %v4279, 0.0
        %v4312 = vmax.f32 %v4280, 0.0
        %v4313 = vmax.f32 %v4281, 0.0
        %v4314 = vmax.f32 %v4282, 0.0
        %v4315 = vmax.f32 %v4283, 0.0
        %v4316 = vmax.f32 %v4284, 0.0
        %v4317 = vmax.f32 %v4285, 0.0
        %v4318 = vmax.f32 %v4286, 0.0
        %v4319 = vlaneseq
        %v4320 = vshrl.u32 %v4319, 7
        %v4321 = vsub.s32 0, %v4320
        %v4322 = vrot.slane %v4248, %v4321
        %v4323 = vmul.f32 %v4287, %v4322
        %v4324 = vmul.f32 %v4288, %v4322
        %v4325 = vmul.f32 %v4289, %v4322
        %v4326 = vmul.f32 %v4290, %v4322
        %v4327 = vmul.f32 %v4291, %v4322
        %v4328 = vmul.f32 %v4292, %v4322
        %v4329 = vmul.f32 %v4293, %v4322
        %v4330 = vmul.f32 %v4294, %v4322
        %v4331 = vmul.f32 %v4295, %v4322
        %v4332 = vmul.f32 %v4296, %v4322
        %v4333 = vmul.f32 %v4297, %v4322
        %v4334 = vmul.f32 %v4298, %v4322
        %v4335 = vmul.f32 %v4299, %v4322
        %v4336 = vmul.f32 %v4300, %v4322
        %v4337 = vmul.f32 %v4301, %v4322
        %v4338 = vmul.f32 %v4302, %v4322
        %v4339 = vmul.f32 %v4303, %v4322
        %v4340 = vmul.f32 %v4304, %v4322
        %v4341 = vmul.f32 %v4305, %v4322
        %v4342 = vmul.f32 %v4306, %v4322
        %v4343 = vmul.f32 %v4307, %v4322
        %v4344 = vmul.f32 %v4308, %v4322
        %v4345 = vmul.f32 %v4309, %v4322
        %v4346 = vmul.f32 %v4310, %v4322
        %v4347 = vmul.f32 %v4311, %v4322
        %v4348 = vmul.f32 %v4312, %v4322
        %v4349 = vmul.f32 %v4313, %v4322
        %v4350 = vmul.f32 %v4314, %v4322
        %v4351 = vmul.f32 %v4315, %v4322
        %v4352 = vmul.f32 %v4316, %v4322
        %v4353 = vmul.f32 %v4317, %v4322
        %v4354 = vmul.f32 %v4318, %v4322
        %v4355 = vlaneseq
        %v4356 = vshrl.u32 %v4355, 7
        %v4357 = vsub.s32 0, %v4356
        %v4358 = vrot.slane %v4249, %v4357
        %v4359 = vadd.f32 %v4323, %v4358
        %v4360 = vadd.f32 %v4324, %v4358
        %v4361 = vadd.f32 %v4325, %v4358
        %v4362 = vadd.f32 %v4326, %v4358
        %v4363 = vadd.f32 %v4327, %v4358
        %v4364 = vadd.f32 %v4328, %v4358
        %v4365 = vadd.f32 %v4329, %v4358
        %v4366 = vadd.f32 %v4330, %v4358
        %v4367 = vadd.f32 %v4331, %v4358
        %v4368 = vadd.f32 %v4332, %v4358
        %v4369 = vadd.f32 %v4333, %v4358
        %v4370 = vadd.f32 %v4334, %v4358
        %v4371 = vadd.f32 %v4335, %v4358
        %v4372 = vadd.f32 %v4336, %v4358
        %v4373 = vadd.f32 %v4337, %v4358
        %v4374 = vadd.f32 %v4338, %v4358
        %v4375 = vadd.f32 %v4339, %v4358
        %v4376 = vadd.f32 %v4340, %v4358
        %v4377 = vadd.f32 %v4341, %v4358
        %v4378 = vadd.f32 %v4342, %v4358
        %v4379 = vadd.f32 %v4343, %v4358
        %v4380 = vadd.f32 %v4344, %v4358
        %v4381 = vadd.f32 %v4345, %v4358
        %v4382 = vadd.f32 %v4346, %v4358
        %v4383 = vadd.f32 %v4347, %v4358
        %v4384 = vadd.f32 %v4348, %v4358
        %v4385 = vadd.f32 %v4349, %v4358
        %v4386 = vadd.f32 %v4350, %v4358
        %v4387 = vadd.f32 %v4351, %v4358
        %v4388 = vadd.f32 %v4352, %v4358
        %v4389 = vadd.f32 %v4353, %v4358
        %v4390 = vadd.f32 %v4354, %v4358
        %v4391 = vmax.f32 %v4359, 0.0
        %v4392 = vmax.f32 %v4360, 0.0
        %v4393 = vmax.f32 %v4361, 0.0
        %v4394 = vmax.f32 %v4362, 0.0
        %v4395 = vmax.f32 %v4363, 0.0
        %v4396 = vmax.f32 %v4364, 0.0
        %v4397 = vmax.f32 %v4365, 0.0
        %v4398 = vmax.f32 %v4366, 0.0
        %v4399 = vmax.f32 %v4367, 0.0
        %v4400 = vmax.f32 %v4368, 0.0
        %v4401 = vmax.f32 %v4369, 0.0
        %v4402 = vmax.f32 %v4370, 0.0
        %v4403 = vmax.f32 %v4371, 0.0
        %v4404 = vmax.f32 %v4372, 0.0
        %v4405 = vmax.f32 %v4373, 0.0
        %v4406 = vmax.f32 %v4374, 0.0
        %v4407 = vmax.f32 %v4375, 0.0
        %v4408 = vmax.f32 %v4376, 0.0
        %v4409 = vmax.f32 %v4377, 0.0
        %v4410 = vmax.f32 %v4378, 0.0
        %v4411 = vmax.f32 %v4379, 0.0
        %v4412 = vmax.f32 %v4380, 0.0
        %v4413 = vmax.f32 %v4381, 0.0
        %v4414 = vmax.f32 %v4382, 0.0
        %v4415 = vmax.f32 %v4383, 0.0
        %v4416 = vmax.f32 %v4384, 0.0
        %v4417 = vmax.f32 %v4385, 0.0
        %v4418 = vmax.f32 %v4386, 0.0
        %v4419 = vmax.f32 %v4387, 0.0
        %v4420 = vmax.f32 %v4388, 0.0
        %v4421 = vmax.f32 %v4389, 0.0
        %v4422 = vmax.f32 %v4390, 0.0
        %v4423 = vld [vmem:[%s293] sm:$0xf]
        %v4424 = vld [vmem:[%s293 + $0x4] sm:$0xf]
        %v4425 = vld [vmem:[%s293 + $0x8] sm:$0xf]
        %v4426 = vld [vmem:[%s293 + $0xc] sm:$0xf]
        %v4427 = vld [vmem:[%s293 + $0x10] sm:$0xf]
        %v4428 = vld [vmem:[%s293 + $0x14] sm:$0xf]
        %v4429 = vld [vmem:[%s293 + $0x18] sm:$0xf]
        %v4430 = vld [vmem:[%s293 + $0x1c] sm:$0xf]
        %v4431 = vld [vmem:[%s293 + $0x20] sm:$0xf]
        %v4432 = vld [vmem:[%s293 + $0x24] sm:$0xf]
        %v4433 = vld [vmem:[%s293 + $0x28] sm:$0xf]
        %v4434 = vld [vmem:[%s293 + $0x2c] sm:$0xf]
        %v4435 = vld [vmem:[%s293 + $0x30] sm:$0xf]
        %v4436 = vld [vmem:[%s293 + $0x34] sm:$0xf]
        %v4437 = vld [vmem:[%s293 + $0x38] sm:$0xf]
        %v4438 = vld [vmem:[%s293 + $0x3c] sm:$0xf]
        %v4455 = vunpack.c.l.b16 %v4423
        %v4456 = vunpack.c.l.b16 %v4424
        %v4457 = vunpack.c.l.b16 %v4425
        %v4458 = vunpack.c.l.b16 %v4426
        %v4459 = vunpack.c.l.b16 %v4427
        %v4460 = vunpack.c.l.b16 %v4428
        %v4461 = vunpack.c.l.b16 %v4429
        %v4462 = vunpack.c.l.b16 %v4430
        %v4463 = vunpack.c.l.b16 %v4431
        %v4464 = vunpack.c.l.b16 %v4432
        %v4465 = vunpack.c.l.b16 %v4433
        %v4466 = vunpack.c.l.b16 %v4434
        %v4467 = vunpack.c.l.b16 %v4435
        %v4468 = vunpack.c.l.b16 %v4436
        %v4469 = vunpack.c.l.b16 %v4437
        %v4470 = vunpack.c.l.b16 %v4438
        %v4471 = vpack.c.b16 %v4456, %v4455
        %v4472 = vpack.c.b16 %v4458, %v4457
        %v4473 = vpack.c.b16 %v4460, %v4459
        %v4474 = vpack.c.b16 %v4462, %v4461
        %v4475 = vpack.c.b16 %v4464, %v4463
        %v4476 = vpack.c.b16 %v4466, %v4465
        %v4477 = vpack.c.b16 %v4468, %v4467
        %v4478 = vpack.c.b16 %v4470, %v4469
        %4487 = vmatprep.subr.bf16.mxu0 0
        %4488 = vmatpush1.bf16.msra.mxu0 %v4471
        %4489 = vmatprep.subr.bf16.mxu0 0
        %4490 = vmatpush1.bf16.msra.mxu0 %v4472
        %4491 = vmatprep.subr.bf16.mxu0 0
        %4492 = vmatpush1.bf16.msra.mxu0 %v4473
        %4493 = vmatprep.subr.bf16.mxu0 0
        %4494 = vmatpush1.bf16.msra.mxu0 %v4474
        %4495 = vmatprep.subr.bf16.mxu0 0
        %4496 = vmatpush1.bf16.msra.mxu0 %v4475
        %4497 = vmatprep.subr.bf16.mxu0 0
        %4498 = vmatpush1.bf16.msra.mxu0 %v4476
        %4499 = vmatprep.subr.bf16.mxu0 0
        %4500 = vmatpush1.bf16.msra.mxu0 %v4477
        %4501 = vmatprep.subr.bf16.mxu0 0
        %4502 = vmatpush1.bf16.msra.mxu0 %v4478
        %4503 = vmatprep.subr.bf16.mxu0 0
        %4504 = vmatpush1.bf16.msra.mxu0 0
        %4505 = vmatprep.subr.bf16.mxu0 0
        %4506 = vmatpush1.bf16.msra.mxu0 0
        %4507 = vmatprep.subr.bf16.mxu0 0
        %4508 = vmatpush1.bf16.msra.mxu0 0
        %4509 = vmatprep.subr.bf16.mxu0 0
        %4510 = vmatpush1.bf16.msra.mxu0 0
        %4511 = vmatprep.subr.bf16.mxu0 0
        %4512 = vmatpush1.bf16.msra.mxu0 0
        %4513 = vmatprep.subr.bf16.mxu0 0
        %4514 = vmatpush1.bf16.msra.mxu0 0
        %4515 = vmatprep.subr.bf16.mxu0 0
        %4516 = vmatpush1.bf16.msra.mxu0 0
        %4517 = vmatprep.subr.bf16.mxu0 0
        %4518 = vmatpush1.bf16.msra.mxu0 0
        %4519 = vmatprep.mubr.bf16.mxu0 0
        %4520 = vmatmul.mubr.bf16.gmra.mrb[0].mxu0 %v1739
        %v4521 = vpop.f32.mrb[0].mxu0
        %v4522 = vadd.f32 0.0, %v4521
        %v4523 = vpop.f32.mrb[0].mxu0
        %v4524 = vpop.f32.mrb[0].mxu0
        %v4525 = vadd.f32 0.0, %v4524
        %v4526 = vpop.f32.mrb[0].mxu0
        %4527 = vmatprep.mubr.bf16.mxu0 0
        %4528 = vmatmul.mubr.bf16.gmra.mrb[0].mxu0 %v1741
        %v4529 = vpop.f32.mrb[0].mxu0
        %v4530 = vadd.f32 0.0, %v4529
        %v4531 = vpop.f32.mrb[0].mxu0
        %v4532 = vpop.f32.mrb[0].mxu0
        %v4533 = vadd.f32 0.0, %v4532
        %v4534 = vpop.f32.mrb[0].mxu0
        %4535 = vmatprep.mubr.bf16.mxu0 0
        %4536 = vmatmul.mubr.bf16.gmra.mrb[0].mxu0 %v1743
        %v4537 = vpop.f32.mrb[0].mxu0
        %v4538 = vadd.f32 0.0, %v4537
        %v4539 = vpop.f32.mrb[0].mxu0
        %v4540 = vpop.f32.mrb[0].mxu0
        %v4541 = vadd.f32 0.0, %v4540
        %v4542 = vpop.f32.mrb[0].mxu0
        %4543 = vmatprep.mubr.bf16.mxu0 0
        %4544 = vmatmul.mubr.bf16.gmra.mrb[0].mxu0 %v1745
        %v4545 = vpop.f32.mrb[0].mxu0
        %v4546 = vadd.f32 0.0, %v4545
        %v4547 = vpop.f32.mrb[0].mxu0
        %v4548 = vpop.f32.mrb[0].mxu0
        %v4549 = vadd.f32 0.0, %v4548
        %v4550 = vpop.f32.mrb[0].mxu0
        %4551 = vmatprep.mubr.bf16.mxu0 0
        %4552 = vmatmul.mubr.bf16.gmra.mrb[0].mxu0 %v1747
        %v4553 = vpop.f32.mrb[0].mxu0
        %v4554 = vadd.f32 0.0, %v4553
        %v4555 = vpop.f32.mrb[0].mxu0
        %v4556 = vpop.f32.mrb[0].mxu0
        %v4557 = vadd.f32 0.0, %v4556
        %v4558 = vpop.f32.mrb[0].mxu0
        %4559 = vmatprep.mubr.bf16.mxu0 0
        %4560 = vmatmul.mubr.bf16.gmra.mrb[0].mxu0 %v1749
        %v4561 = vpop.f32.mrb[0].mxu0
        %v4562 = vadd.f32 0.0, %v4561
        %v4563 = vpop.f32.mrb[0].mxu0
        %v4564 = vpop.f32.mrb[0].mxu0
        %v4565 = vadd.f32 0.0, %v4564
        %v4566 = vpop.f32.mrb[0].mxu0
        %4567 = vmatprep.mubr.bf16.mxu0 0
        %4568 = vmatmul.mubr.bf16.gmra.mrb[0].mxu0 %v1751
        %v4569 = vpop.f32.mrb[0].mxu0
        %v4570 = vadd.f32 0.0, %v4569
        %v4571 = vpop.f32.mrb[0].mxu0
        %v4572 = vpop.f32.mrb[0].mxu0
        %v4573 = vadd.f32 0.0, %v4572
        %v4574 = vpop.f32.mrb[0].mxu0
        %4575 = vmatprep.mubr.bf16.mxu0 0
        %4576 = vmatmul.mubr.bf16.gmra.mrb[0].mxu0 %v1753
        %v4577 = vpop.f32.mrb[0].mxu0
        %v4578 = vadd.f32 0.0, %v4577
        %v4579 = vpop.f32.mrb[0].mxu0
        %v4580 = vpop.f32.mrb[0].mxu0
        %v4581 = vadd.f32 0.0, %v4580
        %v4582 = vpop.f32.mrb[0].mxu0
        %4583 = vmatprep.mubr.bf16.mxu0 0
        %4584 = vmatmul.mubr.bf16.gmra.mrb[0].mxu0 %v1755
        %v4585 = vpop.f32.mrb[0].mxu0
        %v4586 = vadd.f32 0.0, %v4585
        %v4587 = vpop.f32.mrb[0].mxu0
        %v4588 = vpop.f32.mrb[0].mxu0
        %v4589 = vadd.f32 0.0, %v4588
        %v4590 = vpop.f32.mrb[0].mxu0
        %4591 = vmatprep.mubr.bf16.mxu0 0
        %4592 = vmatmul.mubr.bf16.gmra.mrb[0].mxu0 %v1757
        %v4593 = vpop.f32.mrb[0].mxu0
        %v4594 = vadd.f32 0.0, %v4593
        %v4595 = vpop.f32.mrb[0].mxu0
        %v4596 = vpop.f32.mrb[0].mxu0
        %v4597 = vadd.f32 0.0, %v4596
        %v4598 = vpop.f32.mrb[0].mxu0
        %4599 = vmatprep.mubr.bf16.mxu0 0
        %4600 = vmatmul.mubr.bf16.gmra.mrb[0].mxu0 %v1759
        %v4601 = vpop.f32.mrb[0].mxu0
        %v4602 = vadd.f32 0.0, %v4601
        %v4603 = vpop.f32.mrb[0].mxu0
        %v4604 = vpop.f32.mrb[0].mxu0
        %v4605 = vadd.f32 0.0, %v4604
        %v4606 = vpop.f32.mrb[0].mxu0
        %4607 = vmatprep.mubr.bf16.mxu0 0
        %4608 = vmatmul.mubr.bf16.gmra.mrb[0].mxu0 %v1761
        %v4609 = vpop.f32.mrb[0].mxu0
        %v4610 = vadd.f32 0.0, %v4609
        %v4611 = vpop.f32.mrb[0].mxu0
        %v4612 = vpop.f32.mrb[0].mxu0
        %v4613 = vadd.f32 0.0, %v4612
        %v4614 = vpop.f32.mrb[0].mxu0
        %4615 = vmatprep.mubr.bf16.mxu0 0
        %4616 = vmatmul.mubr.bf16.gmra.mrb[0].mxu0 %v1763
        %v4617 = vpop.f32.mrb[0].mxu0
        %v4618 = vadd.f32 0.0, %v4617
        %v4619 = vpop.f32.mrb[0].mxu0
        %v4620 = vpop.f32.mrb[0].mxu0
        %v4621 = vadd.f32 0.0, %v4620
        %v4622 = vpop.f32.mrb[0].mxu0
        %4623 = vmatprep.mubr.bf16.mxu0 0
        %4624 = vmatmul.mubr.bf16.gmra.mrb[0].mxu0 %v1765
        %v4625 = vpop.f32.mrb[0].mxu0
        %v4626 = vadd.f32 0.0, %v4625
        %v4627 = vpop.f32.mrb[0].mxu0
        %v4628 = vpop.f32.mrb[0].mxu0
        %v4629 = vadd.f32 0.0, %v4628
        %v4630 = vpop.f32.mrb[0].mxu0
        %4631 = vmatprep.mubr.bf16.mxu0 0
        %4632 = vmatmul.mubr.bf16.gmra.mrb[0].mxu0 %v1767
        %v4633 = vpop.f32.mrb[0].mxu0
        %v4634 = vadd.f32 0.0, %v4633
        %v4635 = vpop.f32.mrb[0].mxu0
        %v4636 = vpop.f32.mrb[0].mxu0
        %v4637 = vadd.f32 0.0, %v4636
        %v4638 = vpop.f32.mrb[0].mxu0
        %4639 = vmatprep.mubr.bf16.mxu0 0
        %4640 = vmatmul.mubr.bf16.gmra.mrb[0].mxu0 %v1769
        %v4641 = vpop.f32.mrb[0].mxu0
        %v4642 = vadd.f32 0.0, %v4641
        %v4643 = vpop.f32.mrb[0].mxu0
        %v4644 = vpop.f32.mrb[0].mxu0
        %v4645 = vadd.f32 0.0, %v4644
        %v4646 = vpop.f32.mrb[0].mxu0
        %4647 = vdwg.mxu0
        %v4648 = vmul.f32 %v4391, %v4322
        %v4649 = vmul.f32 %v4392, %v4322
        %v4650 = vmul.f32 %v4393, %v4322
        %v4651 = vmul.f32 %v4394, %v4322
        %v4652 = vmul.f32 %v4395, %v4322
        %v4653 = vmul.f32 %v4396, %v4322
        %v4654 = vmul.f32 %v4397, %v4322
        %v4655 = vmul.f32 %v4398, %v4322
        %v4656 = vmul.f32 %v4399, %v4322
        %v4657 = vmul.f32 %v4400, %v4322
        %v4658 = vmul.f32 %v4401, %v4322
        %v4659 = vmul.f32 %v4402, %v4322
        %v4660 = vmul.f32 %v4403, %v4322
        %v4661 = vmul.f32 %v4404, %v4322
        %v4662 = vmul.f32 %v4405, %v4322
        %v4663 = vmul.f32 %v4406, %v4322
        %v4664 = vmul.f32 %v4407, %v4322
        %v4665 = vmul.f32 %v4408, %v4322
        %v4666 = vmul.f32 %v4409, %v4322
        %v4667 = vmul.f32 %v4410, %v4322
        %v4668 = vmul.f32 %v4411, %v4322
        %v4669 = vmul.f32 %v4412, %v4322
        %v4670 = vmul.f32 %v4413, %v4322
        %v4671 = vmul.f32 %v4414, %v4322
        %v4672 = vmul.f32 %v4415, %v4322
        %v4673 = vmul.f32 %v4416, %v4322
        %v4674 = vmul.f32 %v4417, %v4322
        %v4675 = vmul.f32 %v4418, %v4322
        %v4676 = vmul.f32 %v4419, %v4322
        %v4677 = vmul.f32 %v4420, %v4322
        %v4678 = vmul.f32 %v4421, %v4322
        %v4679 = vmul.f32 %v4422, %v4322
        %v4680 = vadd.f32 %v4648, %v4522
        %v4681 = vadd.f32 %v4649, %v4525
        %v4682 = vadd.f32 %v4650, %v4530
        %v4683 = vadd.f32 %v4651, %v4533
        %v4684 = vadd.f32 %v4652, %v4538
        %v4685 = vadd.f32 %v4653, %v4541
        %v4686 = vadd.f32 %v4654, %v4546
        %v4687 = vadd.f32 %v4655, %v4549
        %v4688 = vadd.f32 %v4656, %v4554
        %v4689 = vadd.f32 %v4657, %v4557
        %v4690 = vadd.f32 %v4658, %v4562
        %v4691 = vadd.f32 %v4659, %v4565
        %v4692 = vadd.f32 %v4660, %v4570
        %v4693 = vadd.f32 %v4661, %v4573
        %v4694 = vadd.f32 %v4662, %v4578
        %v4695 = vadd.f32 %v4663, %v4581
        %v4696 = vadd.f32 %v4664, %v4586
        %v4697 = vadd.f32 %v4665, %v4589
        %v4698 = vadd.f32 %v4666, %v4594
        %v4699 = vadd.f32 %v4667, %v4597
        %v4700 = vadd.f32 %v4668, %v4602
        %v4701 = vadd.f32 %v4669, %v4605
        %v4702 = vadd.f32 %v4670, %v4610
        %v4703 = vadd.f32 %v4671, %v4613
        %v4704 = vadd.f32 %v4672, %v4618
        %v4705 = vadd.f32 %v4673, %v4621
        %v4706 = vadd.f32 %v4674, %v4626
        %v4707 = vadd.f32 %v4675, %v4629
        %v4708 = vadd.f32 %v4676, %v4634
        %v4709 = vadd.f32 %v4677, %v4637
        %v4710 = vadd.f32 %v4678, %v4642
        %v4711 = vadd.f32 %v4679, %v4645
        %v4712 = vlaneseq
        %v4713 = vshrl.u32 %v4712, 7
        %v4714 = vsub.s32 0, %v4713
        %v4715 = vrot.slane %v4250, %v4714
        %v4716 = vadd.f32 %v4680, %v4715
        %v4717 = vadd.f32 %v4681, %v4715
        %v4718 = vadd.f32 %v4682, %v4715
        %v4719 = vadd.f32 %v4683, %v4715
        %v4720 = vadd.f32 %v4684, %v4715
        %v4721 = vadd.f32 %v4685, %v4715
        %v4722 = vadd.f32 %v4686, %v4715
        %v4723 = vadd.f32 %v4687, %v4715
        %v4724 = vadd.f32 %v4688, %v4715
        %v4725 = vadd.f32 %v4689, %v4715
        %v4726 = vadd.f32 %v4690, %v4715
        %v4727 = vadd.f32 %v4691, %v4715
        %v4728 = vadd.f32 %v4692, %v4715
        %v4729 = vadd.f32 %v4693, %v4715
        %v4730 = vadd.f32 %v4694, %v4715
        %v4731 = vadd.f32 %v4695, %v4715
        %v4732 = vadd.f32 %v4696, %v4715
        %v4733 = vadd.f32 %v4697, %v4715
        %v4734 = vadd.f32 %v4698, %v4715
        %v4735 = vadd.f32 %v4699, %v4715
        %v4736 = vadd.f32 %v4700, %v4715
        %v4737 = vadd.f32 %v4701, %v4715
        %v4738 = vadd.f32 %v4702, %v4715
        %v4739 = vadd.f32 %v4703, %v4715
        %v4740 = vadd.f32 %v4704, %v4715
        %v4741 = vadd.f32 %v4705, %v4715
        %v4742 = vadd.f32 %v4706, %v4715
        %v4743 = vadd.f32 %v4707, %v4715
        %v4744 = vadd.f32 %v4708, %v4715
        %v4745 = vadd.f32 %v4709, %v4715
        %v4746 = vadd.f32 %v4710, %v4715
        %v4747 = vadd.f32 %v4711, %v4715
        %v4748 = vmax.f32 %v4716, 0.0
        %v4749 = vmax.f32 %v4717, 0.0
        %v4750 = vmax.f32 %v4718, 0.0
        %v4751 = vmax.f32 %v4719, 0.0
        %v4752 = vmax.f32 %v4720, 0.0
        %v4753 = vmax.f32 %v4721, 0.0
        %v4754 = vmax.f32 %v4722, 0.0
        %v4755 = vmax.f32 %v4723, 0.0
        %v4756 = vmax.f32 %v4724, 0.0
        %v4757 = vmax.f32 %v4725, 0.0
        %v4758 = vmax.f32 %v4726, 0.0
        %v4759 = vmax.f32 %v4727, 0.0
        %v4760 = vmax.f32 %v4728, 0.0
        %v4761 = vmax.f32 %v4729, 0.0
        %v4762 = vmax.f32 %v4730, 0.0
        %v4763 = vmax.f32 %v4731, 0.0
        %v4764 = vmax.f32 %v4732, 0.0
        %v4765 = vmax.f32 %v4733, 0.0
        %v4766 = vmax.f32 %v4734, 0.0
        %v4767 = vmax.f32 %v4735, 0.0
        %v4768 = vmax.f32 %v4736, 0.0
        %v4769 = vmax.f32 %v4737, 0.0
        %v4770 = vmax.f32 %v4738, 0.0
        %v4771 = vmax.f32 %v4739, 0.0
        %v4772 = vmax.f32 %v4740, 0.0
        %v4773 = vmax.f32 %v4741, 0.0
        %v4774 = vmax.f32 %v4742, 0.0
        %v4775 = vmax.f32 %v4743, 0.0
        %v4776 = vmax.f32 %v4744, 0.0
        %v4777 = vmax.f32 %v4745, 0.0
        %v4778 = vmax.f32 %v4746, 0.0
        %v4779 = vmax.f32 %v4747, 0.0
        %p4780 = scmp.lt.s32.totalorder %s32, 2
        // Predicated region
        $region57: #{tpu_custom_call.1} parent=35 // pred_check
          %p4781 = pneg %p4780
        $region58: #{tpu_custom_call.1} parent=35 // pred_check_branch
          %4783 = sbr.rel (%p4781) target = $region60
        $region59: #{tpu_custom_call.1} parent=35 // pred_region
          %v4784 = vpack.c.bf16 %v4749, %v4748
          %v4785 = vpack.c.bf16 %v4751, %v4750
          %v4786 = vpack.c.bf16 %v4753, %v4752
          %v4787 = vpack.c.bf16 %v4755, %v4754
          %v4788 = vpack.c.bf16 %v4757, %v4756
          %v4789 = vpack.c.bf16 %v4759, %v4758
          %v4790 = vpack.c.bf16 %v4761, %v4760
          %v4791 = vpack.c.bf16 %v4763, %v4762
          %v4792 = vpack.c.bf16 %v4765, %v4764
          %v4793 = vpack.c.bf16 %v4767, %v4766
          %v4794 = vpack.c.bf16 %v4769, %v4768
          %v4795 = vpack.c.bf16 %v4771, %v4770
          %v4796 = vpack.c.bf16 %v4773, %v4772
          %v4797 = vpack.c.bf16 %v4775, %v4774
          %v4798 = vpack.c.bf16 %v4777, %v4776
          %v4799 = vpack.c.bf16 %v4779, %v4778
          %4800 = vst [vmem:[%s1737 + $0x8] sm:$0xff] %v4784
          %4801 = vst [vmem:[%s1737 + $0x20] sm:$0xff] %v4785
          %4802 = vst [vmem:[%s1737 + $0x38] sm:$0xff] %v4786
          %4803 = vst [vmem:[%s1737 + $0x50] sm:$0xff] %v4787
          %4804 = vst [vmem:[%s1737 + $0x68] sm:$0xff] %v4788
          %4805 = vst [vmem:[%s1737 + $0x80] sm:$0xff] %v4789
          %4806 = vst [vmem:[%s1737 + $0x98] sm:$0xff] %v4790
          %4807 = vst [vmem:[%s1737 + $0xb0] sm:$0xff] %v4791
          %4808 = vst [vmem:[%s1737 + $0xc8] sm:$0xff] %v4792
          %4809 = vst [vmem:[%s1737 + $0xe0] sm:$0xff] %v4793
          %4810 = vst [vmem:[%s1737 + $0xf8] sm:$0xff] %v4794
          %4811 = vst [vmem:[%s1737 + $0x110] sm:$0xff] %v4795
          %4812 = vst [vmem:[%s1737 + $0x128] sm:$0xff] %v4796
          %4813 = vst [vmem:[%s1737 + $0x140] sm:$0xff] %v4797
          %4814 = vst [vmem:[%s1737 + $0x158] sm:$0xff] %v4798
          %4815 = vst [vmem:[%s1737 + $0x170] sm:$0xff] %v4799
        $region60: #{tpu_custom_call.1} parent=35 // pred_fallthru
          _
        %p4816 = scmp.eq.s32.totalorder %s32, 2
        // Predicated region
        $region61: #{tpu_custom_call.1} parent=35 // pred_check
          %p4817 = pneg %p4816
        $region62: #{tpu_custom_call.1} parent=35 // pred_check_branch
          %4819 = sbr.rel (%p4817) target = $region64
        $region63: #{tpu_custom_call.1} parent=35 // pred_region
          %v4820 = vpack.c.bf16 %v4749, %v4748
          %v4821 = vpack.c.bf16 %v4751, %v4750
          %v4822 = vpack.c.bf16 %v4753, %v4752
          %v4823 = vpack.c.bf16 %v4755, %v4754
          %v4824 = vpack.c.bf16 %v4757, %v4756
          %v4825 = vpack.c.bf16 %v4759, %v4758
          %v4826 = vpack.c.bf16 %v4761, %v4760
          %v4827 = vpack.c.bf16 %v4763, %v4762
          %v4828 = vpack.c.bf16 %v4765, %v4764
          %v4829 = vpack.c.bf16 %v4767, %v4766
          %v4830 = vpack.c.bf16 %v4769, %v4768
          %v4831 = vpack.c.bf16 %v4771, %v4770
          %v4832 = vpack.c.bf16 %v4773, %v4772
          %v4833 = vpack.c.bf16 %v4775, %v4774
          %v4834 = vpack.c.bf16 %v4777, %v4776
          %v4835 = vpack.c.bf16 %v4779, %v4778
          %v4852 = vunpack.c.l.b16 %v4820
          %v4853 = vunpack.c.h.b16 %v4820
          %v4854 = vunpack.c.l.b16 %v4821
          %v4855 = vunpack.c.h.b16 %v4821
          %v4856 = vunpack.c.l.b16 %v4822
          %v4857 = vunpack.c.h.b16 %v4822
          %v4858 = vunpack.c.l.b16 %v4823
          %v4859 = vunpack.c.h.b16 %v4823
          %v4860 = vunpack.c.l.b16 %v4824
          %v4861 = vunpack.c.h.b16 %v4824
          %v4862 = vunpack.c.l.b16 %v4825
          %v4863 = vunpack.c.h.b16 %v4825
          %v4864 = vunpack.c.l.b16 %v4826
          %v4865 = vunpack.c.h.b16 %v4826
          %v4866 = vunpack.c.l.b16 %v4827
          %v4867 = vunpack.c.h.b16 %v4827
          %v4868 = vunpack.c.l.b16 %v4828
          %v4869 = vunpack.c.h.b16 %v4828
          %v4870 = vunpack.c.l.b16 %v4829
          %v4871 = vunpack.c.h.b16 %v4829
          %v4872 = vunpack.c.l.b16 %v4830
          %v4873 = vunpack.c.h.b16 %v4830
          %v4874 = vunpack.c.l.b16 %v4831
          %v4875 = vunpack.c.h.b16 %v4831
          %v4876 = vunpack.c.l.b16 %v4832
          %v4877 = vunpack.c.h.b16 %v4832
          %v4878 = vunpack.c.l.b16 %v4833
          %v4879 = vunpack.c.h.b16 %v4833
          %v4880 = vunpack.c.l.b16 %v4834
          %v4881 = vunpack.c.h.b16 %v4834
          %v4882 = vunpack.c.l.b16 %v4835
          %v4883 = vunpack.c.h.b16 %v4835
          %v4884 = vpack.c.b16 %v4852, %v4852
          %v4885 = vpack.c.b16 %v4853, %v4853
          %v4886 = vpack.c.b16 %v4854, %v4854
          %v4887 = vpack.c.b16 %v4855, %v4855
          %v4888 = vpack.c.b16 %v4856, %v4856
          %v4889 = vpack.c.b16 %v4857, %v4857
          %v4890 = vpack.c.b16 %v4858, %v4858
          %v4891 = vpack.c.b16 %v4859, %v4859
          %v4892 = vpack.c.b16 %v4860, %v4860
          %v4893 = vpack.c.b16 %v4861, %v4861
          %v4894 = vpack.c.b16 %v4862, %v4862
          %v4895 = vpack.c.b16 %v4863, %v4863
          %v4896 = vpack.c.b16 %v4864, %v4864
          %v4897 = vpack.c.b16 %v4865, %v4865
          %v4898 = vpack.c.b16 %v4866, %v4866
          %v4899 = vpack.c.b16 %v4867, %v4867
          %v4900 = vpack.c.b16 %v4868, %v4868
          %v4901 = vpack.c.b16 %v4869, %v4869
          %v4902 = vpack.c.b16 %v4870, %v4870
          %v4903 = vpack.c.b16 %v4871, %v4871
          %v4904 = vpack.c.b16 %v4872, %v4872
          %v4905 = vpack.c.b16 %v4873, %v4873
          %v4906 = vpack.c.b16 %v4874, %v4874
          %v4907 = vpack.c.b16 %v4875, %v4875
          %v4908 = vpack.c.b16 %v4876, %v4876
          %v4909 = vpack.c.b16 %v4877, %v4877
          %v4910 = vpack.c.b16 %v4878, %v4878
          %v4911 = vpack.c.b16 %v4879, %v4879
          %v4912 = vpack.c.b16 %v4880, %v4880
          %v4913 = vpack.c.b16 %v4881, %v4881
          %v4914 = vpack.c.b16 %v4882, %v4882
          %v4915 = vpack.c.b16 %v4883, %v4883
          %4948 = vst [vmem:[%s341] sm:$0xf] %v4884
          %4949 = vst [vmem:[%s341 + $0x4] sm:$0xf] %v4885
          %4950 = vst [vmem:[%s341 + $0x8] sm:$0xf] %v4886
          %4951 = vst [vmem:[%s341 + $0xc] sm:$0xf] %v4887
          %4952 = vst [vmem:[%s341 + $0x10] sm:$0xf] %v4888
          %4953 = vst [vmem:[%s341 + $0x14] sm:$0xf] %v4889
          %4954 = vst [vmem:[%s341 + $0x18] sm:$0xf] %v4890
          %4955 = vst [vmem:[%s341 + $0x1c] sm:$0xf] %v4891
          %4956 = vst [vmem:[%s341 + $0x20] sm:$0xf] %v4892
          %4957 = vst [vmem:[%s341 + $0x24] sm:$0xf] %v4893
          %4958 = vst [vmem:[%s341 + $0x28] sm:$0xf] %v4894
          %4959 = vst [vmem:[%s341 + $0x2c] sm:$0xf] %v4895
          %4960 = vst [vmem:[%s341 + $0x30] sm:$0xf] %v4896
          %4961 = vst [vmem:[%s341 + $0x34] sm:$0xf] %v4897
          %4962 = vst [vmem:[%s341 + $0x38] sm:$0xf] %v4898
          %4963 = vst [vmem:[%s341 + $0x3c] sm:$0xf] %v4899
          %4964 = vst [vmem:[%s341 + $0x40] sm:$0xf] %v4900
          %4965 = vst [vmem:[%s341 + $0x44] sm:$0xf] %v4901
          %4966 = vst [vmem:[%s341 + $0x48] sm:$0xf] %v4902
          %4967 = vst [vmem:[%s341 + $0x4c] sm:$0xf] %v4903
          %4968 = vst [vmem:[%s341 + $0x50] sm:$0xf] %v4904
          %4969 = vst [vmem:[%s341 + $0x54] sm:$0xf] %v4905
          %4970 = vst [vmem:[%s341 + $0x58] sm:$0xf] %v4906
          %4971 = vst [vmem:[%s341 + $0x5c] sm:$0xf] %v4907
          %4972 = vst [vmem:[%s341 + $0x60] sm:$0xf] %v4908
          %4973 = vst [vmem:[%s341 + $0x64] sm:$0xf] %v4909
          %4974 = vst [vmem:[%s341 + $0x68] sm:$0xf] %v4910
          %4975 = vst [vmem:[%s341 + $0x6c] sm:$0xf] %v4911
          %4976 = vst [vmem:[%s341 + $0x70] sm:$0xf] %v4912
          %4977 = vst [vmem:[%s341 + $0x74] sm:$0xf] %v4913
          %4978 = vst [vmem:[%s341 + $0x78] sm:$0xf] %v4914
          %4979 = vst [vmem:[%s341 + $0x7c] sm:$0xf] %v4915
        $region64: #{tpu_custom_call.1} parent=35 // pred_fallthru
          _
        %s4980 = sand.u32 %s151, 1
        %s4981 = scalar_lea.sflag [#allocation5], %s4980
        %s4982 = sand.u32 %s151, 1
        %s4983 = smul.addr %s4982, 128
        %s4984 = scalar_lea.vmem [#allocation11], %s4983
        // Predicated region
        $region65: #{tpu_custom_call.1} parent=35 // pred_check
          %p4985 = pneg %p161
        $region66: #{tpu_custom_call.1} parent=35 // pred_check_branch
          %4987 = sbr.rel (%p4985) target = $region68
        $region67: #{tpu_custom_call.1} parent=35 // pred_region
          %s4989 = ssub.s32 2048, 2048
          %4990 = vsyncadd %s4981, %s4989
          %s4991 = smul.addr %s31, 32
          %s4992 = smul.addr %s4991, 64
          %s4993 = scalar_lea.hbm %s4, %s4992
          %s4994 = sshll.u32 %s4984, 4
          %s4995 = int_to_ptr.vmem [resolvable:$true] %s4994
          %5000 = dma.vmem_to_hbm [thread:$0]  %s4995, 2048, %s4993, %s4981, 64, 64, 4
        $region68: #{tpu_custom_call.1} parent=35 // pred_fallthru
          _
      $region36: #{tpu_custom_call.1} parent=5 // pred_fallthru
        _
      %p5001 = scmp.le.s32.totalorder 2, %s22
      // Predicated region
      $region69: #{tpu_custom_call.1} parent=5 // pred_check
        %p5002 = pneg %p5001
      $region70: #{tpu_custom_call.1} parent=5 // pred_check_branch
        %5004 = sbr.rel (%p5002) target = $region72
      $region71: #{tpu_custom_call.1} parent=5 // pred_region
        %s5005 = ssub.s32 %s22, 2
        // Predicated region
        $region73: #{tpu_custom_call.1} parent=71 // pred_check
          %p5006 = pneg %p167
        $region74: #{tpu_custom_call.1} parent=71 // pred_check_branch
          %5008 = sbr.rel (%p5006) target = $region76
        $region75: #{tpu_custom_call.1} parent=71 // pred_region
          %s5009 = sand.u32 %s152, 1
          %s5010 = scalar_lea.sflag [#allocation5], %s5009
          %s5011 = sand.u32 %s152, 1
          %s5012 = smul.addr %s5011, 128
          %s5013 = scalar_lea.vmem [#allocation11], %s5012
          %5014 = dma.done %s5010, 2048
        $region76: #{tpu_custom_call.1} parent=71 // pred_fallthru
          _
      $region72: #{tpu_custom_call.1} parent=5 // pred_fallthru
        _
    $region6: #{tpu_custom_call.1} parent=1 // loop_footer
      %s26 = sadd.s32 1, %s22
    $region7: #{tpu_custom_call.1} parent=1 // loop_footer_branch
      %21 = sbr.rel target = $region3
    $region8: #{tpu_custom_call.1} parent=1 // loop_exit
      _
    %5015 = vsyncpa [#allocation4], 1
    %s5016 = scalar_lea.sflag [#allocation4], 1
    %5017 = vsyncpa %s5016, 1
    %5018 = vsyncpa [#allocation7], 1
    %s5019 = scalar_lea.sflag [#allocation7], 1
    %5020 = vsyncpa %s5019, 1
    %5021 = vsyncpa [#allocation10], 1
    %s5022 = scalar_lea.sflag [#allocation10], 1
    %5023 = vsyncpa %s5022, 1
    %5024 = vsyncpa [#allocation5], 1
    %s5025 = scalar_lea.sflag [#allocation5], 1
    %5026 = vsyncpa %s5025, 1

</llo_original>
